<compile_context>
chip_gen: v5e
topology: v5e:2x2
jax: 0.10.0
libtpu: 0.0.40
codegen_flags: <defaults>
</compile_context>

<pallas_src>
import math

import jax
import jax.numpy as jnp
from jax.experimental import pallas as pl
from jax.experimental.pallas import tpu as pltpu

# ----------------------------- configuration --------------------------------
B = 2                 # batch
WIN = 40              # window_size
C = 4                 # num_channel
F = 5
PT = 1                # Pt (ViT_TNet)
PF = 4                # Pf (ViT_FNet)
QF = 10               # Qf (ViT_FNet)
DIM = 32              # transformer dim
HEADS = 4
DIM_HEAD = DIM // HEADS
MLP_DIM = 64
NCLASS = 10           # number_gesture (class_rest=False)
POOL = 4              # conv_max_pool_factor
KSIZE = 9             # Conv1d kernel size
PAD = 4               # 'same' padding for k=9

CF = C * F                                      # conv output channels = 20
WP = WIN // POOL                                # pooled length = 10
T_PATCH = WIN // (PT * POOL)                    # TNet patch_size = 10
T_NPATCH = C * PT * F                           # TNet num_patch  = 20
F_PATCH = PF * QF                               # FNet patch_size = 40
F_NPATCH = (CF // PF) * (WIN // (POOL * QF))    # FNet num_patch  = 5
N1_T = T_NPATCH + 1                             # TNet tokens = 21
N1_F = F_NPATCH + 1                             # FNet tokens = 6
MWIDTH = B * WIN - (POOL - 1)                   # width of shifted-max stack = 77

F_RSEL_BLK = 8        # row stride of FNet row-gather blocks inside the slab
F_WE_BLK = 16         # row stride of FNet patch-embedding weight blocks

SCALE = DIM_HEAD ** -0.5
INV_SQRT2 = 1.0 / math.sqrt(2.0)
EPS_LN = 1e-5
EPS_BN = 1e-5

assert WIN % (POOL * QF) == 0 and CF % PF == 0
assert T_PATCH == WP and T_NPATCH == CF          # holds for Pt = 1
assert QF == WP                                  # FNet per-part contraction length


# ----------------------- parameter-slab layout (static) ----------------------
def _slab_layout():
    entries = [
        # --- TNet branch ---
        ("t_w2d", CF, KSIZE * C),
        ("t_bias2d", CF, B * WIN),
        ("t_pos", N1_T, DIM),
        ("t_wqkv", DIM, 3 * DIM),
        ("t_wo", DIM, DIM),
        ("t_w1", DIM, MLP_DIM),
        ("t_w2", MLP_DIM, DIM),
        ("t_vecs", 9, MLP_DIM),
        ("t_rsel", N1_T, CF),
        ("t_we", T_PATCH, DIM),
        # --- FNet branch ---
        ("f_w2d", CF, KSIZE * C),
        ("f_bias2d", CF, B * WIN),
        ("f_pos", N1_F, DIM),
        ("f_wqkv", DIM, 3 * DIM),
        ("f_wo", DIM, DIM),
        ("f_w1", DIM, MLP_DIM),
        ("f_w2", MLP_DIM, DIM),
        ("f_vecs", 9, MLP_DIM),
        ("f_rsel", PF * F_RSEL_BLK, CF),
        ("f_we", PF * F_WE_BLK, DIM),
        # --- shared / heads ---
        ("sel", MWIDTH, B * WP),
        ("hv", 6, DIM),
        ("hw", 3 * DIM, NCLASS),
        ("hb", 3, NCLASS),
    ]
    off, layout = 0, {}
    for name, r, c in entries:
        layout[name] = (off, r, c)
        off += r + ((-r) % 8)            # keep every section sublane-aligned
    return layout, off


SLAB_OFF, SLAB_ROWS = _slab_layout()


# ------------------------------- the kernel ----------------------------------
def _fused_kernel(im2_ref, slab_ref, out_ref):
    """Entire ViT_TraHGR forward (both branches + all three heads), one launch."""
    f32 = jnp.float32

    def sl(name, row_off=0, rows=None, cols=None):
        off, r, c = SLAB_OFF[name]
        rows = r if rows is None else rows
        cols = c if cols is None else cols
        return slab_ref[off + row_off:off + row_off + rows, :cols]

    def layernorm(t, g, b):
        mu = jnp.mean(t, axis=-1, keepdims=True)
        var = jnp.mean((t - mu) ** 2, axis=-1, keepdims=True)
        return (t - mu) * jax.lax.rsqrt(var + EPS_LN) * g + b

    im2 = im2_ref[...]                                     # (KSIZE*C, B*WIN)
    sel = sl("sel")                                        # (77, B*WP)

    z = {}                                                 # (branch, batch) -> (1, DIM)
    for prefix, n1, n_parts, rsel_blk, we_blk in (
            ("t_", N1_T, 1, 0, 0),
            ("f_", N1_F, PF, F_RSEL_BLK, F_WE_BLK)):
        # ---- Conv1d('same', k=9) with BN folded in: one matmul + bias + ReLU
        y = jnp.dot(sl(prefix + "w2d"), im2, preferred_element_type=f32)
        y = jnp.maximum(y + sl(prefix + "bias2d"), 0.0)    # (CF, B*WIN)

        # ---- MaxPool1d(4): max of 4 shifted lane-slices + 0/1 column selection
        m = y[:, 0:MWIDTH]
        for k in range(1, POOL):
            m = jnp.maximum(m, y[:, k:k + MWIDTH])
        pooled = jnp.dot(m, sel, preferred_element_type=f32)   # (CF, B*WP)

        wqkv = sl(prefix + "wqkv")          # (DIM, 3*DIM), 1/sqrt(dh) folded in Q
        wo = sl(prefix + "wo")
        w1 = sl(prefix + "w1")
        w2 = sl(prefix + "w2")
        pos = sl(prefix + "pos")            # (n1, DIM), cls + emb-bias folded in
        voff = SLAB_OFF[prefix + "vecs"][0]

        def vrow(i, w=DIM):
            return slab_ref[voff + i:voff + i + 1, :w]

        ag, ab, bo = vrow(0), vrow(1), vrow(2)
        fg, fb = vrow(3), vrow(4)
        b1, b2 = vrow(5, MLP_DIM), vrow(6)
        ng, nb = vrow(7), vrow(8)

        for b in range(B):
            pb = pooled[:, b * WP:(b + 1) * WP]            # (CF, WP)

            # patchify + patch embedding + cls-row shift, all as small matmuls:
            #   tokens = pos_full + sum_p (rsel_p @ pooled_b) @ we_p
            xt = pos
            for pp in range(n_parts):
                rsel_p = sl(prefix + "rsel", row_off=pp * rsel_blk, rows=n1)
                we_p = sl(prefix + "we", row_off=pp * we_blk, rows=WP, cols=DIM)
                xt = xt + jnp.dot(
                    jnp.dot(rsel_p, pb, preferred_element_type=f32),
                    we_p, preferred_element_type=f32)

            # ---- attention (pre-LN); per-head output accumulated into residual
            xn = layernorm(xt, ag, ab)
            qkv = jnp.dot(xn, wqkv, preferred_element_type=f32)   # (n1, 3*DIM)
            for h in range(HEADS):
                q = qkv[:, h * DIM_HEAD:(h + 1) * DIM_HEAD]
                k = qkv[:, DIM + h * DIM_HEAD:DIM + (h + 1) * DIM_HEAD]
                v = qkv[:, 2 * DIM + h * DIM_HEAD:2 * DIM + (h + 1) * DIM_HEAD]
                dots = jax.lax.dot_general(q, k, (((1,), (1,)), ((), ())),
                                           preferred_element_type=f32)
                e = jnp.exp(dots - jnp.max(dots, axis=-1, keepdims=True))
                p = e * pl.reciprocal(jnp.sum(e, axis=-1, keepdims=True),
                                      approx=True)
                oh = jnp.dot(p, v, preferred_element_type=f32)
                xt = xt + jnp.dot(oh, wo[h * DIM_HEAD:(h + 1) * DIM_HEAD, :],
                                  preferred_element_type=f32)
            xt = xt + bo

            # ---- feed-forward (pre-LN, exact GELU)
            xn = layernorm(xt, fg, fb)
            h1 = jnp.dot(xn, w1, preferred_element_type=f32) + b1
            h1 = 0.5 * h1 * (1.0 + jax.lax.erf(h1 * INV_SQRT2))
            xt = xt + jnp.dot(h1, w2, preferred_element_type=f32) + b2

            # ---- final LayerNorm + 'cls' pooling
            xt = layernorm(xt, ng, nb)
            z[(prefix, b)] = xt[0:1, :]

    # ---- the three LayerNorm+Linear heads (TNet, FNet, TraHGR on z_t + z_f)
    hv_off = SLAB_OFF["hv"][0]
    hw_off = SLAB_OFF["hw"][0]
    hb_off = SLAB_OFF["hb"][0]
    for b in range(B):
        zt, zf = z[("t_", b)], z[("f_", b)]
        cand = (zt, zf, zt + zf)
        for j in range(3):
            g = slab_ref[hv_off + 2 * j:hv_off + 2 * j + 1, :DIM]
            bb = slab_ref[hv_off + 2 * j + 1:hv_off + 2 * j + 2, :DIM]
            wj = slab_ref[hw_off + j * DIM:hw_off + (j + 1) * DIM, :NCLASS]
            bj = slab_ref[hb_off + j:hb_off + j + 1, :NCLASS]
            zn = layernorm(cand[j], g, bb)
            out_ref[j * B + b:j * B + b + 1, :] = (
                jnp.dot(zn, wj, preferred_element_type=f32) + bj)


# ----------------------------- pallas wrapper ---------------------------------
def vit_trahgr_forward(x, slab):
    """x: (B, window, channel) exactly like the PyTorch module's input."""
    x_ncw = jnp.transpose(x, (0, 2, 1))                      # (B, C, WIN)
    xpad = jnp.pad(x_ncw, ((0, 0), (0, 0), (PAD, PAD)))
    # im2col for the k=9 'same' conv, built wrapper-side (pure layout plumbing):
    #   row = k*C + c, col = b*WIN + t, value = xpad[b, c, t + k]
    cols = jnp.stack([xpad[:, :, k:k + WIN] for k in range(KSIZE)], axis=0)
    im2 = cols.transpose(0, 2, 1, 3).reshape(KSIZE * C, B * WIN)

    logits = pl.pallas_call(
        _fused_kernel,
        out_shape=jax.ShapeDtypeStruct((3 * B, NCLASS), jnp.float32),
        compiler_params=pltpu.CompilerParams(vmem_limit_bytes=32 * 1024 * 1024),
    )(im2, slab)
    out = logits.reshape(3, B, NCLASS)
    return out[0], out[1], out[2]


# --------------------------- parameter handling ------------------------------
def init_branch_params(key, *, patch_size, num_patch):
    ks = jax.random.split(key, 17)
    n = jax.random.normal
    p = dict(
        bn_gamma=1.0 + 0.1 * n(ks[0], (C,)),
        bn_beta=0.1 * n(ks[1], (C,)),
        bn_mean=0.1 * n(ks[2], (C,)),
        bn_var=1.0 + 0.1 * jnp.abs(n(ks[3], (C,))),
        conv_w=0.1 * n(ks[4], (CF, C, KSIZE)),
        conv_b=0.1 * n(ks[5], (CF,)),
        we=0.1 * n(ks[6], (patch_size, DIM)),
        be=0.1 * n(ks[7], (DIM,)),
        cls=n(ks[8], (DIM,)),
        pos=n(ks[9], (num_patch + 1, DIM)),
        ln1_g=jnp.ones((DIM,)), ln1_b=jnp.zeros((DIM,)),
        wqkv=0.1 * n(ks[10], (DIM, 3 * DIM)),
        wo=0.1 * n(ks[11], (DIM, DIM)),
        bo=0.1 * n(ks[12], (DIM,)),
        ln2_g=jnp.ones((DIM,)), ln2_b=jnp.zeros((DIM,)),
        w1=0.1 * n(ks[13], (DIM, MLP_DIM)),
        b1=0.1 * n(ks[14], (MLP_DIM,)),
        w2=0.1 * n(ks[15], (MLP_DIM, DIM)),
        b2=0.1 * n(ks[16], (DIM,)),
        ln3_g=jnp.ones((DIM,)), ln3_b=jnp.zeros((DIM,)),
    )
    return {k: v.astype(jnp.float32) for k, v in p.items()}


def init_head_params(key):
    k1, k2 = jax.random.split(key)
    return dict(g=jnp.ones((DIM,), jnp.float32),
                b=jnp.zeros((DIM,), jnp.float32),
                w=(0.1 * jax.random.normal(k1, (DIM, NCLASS))).astype(jnp.float32),
                bias=(0.1 * jax.random.normal(k2, (NCLASS,))).astype(jnp.float32))


def prepare_params(tnet, fnet, heads):
    """Fold BN/conv/cls/pos/scale etc. and pack EVERYTHING into one (R,128) slab."""
    f32 = jnp.float32
    slab = jnp.zeros((SLAB_ROWS, 128), f32)

    def put(s, name, arr):
        off, r, c = SLAB_OFF[name]
        arr = jnp.asarray(arr, f32)
        assert arr.shape == (r, c), (name, arr.shape, (r, c))
        return s.at[off:off + r, :c].set(arr)

    for prefix, p, num_patch in (("t_", tnet, T_NPATCH), ("f_", fnet, F_NPATCH)):
        n1 = num_patch + 1
        # BatchNorm1d (eval) fold: scale into conv weights; the shift becomes a
        # position-dependent bias (the 'same' zero padding clips it near edges).
        scale = p['bn_gamma'] / jnp.sqrt(p['bn_var'] + EPS_BN)
        shift = p['bn_beta'] - p['bn_mean'] * scale
        w_s = p['conv_w'] * scale[None, :, None]
        w2d = jnp.transpose(w_s, (0, 2, 1)).reshape(CF, KSIZE * C)
        shift_pad = jnp.pad(jnp.broadcast_to(shift[:, None], (C, WIN)),
                            ((0, 0), (PAD, PAD)))
        contrib = sum(p['conv_w'][:, :, k] @ shift_pad[:, k:k + WIN]
                      for k in range(KSIZE))
        bias2d = jnp.tile(p['conv_b'][:, None] + contrib, (1, B))

        # cls token + patch-embedding bias folded into the position embedding.
        posf = jnp.zeros((n1, DIM), f32)
        posf = posf.at[0].set(p['pos'][0] + p['cls'])
        posf = posf.at[1:].set(p['pos'][1:] + p['be'][None, :])

        # attention scale folded into the Q columns of wqkv.
        qscale = jnp.concatenate([jnp.full((DIM,), SCALE, f32),
                                  jnp.ones((2 * DIM,), f32)])
        wqkv = p['wqkv'] * qscale[None, :]

        # patchify encoded as 0/1 row-gather matrices (cls-row shift folded in).
        if prefix == "t_":   # TNet: x.reshape(b, -1, patch_size) == identity rows
            rsel = jnp.zeros((n1, CF), f32).at[
                1 + jnp.arange(T_NPATCH), jnp.arange(T_NPATCH)].set(1.0)
            we_stack = p['we']                                        # (10, 32)
        else:                # FNet: rearrange 'b (c p) (w q) -> b (c w) (p q)'
            rows = jnp.arange(F_NPATCH)
            rsel = jnp.zeros((PF * F_RSEL_BLK, CF), f32)
            we_stack = jnp.zeros((PF * F_WE_BLK, DIM), f32)
            for pp in range(PF):
                rsel = rsel.at[pp * F_RSEL_BLK + 1 + rows,
                               PF * rows + pp].set(1.0)
                we_stack = we_stack.at[pp * F_WE_BLK:pp * F_WE_BLK + QF].set(
                    p['we'][pp * QF:(pp + 1) * QF])

        def pad_v(v, w=MLP_DIM):
            return jnp.pad(v, (0, w - v.shape[0]))
        vecs = jnp.stack([pad_v(p['ln1_g']), pad_v(p['ln1_b']), pad_v(p['bo']),
                          pad_v(p['ln2_g']), pad_v(p['ln2_b']), pad_v(p['b1']),
                          pad_v(p['b2']), pad_v(p['ln3_g']), pad_v(p['ln3_b'])])

        for name, arr in ((prefix + "w2d", w2d), (prefix + "bias2d", bias2d),
                          (prefix + "pos", posf), (prefix + "wqkv", wqkv),
                          (prefix + "wo", p['wo']), (prefix + "w1", p['w1']),
                          (prefix + "w2", p['w2']), (prefix + "vecs", vecs),
                          (prefix + "rsel", rsel), (prefix + "we", we_stack)):
            slab = put(slab, name, arr)

    # MaxPool1d(4) column-selection matrix (shared by both branches).
    r = jnp.arange(MWIDTH)[:, None]
    j = jnp.arange(B * WP)[None, :]
    sel = (r == (j // WP) * WIN + (j % WP) * POOL).astype(f32)
    slab = put(slab, "sel", sel)

    # heads: LayerNorm gamma/beta, linear weights, biases.
    slab = put(slab, "hv", jnp.concatenate(
        [jnp.stack([h['g'], h['b']]) for h in heads], axis=0))
    slab = put(slab, "hw", jnp.concatenate([h['w'] for h in heads], axis=0))
    slab = put(slab, "hb", jnp.stack([h['bias'] for h in heads]))
    return slab


# --------------------------- pure-JAX reference ------------------------------
def _reference_forward(x, tnet, fnet, heads_nat):
    def ln(t, g, b_):
        mu = t.mean(-1, keepdims=True)
        va = ((t - mu) ** 2).mean(-1, keepdims=True)
        return (t - mu) / jnp.sqrt(va + EPS_LN) * g + b_

    def branch(p, mode):
        xb = jnp.transpose(x, (0, 2, 1))
        s = p['bn_gamma'] / jnp.sqrt(p['bn_var'] + EPS_BN)
        xb = (xb - p['bn_mean'][None, :, None]) * s[None, :, None] \
            + p['bn_beta'][None, :, None]
        xp = jnp.pad(xb, ((0, 0), (0, 0), (PAD, PAD)))
        y = p['conv_b'][None, :, None] + sum(
            jnp.einsum('oc,bct->bot', p['conv_w'][:, :, k], xp[:, :, k:k + WIN])
            for k in range(KSIZE))
        y = jnp.maximum(y, 0.0).reshape(B, CF, WP, POOL).max(axis=-1)
        if mode == 't':
            patches = y.reshape(B, T_NPATCH, T_PATCH)
        else:
            patches = (y.reshape(B, CF // PF, PF, WP // QF, QF)
                        .transpose(0, 1, 3, 2, 4).reshape(B, F_NPATCH, F_PATCH))
        emb = patches @ p['we'] + p['be']
        tok = jnp.concatenate([jnp.broadcast_to(p['cls'], (B, 1, DIM)), emb],
                              axis=1) + p['pos'][None]
        xn = ln(tok, p['ln1_g'], p['ln1_b'])
        q, k_, v = jnp.split(xn @ p['wqkv'], 3, axis=-1)
        sh = lambda t: t.reshape(B, -1, HEADS, DIM_HEAD).transpose(0, 2, 1, 3)
        q, k_, v = sh(q), sh(k_), sh(v)
        att = jax.nn.softmax(jnp.einsum('bhnd,bhmd->bhnm', q, k_) * SCALE, axis=-1)
        o = jnp.einsum('bhnm,bhmd->bhnd', att, v).transpose(0, 2, 1, 3)
        tok = tok + o.reshape(B, -1, DIM) @ p['wo'] + p['bo']
        xn = ln(tok, p['ln2_g'], p['ln2_b'])
        h1 = xn @ p['w1'] + p['b1']
        h1 = 0.5 * h1 * (1.0 + jax.lax.erf(h1 * INV_SQRT2))
        tok = tok + h1 @ p['w2'] + p['b2']
        return ln(tok, p['ln3_g'], p['ln3_b'])[:, 0]

    zt, zf = branch(tnet, 't'), branch(fnet, 'f')

    def head(z, h):
        return ln(z, h['g'], h['b']) @ h['w'] + h['bias']

    return head(zt, heads_nat[0]), head(zf, heads_nat[1]), head(zt + zf, heads_nat[2])


# --------------------------------- main ---------------------------------------
if __name__ == "__main__":
    key = jax.random.PRNGKey(0)
    kx, kt, kf, kh1, kh2, kh3 = jax.random.split(key, 6)

    x = jax.random.normal(kx, (B, WIN, C), jnp.float32)   # (batch, window, channel)

    tnet = init_branch_params(kt, patch_size=T_PATCH, num_patch=T_NPATCH)
    fnet = init_branch_params(kf, patch_size=F_PATCH, num_patch=F_NPATCH)
    head_t = init_head_params(kh1)
    head_f = init_head_params(kh2)
    head_a = init_head_params(kh3)

    slab = prepare_params(tnet, fnet, (head_t, head_f, head_a))

    fwd = jax.jit(vit_trahgr_forward)
    out_t, out_f, out_a = fwd(x, slab)
    jax.block_until_ready((out_t, out_f, out_a))

    assert out_t.shape == (B, NCLASS)
    assert out_f.shape == (B, NCLASS)
    assert out_a.shape == (B, NCLASS)

    # numerical check against a pure-JAX reference of the PyTorch forward
    ref_t, ref_f, ref_a = _reference_forward(x, tnet, fnet, (head_t, head_f, head_a))
    err = max(float(jnp.max(jnp.abs(out_t - ref_t))),
              float(jnp.max(jnp.abs(out_f - ref_f))),
              float(jnp.max(jnp.abs(out_a - ref_a))))
    # tolerance accounts for pl.reciprocal(approx=True) in the softmax denominator
    assert err < 1e-2, f"mismatch vs reference: {err}"

    print("KERNEL_OK")
</pallas_src>

<mosaic_0001>
module attributes {stable_mosaic.version = 11 : i64} {
  func.func @_fused_kernel(%arg0: memref<36x80xf32, #tpu.memory_space<vmem>>, %arg1: memref<808x128xf32, #tpu.memory_space<vmem>>, %arg2: memref<6x10xf32, #tpu.memory_space<vmem>>) attributes {dimension_semantics = [], scalar_prefetch = 0 : i64, scratch_operands = 0 : i64, tpu.core_type = #tpu.core_type<tc>} {
    %c0 = arith.constant 0 : index
    %c0_0 = arith.constant 0 : index
    %0 = vector.load %arg0[%c0, %c0_0] : memref<36x80xf32, #tpu.memory_space<vmem>>, vector<36x80xf32>
    %c616 = arith.constant 616 : index
    %c0_1 = arith.constant 0 : index
    %1 = vector.load %arg1[%c616, %c0_1] : memref<808x128xf32, #tpu.memory_space<vmem>>, vector<77x20xf32>
    %c0_2 = arith.constant 0 : index
    %c0_3 = arith.constant 0 : index
    %2 = vector.load %arg1[%c0_2, %c0_3] : memref<808x128xf32, #tpu.memory_space<vmem>>, vector<20x36xf32>
    %cst = arith.constant dense<0.000000e+00> : vector<20x80xf32>
    %3 = tpu.matmul %2, %0, %cst {dimension_numbers = #tpu.dot_dimension_numbers<[1], [0], [0], [1], [0, 0, 1, 1], [], []>} : vector<20x36xf32>, vector<36x80xf32>, vector<20x80xf32> -> vector<20x80xf32>
    %c24 = arith.constant 24 : index
    %c0_4 = arith.constant 0 : index
    %4 = vector.load %arg1[%c24, %c0_4] : memref<808x128xf32, #tpu.memory_space<vmem>>, vector<20x80xf32>
    %5 = arith.addf %3, %4 : vector<20x80xf32>
    %cst_5 = arith.constant 0.000000e+00 : f32
    %6 = vector.broadcast %cst_5 : f32 to vector<20x80xf32>
    %7 = arith.maximumf %5, %6 : vector<20x80xf32>
    %8 = vector.extract_strided_slice %7 {offsets = [0, 0], sizes = [20, 77], strides = [1, 1]} : vector<20x80xf32> to vector<20x77xf32>
    %9 = vector.extract_strided_slice %7 {offsets = [0, 1], sizes = [20, 77], strides = [1, 1]} : vector<20x80xf32> to vector<20x77xf32>
    %10 = arith.maximumf %8, %9 : vector<20x77xf32>
    %11 = vector.extract_strided_slice %7 {offsets = [0, 2], sizes = [20, 77], strides = [1, 1]} : vector<20x80xf32> to vector<20x77xf32>
    %12 = arith.maximumf %10, %11 : vector<20x77xf32>
    %13 = vector.extract_strided_slice %7 {offsets = [0, 3], sizes = [20, 77], strides = [1, 1]} : vector<20x80xf32> to vector<20x77xf32>
    %14 = arith.maximumf %12, %13 : vector<20x77xf32>
    %cst_6 = arith.constant dense<0.000000e+00> : vector<20x20xf32>
    %15 = tpu.matmul %14, %1, %cst_6 {dimension_numbers = #tpu.dot_dimension_numbers<[1], [0], [0], [1], [0, 0, 1, 1], [], []>} : vector<20x77xf32>, vector<77x20xf32>, vector<20x20xf32> -> vector<20x20xf32>
    %c72 = arith.constant 72 : index
    %c0_7 = arith.constant 0 : index
    %16 = vector.load %arg1[%c72, %c0_7] : memref<808x128xf32, #tpu.memory_space<vmem>>, vector<32x96xf32>
    %c104 = arith.constant 104 : index
    %c0_8 = arith.constant 0 : index
    %17 = vector.load %arg1[%c104, %c0_8] : memref<808x128xf32, #tpu.memory_space<vmem>>, vector<32x32xf32>
    %c136 = arith.constant 136 : index
    %c0_9 = arith.constant 0 : index
    %18 = vector.load %arg1[%c136, %c0_9] : memref<808x128xf32, #tpu.memory_space<vmem>>, vector<32x64xf32>
    %c168 = arith.constant 168 : index
    %c0_10 = arith.constant 0 : index
    %19 = vector.load %arg1[%c168, %c0_10] : memref<808x128xf32, #tpu.memory_space<vmem>>, vector<64x32xf32>
    %c48 = arith.constant 48 : index
    %c0_11 = arith.constant 0 : index
    %20 = vector.load %arg1[%c48, %c0_11] : memref<808x128xf32, #tpu.memory_space<vmem>>, vector<21x32xf32>
    %c232 = arith.constant 232 : index
    %c0_12 = arith.constant 0 : index
    %21 = vector.load %arg1[%c232, %c0_12] : memref<808x128xf32, #tpu.memory_space<vmem>>, vector<1x32xf32>
    %c233 = arith.constant 233 : index
    %c0_13 = arith.constant 0 : index
    %22 = vector.load %arg1[%c233, %c0_13] : memref<808x128xf32, #tpu.memory_space<vmem>>, vector<1x32xf32>
    %c234 = arith.constant 234 : index
    %c0_14 = arith.constant 0 : index
    %23 = vector.load %arg1[%c234, %c0_14] : memref<808x128xf32, #tpu.memory_space<vmem>>, vector<1x32xf32>
    %c235 = arith.constant 235 : index
    %c0_15 = arith.constant 0 : index
    %24 = vector.load %arg1[%c235, %c0_15] : memref<808x128xf32, #tpu.memory_space<vmem>>, vector<1x32xf32>
    %c236 = arith.constant 236 : index
    %c0_16 = arith.constant 0 : index
    %25 = vector.load %arg1[%c236, %c0_16] : memref<808x128xf32, #tpu.memory_space<vmem>>, vector<1x32xf32>
    %c237 = arith.constant 237 : index
    %c0_17 = arith.constant 0 : index
    %26 = vector.load %arg1[%c237, %c0_17] : memref<808x128xf32, #tpu.memory_space<vmem>>, vector<1x64xf32>
    %c238 = arith.constant 238 : index
    %c0_18 = arith.constant 0 : index
    %27 = vector.load %arg1[%c238, %c0_18] : memref<808x128xf32, #tpu.memory_space<vmem>>, vector<1x32xf32>
    %c239 = arith.constant 239 : index
    %c0_19 = arith.constant 0 : index
    %28 = vector.load %arg1[%c239, %c0_19] : memref<808x128xf32, #tpu.memory_space<vmem>>, vector<1x32xf32>
    %c240 = arith.constant 240 : index
    %c0_20 = arith.constant 0 : index
    %29 = vector.load %arg1[%c240, %c0_20] : memref<808x128xf32, #tpu.memory_space<vmem>>, vector<1x32xf32>
    %30 = vector.extract_strided_slice %15 {offsets = [0, 0], sizes = [20, 10], strides = [1, 1]} : vector<20x20xf32> to vector<20x10xf32>
    %c248 = arith.constant 248 : index
    %c0_21 = arith.constant 0 : index
    %31 = vector.load %arg1[%c248, %c0_21] : memref<808x128xf32, #tpu.memory_space<vmem>>, vector<21x20xf32>
    %c272 = arith.constant 272 : index
    %c0_22 = arith.constant 0 : index
    %32 = vector.load %arg1[%c272, %c0_22] : memref<808x128xf32, #tpu.memory_space<vmem>>, vector<10x32xf32>
    %cst_23 = arith.constant dense<0.000000e+00> : vector<21x10xf32>
    %33 = tpu.matmul %31, %30, %cst_23 {dimension_numbers = #tpu.dot_dimension_numbers<[1], [0], [0], [1], [0, 0, 1, 1], [], []>} : vector<21x20xf32>, vector<20x10xf32>, vector<21x10xf32> -> vector<21x10xf32>
    %cst_24 = arith.constant dense<0.000000e+00> : vector<21x32xf32>
    %34 = tpu.matmul %33, %32, %cst_24 {dimension_numbers = #tpu.dot_dimension_numbers<[1], [0], [0], [1], [0, 0, 1, 1], [], []>} : vector<21x10xf32>, vector<10x32xf32>, vector<21x32xf32> -> vector<21x32xf32>
    %35 = arith.addf %20, %34 : vector<21x32xf32>
    %cst_25 = arith.constant dense<0.000000e+00> : vector<21xf32>
    %36 = vector.multi_reduction <add>, %35, %cst_25 [1] : vector<21x32xf32> to vector<21xf32>
    %37 = vector.shape_cast %36 : vector<21xf32> to vector<21x1xf32>
    %cst_26 = arith.constant 3.200000e+01 : f32
    %38 = vector.broadcast %cst_26 : f32 to vector<21x1xf32>
    %39 = arith.divf %37, %38 : vector<21x1xf32>
    %40 = vector.broadcast %39 : vector<21x1xf32> to vector<21x32xf32>
    %41 = arith.subf %35, %40 : vector<21x32xf32>
    %42 = arith.mulf %41, %41 : vector<21x32xf32>
    %cst_27 = arith.constant dense<0.000000e+00> : vector<21xf32>
    %43 = vector.multi_reduction <add>, %42, %cst_27 [1] : vector<21x32xf32> to vector<21xf32>
    %44 = vector.shape_cast %43 : vector<21xf32> to vector<21x1xf32>
    %cst_28 = arith.constant 3.200000e+01 : f32
    %45 = vector.broadcast %cst_28 : f32 to vector<21x1xf32>
    %46 = arith.divf %44, %45 : vector<21x1xf32>
    %47 = vector.broadcast %39 : vector<21x1xf32> to vector<21x32xf32>
    %48 = arith.subf %35, %47 : vector<21x32xf32>
    %cst_29 = arith.constant 9.99999974E-6 : f32
    %49 = vector.broadcast %cst_29 : f32 to vector<21x1xf32>
    %50 = arith.addf %46, %49 : vector<21x1xf32>
    %51 = math.rsqrt %50 : vector<21x1xf32>
    %52 = vector.broadcast %51 : vector<21x1xf32> to vector<21x32xf32>
    %53 = arith.mulf %48, %52 : vector<21x32xf32>
    %54 = vector.broadcast %21 : vector<1x32xf32> to vector<21x32xf32>
    %55 = arith.mulf %53, %54 : vector<21x32xf32>
    %56 = vector.broadcast %22 : vector<1x32xf32> to vector<21x32xf32>
    %57 = arith.addf %55, %56 : vector<21x32xf32>
    %cst_30 = arith.constant dense<0.000000e+00> : vector<21x96xf32>
    %58 = tpu.matmul %57, %16, %cst_30 {dimension_numbers = #tpu.dot_dimension_numbers<[1], [0], [0], [1], [0, 0, 1, 1], [], []>} : vector<21x32xf32>, vector<32x96xf32>, vector<21x96xf32> -> vector<21x96xf32>
    %59 = vector.extract_strided_slice %58 {offsets = [0, 0], sizes = [21, 8], strides = [1, 1]} : vector<21x96xf32> to vector<21x8xf32>
    %60 = vector.extract_strided_slice %58 {offsets = [0, 32], sizes = [21, 8], strides = [1, 1]} : vector<21x96xf32> to vector<21x8xf32>
    %61 = vector.extract_strided_slice %58 {offsets = [0, 64], sizes = [21, 8], strides = [1, 1]} : vector<21x96xf32> to vector<21x8xf32>
    %cst_31 = arith.constant dense<0.000000e+00> : vector<21x21xf32>
    %62 = tpu.matmul %59, %60, %cst_31 {dimension_numbers = #tpu.dot_dimension_numbers<[1], [1], [0], [0], [0, 0, 1, 0], [], []>} : vector<21x8xf32>, vector<21x8xf32>, vector<21x21xf32> -> vector<21x21xf32>
    %cst_32 = arith.constant dense<0xFF800000> : vector<21xf32>
    %63 = vector.multi_reduction <maximumf>, %62, %cst_32 [1] : vector<21x21xf32> to vector<21xf32>
    %64 = vector.shape_cast %63 : vector<21xf32> to vector<21x1xf32>
    %65 = vector.broadcast %64 : vector<21x1xf32> to vector<21x21xf32>
    %66 = arith.subf %62, %65 : vector<21x21xf32>
    %67 = math.exp %66 : vector<21x21xf32>
    %cst_33 = arith.constant dense<0.000000e+00> : vector<21xf32>
    %68 = vector.multi_reduction <add>, %67, %cst_33 [1] : vector<21x21xf32> to vector<21xf32>
    %69 = vector.shape_cast %68 : vector<21xf32> to vector<21x1xf32>
    %70 = tpu.reciprocal %69 {approx = true} : vector<21x1xf32> -> vector<21x1xf32>
    %71 = vector.broadcast %70 : vector<21x1xf32> to vector<21x21xf32>
    %72 = arith.mulf %67, %71 : vector<21x21xf32>
    %cst_34 = arith.constant dense<0.000000e+00> : vector<21x8xf32>
    %73 = tpu.matmul %72, %61, %cst_34 {dimension_numbers = #tpu.dot_dimension_numbers<[1], [0], [0], [1], [0, 0, 1, 1], [], []>} : vector<21x21xf32>, vector<21x8xf32>, vector<21x8xf32> -> vector<21x8xf32>
    %74 = vector.extract_strided_slice %17 {offsets = [0, 0], sizes = [8, 32], strides = [1, 1]} : vector<32x32xf32> to vector<8x32xf32>
    %cst_35 = arith.constant dense<0.000000e+00> : vector<21x32xf32>
    %75 = tpu.matmul %73, %74, %cst_35 {dimension_numbers = #tpu.dot_dimension_numbers<[1], [0], [0], [1], [0, 0, 1, 1], [], []>} : vector<21x8xf32>, vector<8x32xf32>, vector<21x32xf32> -> vector<21x32xf32>
    %76 = arith.addf %35, %75 : vector<21x32xf32>
    %77 = vector.extract_strided_slice %58 {offsets = [0, 8], sizes = [21, 8], strides = [1, 1]} : vector<21x96xf32> to vector<21x8xf32>
    %78 = vector.extract_strided_slice %58 {offsets = [0, 40], sizes = [21, 8], strides = [1, 1]} : vector<21x96xf32> to vector<21x8xf32>
    %79 = vector.extract_strided_slice %58 {offsets = [0, 72], sizes = [21, 8], strides = [1, 1]} : vector<21x96xf32> to vector<21x8xf32>
    %cst_36 = arith.constant dense<0.000000e+00> : vector<21x21xf32>
    %80 = tpu.matmul %77, %78, %cst_36 {dimension_numbers = #tpu.dot_dimension_numbers<[1], [1], [0], [0], [0, 0, 1, 0], [], []>} : vector<21x8xf32>, vector<21x8xf32>, vector<21x21xf32> -> vector<21x21xf32>
    %cst_37 = arith.constant dense<0xFF800000> : vector<21xf32>
    %81 = vector.multi_reduction <maximumf>, %80, %cst_37 [1] : vector<21x21xf32> to vector<21xf32>
    %82 = vector.shape_cast %81 : vector<21xf32> to vector<21x1xf32>
    %83 = vector.broadcast %82 : vector<21x1xf32> to vector<21x21xf32>
    %84 = arith.subf %80, %83 : vector<21x21xf32>
    %85 = math.exp %84 : vector<21x21xf32>
    %cst_38 = arith.constant dense<0.000000e+00> : vector<21xf32>
    %86 = vector.multi_reduction <add>, %85, %cst_38 [1] : vector<21x21xf32> to vector<21xf32>
    %87 = vector.shape_cast %86 : vector<21xf32> to vector<21x1xf32>
    %88 = tpu.reciprocal %87 {approx = true} : vector<21x1xf32> -> vector<21x1xf32>
    %89 = vector.broadcast %88 : vector<21x1xf32> to vector<21x21xf32>
    %90 = arith.mulf %85, %89 : vector<21x21xf32>
    %cst_39 = arith.constant dense<0.000000e+00> : vector<21x8xf32>
    %91 = tpu.matmul %90, %79, %cst_39 {dimension_numbers = #tpu.dot_dimension_numbers<[1], [0], [0], [1], [0, 0, 1, 1], [], []>} : vector<21x21xf32>, vector<21x8xf32>, vector<21x8xf32> -> vector<21x8xf32>
    %92 = vector.extract_strided_slice %17 {offsets = [8, 0], sizes = [8, 32], strides = [1, 1]} : vector<32x32xf32> to vector<8x32xf32>
    %cst_40 = arith.constant dense<0.000000e+00> : vector<21x32xf32>
    %93 = tpu.matmul %91, %92, %cst_40 {dimension_numbers = #tpu.dot_dimension_numbers<[1], [0], [0], [1], [0, 0, 1, 1], [], []>} : vector<21x8xf32>, vector<8x32xf32>, vector<21x32xf32> -> vector<21x32xf32>
    %94 = arith.addf %76, %93 : vector<21x32xf32>
    %95 = vector.extract_strided_slice %58 {offsets = [0, 16], sizes = [21, 8], strides = [1, 1]} : vector<21x96xf32> to vector<21x8xf32>
    %96 = vector.extract_strided_slice %58 {offsets = [0, 48], sizes = [21, 8], strides = [1, 1]} : vector<21x96xf32> to vector<21x8xf32>
    %97 = vector.extract_strided_slice %58 {offsets = [0, 80], sizes = [21, 8], strides = [1, 1]} : vector<21x96xf32> to vector<21x8xf32>
    %cst_41 = arith.constant dense<0.000000e+00> : vector<21x21xf32>
    %98 = tpu.matmul %95, %96, %cst_41 {dimension_numbers = #tpu.dot_dimension_numbers<[1], [1], [0], [0], [0, 0, 1, 0], [], []>} : vector<21x8xf32>, vector<21x8xf32>, vector<21x21xf32> -> vector<21x21xf32>
    %cst_42 = arith.constant dense<0xFF800000> : vector<21xf32>
    %99 = vector.multi_reduction <maximumf>, %98, %cst_42 [1] : vector<21x21xf32> to vector<21xf32>
    %100 = vector.shape_cast %99 : vector<21xf32> to vector<21x1xf32>
    %101 = vector.broadcast %100 : vector<21x1xf32> to vector<21x21xf32>
    %102 = arith.subf %98, %101 : vector<21x21xf32>
    %103 = math.exp %102 : vector<21x21xf32>
    %cst_43 = arith.constant dense<0.000000e+00> : vector<21xf32>
    %104 = vector.multi_reduction <add>, %103, %cst_43 [1] : vector<21x21xf32> to vector<21xf32>
    %105 = vector.shape_cast %104 : vector<21xf32> to vector<21x1xf32>
    %106 = tpu.reciprocal %105 {approx = true} : vector<21x1xf32> -> vector<21x1xf32>
    %107 = vector.broadcast %106 : vector<21x1xf32> to vector<21x21xf32>
    %108 = arith.mulf %103, %107 : vector<21x21xf32>
    %cst_44 = arith.constant dense<0.000000e+00> : vector<21x8xf32>
    %109 = tpu.matmul %108, %97, %cst_44 {dimension_numbers = #tpu.dot_dimension_numbers<[1], [0], [0], [1], [0, 0, 1, 1], [], []>} : vector<21x21xf32>, vector<21x8xf32>, vector<21x8xf32> -> vector<21x8xf32>
    %110 = vector.extract_strided_slice %17 {offsets = [16, 0], sizes = [8, 32], strides = [1, 1]} : vector<32x32xf32> to vector<8x32xf32>
    %cst_45 = arith.constant dense<0.000000e+00> : vector<21x32xf32>
    %111 = tpu.matmul %109, %110, %cst_45 {dimension_numbers = #tpu.dot_dimension_numbers<[1], [0], [0], [1], [0, 0, 1, 1], [], []>} : vector<21x8xf32>, vector<8x32xf32>, vector<21x32xf32> -> vector<21x32xf32>
    %112 = arith.addf %94, %111 : vector<21x32xf32>
    %113 = vector.extract_strided_slice %58 {offsets = [0, 24], sizes = [21, 8], strides = [1, 1]} : vector<21x96xf32> to vector<21x8xf32>
    %114 = vector.extract_strided_slice %58 {offsets = [0, 56], sizes = [21, 8], strides = [1, 1]} : vector<21x96xf32> to vector<21x8xf32>
    %115 = vector.extract_strided_slice %58 {offsets = [0, 88], sizes = [21, 8], strides = [1, 1]} : vector<21x96xf32> to vector<21x8xf32>
    %cst_46 = arith.constant dense<0.000000e+00> : vector<21x21xf32>
    %116 = tpu.matmul %113, %114, %cst_46 {dimension_numbers = #tpu.dot_dimension_numbers<[1], [1], [0], [0], [0, 0, 1, 0], [], []>} : vector<21x8xf32>, vector<21x8xf32>, vector<21x21xf32> -> vector<21x21xf32>
    %cst_47 = arith.constant dense<0xFF800000> : vector<21xf32>
    %117 = vector.multi_reduction <maximumf>, %116, %cst_47 [1] : vector<21x21xf32> to vector<21xf32>
    %118 = vector.shape_cast %117 : vector<21xf32> to vector<21x1xf32>
    %119 = vector.broadcast %118 : vector<21x1xf32> to vector<21x21xf32>
    %120 = arith.subf %116, %119 : vector<21x21xf32>
    %121 = math.exp %120 : vector<21x21xf32>
    %cst_48 = arith.constant dense<0.000000e+00> : vector<21xf32>
    %122 = vector.multi_reduction <add>, %121, %cst_48 [1] : vector<21x21xf32> to vector<21xf32>
    %123 = vector.shape_cast %122 : vector<21xf32> to vector<21x1xf32>
    %124 = tpu.reciprocal %123 {approx = true} : vector<21x1xf32> -> vector<21x1xf32>
    %125 = vector.broadcast %124 : vector<21x1xf32> to vector<21x21xf32>
    %126 = arith.mulf %121, %125 : vector<21x21xf32>
    %cst_49 = arith.constant dense<0.000000e+00> : vector<21x8xf32>
    %127 = tpu.matmul %126, %115, %cst_49 {dimension_numbers = #tpu.dot_dimension_numbers<[1], [0], [0], [1], [0, 0, 1, 1], [], []>} : vector<21x21xf32>, vector<21x8xf32>, vector<21x8xf32> -> vector<21x8xf32>
    %128 = vector.extract_strided_slice %17 {offsets = [24, 0], sizes = [8, 32], strides = [1, 1]} : vector<32x32xf32> to vector<8x32xf32>
    %cst_50 = arith.constant dense<0.000000e+00> : vector<21x32xf32>
    %129 = tpu.matmul %127, %128, %cst_50 {dimension_numbers = #tpu.dot_dimension_numbers<[1], [0], [0], [1], [0, 0, 1, 1], [], []>} : vector<21x8xf32>, vector<8x32xf32>, vector<21x32xf32> -> vector<21x32xf32>
    %130 = arith.addf %112, %129 : vector<21x32xf32>
    %131 = vector.broadcast %23 : vector<1x32xf32> to vector<21x32xf32>
    %132 = arith.addf %130, %131 : vector<21x32xf32>
    %cst_51 = arith.constant dense<0.000000e+00> : vector<21xf32>
    %133 = vector.multi_reduction <add>, %132, %cst_51 [1] : vector<21x32xf32> to vector<21xf32>
    %134 = vector.shape_cast %133 : vector<21xf32> to vector<21x1xf32>
    %cst_52 = arith.constant 3.200000e+01 : f32
    %135 = vector.broadcast %cst_52 : f32 to vector<21x1xf32>
    %136 = arith.divf %134, %135 : vector<21x1xf32>
    %137 = vector.broadcast %136 : vector<21x1xf32> to vector<21x32xf32>
    %138 = arith.subf %132, %137 : vector<21x32xf32>
    %139 = arith.mulf %138, %138 : vector<21x32xf32>
    %cst_53 = arith.constant dense<0.000000e+00> : vector<21xf32>
    %140 = vector.multi_reduction <add>, %139, %cst_53 [1] : vector<21x32xf32> to vector<21xf32>
    %141 = vector.shape_cast %140 : vector<21xf32> to vector<21x1xf32>
    %cst_54 = arith.constant 3.200000e+01 : f32
    %142 = vector.broadcast %cst_54 : f32 to vector<21x1xf32>
    %143 = arith.divf %141, %142 : vector<21x1xf32>
    %144 = vector.broadcast %136 : vector<21x1xf32> to vector<21x32xf32>
    %145 = arith.subf %132, %144 : vector<21x32xf32>
    %cst_55 = arith.constant 9.99999974E-6 : f32
    %146 = vector.broadcast %cst_55 : f32 to vector<21x1xf32>
    %147 = arith.addf %143, %146 : vector<21x1xf32>
    %148 = math.rsqrt %147 : vector<21x1xf32>
    %149 = vector.broadcast %148 : vector<21x1xf32> to vector<21x32xf32>
    %150 = arith.mulf %145, %149 : vector<21x32xf32>
    %151 = vector.broadcast %24 : vector<1x32xf32> to vector<21x32xf32>
    %152 = arith.mulf %150, %151 : vector<21x32xf32>
    %153 = vector.broadcast %25 : vector<1x32xf32> to vector<21x32xf32>
    %154 = arith.addf %152, %153 : vector<21x32xf32>
    %cst_56 = arith.constant dense<0.000000e+00> : vector<21x64xf32>
    %155 = tpu.matmul %154, %18, %cst_56 {dimension_numbers = #tpu.dot_dimension_numbers<[1], [0], [0], [1], [0, 0, 1, 1], [], []>} : vector<21x32xf32>, vector<32x64xf32>, vector<21x64xf32> -> vector<21x64xf32>
    %156 = vector.broadcast %26 : vector<1x64xf32> to vector<21x64xf32>
    %157 = arith.addf %155, %156 : vector<21x64xf32>
    %cst_57 = arith.constant 5.000000e-01 : f32
    %158 = vector.broadcast %cst_57 : f32 to vector<21x64xf32>
    %159 = arith.mulf %158, %157 : vector<21x64xf32>
    %cst_58 = arith.constant 0.707106769 : f32
    %160 = vector.broadcast %cst_58 : f32 to vector<21x64xf32>
    %161 = arith.mulf %157, %160 : vector<21x64xf32>
    %162 = math.erf %161 : vector<21x64xf32>
    %cst_59 = arith.constant 1.000000e+00 : f32
    %163 = vector.broadcast %cst_59 : f32 to vector<21x64xf32>
    %164 = arith.addf %163, %162 : vector<21x64xf32>
    %165 = arith.mulf %159, %164 : vector<21x64xf32>
    %cst_60 = arith.constant dense<0.000000e+00> : vector<21x32xf32>
    %166 = tpu.matmul %165, %19, %cst_60 {dimension_numbers = #tpu.dot_dimension_numbers<[1], [0], [0], [1], [0, 0, 1, 1], [], []>} : vector<21x64xf32>, vector<64x32xf32>, vector<21x32xf32> -> vector<21x32xf32>
    %167 = arith.addf %132, %166 : vector<21x32xf32>
    %168 = vector.broadcast %27 : vector<1x32xf32> to vector<21x32xf32>
    %169 = arith.addf %167, %168 : vector<21x32xf32>
    %cst_61 = arith.constant dense<0.000000e+00> : vector<21xf32>
    %170 = vector.multi_reduction <add>, %169, %cst_61 [1] : vector<21x32xf32> to vector<21xf32>
    %171 = vector.shape_cast %170 : vector<21xf32> to vector<21x1xf32>
    %cst_62 = arith.constant 3.200000e+01 : f32
    %172 = vector.broadcast %cst_62 : f32 to vector<21x1xf32>
    %173 = arith.divf %171, %172 : vector<21x1xf32>
    %174 = vector.broadcast %173 : vector<21x1xf32> to vector<21x32xf32>
    %175 = arith.subf %169, %174 : vector<21x32xf32>
    %176 = arith.mulf %175, %175 : vector<21x32xf32>
    %cst_63 = arith.constant dense<0.000000e+00> : vector<21xf32>
    %177 = vector.multi_reduction <add>, %176, %cst_63 [1] : vector<21x32xf32> to vector<21xf32>
    %178 = vector.shape_cast %177 : vector<21xf32> to vector<21x1xf32>
    %cst_64 = arith.constant 3.200000e+01 : f32
    %179 = vector.broadcast %cst_64 : f32 to vector<21x1xf32>
    %180 = arith.divf %178, %179 : vector<21x1xf32>
    %181 = vector.broadcast %173 : vector<21x1xf32> to vector<21x32xf32>
    %182 = arith.subf %169, %181 : vector<21x32xf32>
    %cst_65 = arith.constant 9.99999974E-6 : f32
    %183 = vector.broadcast %cst_65 : f32 to vector<21x1xf32>
    %184 = arith.addf %180, %183 : vector<21x1xf32>
    %185 = math.rsqrt %184 : vector<21x1xf32>
    %186 = vector.broadcast %185 : vector<21x1xf32> to vector<21x32xf32>
    %187 = arith.mulf %182, %186 : vector<21x32xf32>
    %188 = vector.broadcast %28 : vector<1x32xf32> to vector<21x32xf32>
    %189 = arith.mulf %187, %188 : vector<21x32xf32>
    %190 = vector.broadcast %29 : vector<1x32xf32> to vector<21x32xf32>
    %191 = arith.addf %189, %190 : vector<21x32xf32>
    %192 = vector.extract_strided_slice %191 {offsets = [0, 0], sizes = [1, 32], strides = [1, 1]} : vector<21x32xf32> to vector<1x32xf32>
    %193 = vector.extract_strided_slice %15 {offsets = [0, 10], sizes = [20, 10], strides = [1, 1]} : vector<20x20xf32> to vector<20x10xf32>
    %c248_66 = arith.constant 248 : index
    %c0_67 = arith.constant 0 : index
    %194 = vector.load %arg1[%c248_66, %c0_67] : memref<808x128xf32, #tpu.memory_space<vmem>>, vector<21x20xf32>
    %c272_68 = arith.constant 272 : index
    %c0_69 = arith.constant 0 : index
    %195 = vector.load %arg1[%c272_68, %c0_69] : memref<808x128xf32, #tpu.memory_space<vmem>>, vector<10x32xf32>
    %cst_70 = arith.constant dense<0.000000e+00> : vector<21x10xf32>
    %196 = tpu.matmul %194, %193, %cst_70 {dimension_numbers = #tpu.dot_dimension_numbers<[1], [0], [0], [1], [0, 0, 1, 1], [], []>} : vector<21x20xf32>, vector<20x10xf32>, vector<21x10xf32> -> vector<21x10xf32>
    %cst_71 = arith.constant dense<0.000000e+00> : vector<21x32xf32>
    %197 = tpu.matmul %196, %195, %cst_71 {dimension_numbers = #tpu.dot_dimension_numbers<[1], [0], [0], [1], [0, 0, 1, 1], [], []>} : vector<21x10xf32>, vector<10x32xf32>, vector<21x32xf32> -> vector<21x32xf32>
    %198 = arith.addf %20, %197 : vector<21x32xf32>
    %cst_72 = arith.constant dense<0.000000e+00> : vector<21xf32>
    %199 = vector.multi_reduction <add>, %198, %cst_72 [1] : vector<21x32xf32> to vector<21xf32>
    %200 = vector.shape_cast %199 : vector<21xf32> to vector<21x1xf32>
    %cst_73 = arith.constant 3.200000e+01 : f32
    %201 = vector.broadcast %cst_73 : f32 to vector<21x1xf32>
    %202 = arith.divf %200, %201 : vector<21x1xf32>
    %203 = vector.broadcast %202 : vector<21x1xf32> to vector<21x32xf32>
    %204 = arith.subf %198, %203 : vector<21x32xf32>
    %205 = arith.mulf %204, %204 : vector<21x32xf32>
    %cst_74 = arith.constant dense<0.000000e+00> : vector<21xf32>
    %206 = vector.multi_reduction <add>, %205, %cst_74 [1] : vector<21x32xf32> to vector<21xf32>
    %207 = vector.shape_cast %206 : vector<21xf32> to vector<21x1xf32>
    %cst_75 = arith.constant 3.200000e+01 : f32
    %208 = vector.broadcast %cst_75 : f32 to vector<21x1xf32>
    %209 = arith.divf %207, %208 : vector<21x1xf32>
    %210 = vector.broadcast %202 : vector<21x1xf32> to vector<21x32xf32>
    %211 = arith.subf %198, %210 : vector<21x32xf32>
    %cst_76 = arith.constant 9.99999974E-6 : f32
    %212 = vector.broadcast %cst_76 : f32 to vector<21x1xf32>
    %213 = arith.addf %209, %212 : vector<21x1xf32>
    %214 = math.rsqrt %213 : vector<21x1xf32>
    %215 = vector.broadcast %214 : vector<21x1xf32> to vector<21x32xf32>
    %216 = arith.mulf %211, %215 : vector<21x32xf32>
    %217 = vector.broadcast %21 : vector<1x32xf32> to vector<21x32xf32>
    %218 = arith.mulf %216, %217 : vector<21x32xf32>
    %219 = vector.broadcast %22 : vector<1x32xf32> to vector<21x32xf32>
    %220 = arith.addf %218, %219 : vector<21x32xf32>
    %cst_77 = arith.constant dense<0.000000e+00> : vector<21x96xf32>
    %221 = tpu.matmul %220, %16, %cst_77 {dimension_numbers = #tpu.dot_dimension_numbers<[1], [0], [0], [1], [0, 0, 1, 1], [], []>} : vector<21x32xf32>, vector<32x96xf32>, vector<21x96xf32> -> vector<21x96xf32>
    %222 = vector.extract_strided_slice %221 {offsets = [0, 0], sizes = [21, 8], strides = [1, 1]} : vector<21x96xf32> to vector<21x8xf32>
    %223 = vector.extract_strided_slice %221 {offsets = [0, 32], sizes = [21, 8], strides = [1, 1]} : vector<21x96xf32> to vector<21x8xf32>
    %224 = vector.extract_strided_slice %221 {offsets = [0, 64], sizes = [21, 8], strides = [1, 1]} : vector<21x96xf32> to vector<21x8xf32>
    %cst_78 = arith.constant dense<0.000000e+00> : vector<21x21xf32>
    %225 = tpu.matmul %222, %223, %cst_78 {dimension_numbers = #tpu.dot_dimension_numbers<[1], [1], [0], [0], [0, 0, 1, 0], [], []>} : vector<21x8xf32>, vector<21x8xf32>, vector<21x21xf32> -> vector<21x21xf32>
    %cst_79 = arith.constant dense<0xFF800000> : vector<21xf32>
    %226 = vector.multi_reduction <maximumf>, %225, %cst_79 [1] : vector<21x21xf32> to vector<21xf32>
    %227 = vector.shape_cast %226 : vector<21xf32> to vector<21x1xf32>
    %228 = vector.broadcast %227 : vector<21x1xf32> to vector<21x21xf32>
    %229 = arith.subf %225, %228 : vector<21x21xf32>
    %230 = math.exp %229 : vector<21x21xf32>
    %cst_80 = arith.constant dense<0.000000e+00> : vector<21xf32>
    %231 = vector.multi_reduction <add>, %230, %cst_80 [1] : vector<21x21xf32> to vector<21xf32>
    %232 = vector.shape_cast %231 : vector<21xf32> to vector<21x1xf32>
    %233 = tpu.reciprocal %232 {approx = true} : vector<21x1xf32> -> vector<21x1xf32>
    %234 = vector.broadcast %233 : vector<21x1xf32> to vector<21x21xf32>
    %235 = arith.mulf %230, %234 : vector<21x21xf32>
    %cst_81 = arith.constant dense<0.000000e+00> : vector<21x8xf32>
    %236 = tpu.matmul %235, %224, %cst_81 {dimension_numbers = #tpu.dot_dimension_numbers<[1], [0], [0], [1], [0, 0, 1, 1], [], []>} : vector<21x21xf32>, vector<21x8xf32>, vector<21x8xf32> -> vector<21x8xf32>
    %237 = vector.extract_strided_slice %17 {offsets = [0, 0], sizes = [8, 32], strides = [1, 1]} : vector<32x32xf32> to vector<8x32xf32>
    %cst_82 = arith.constant dense<0.000000e+00> : vector<21x32xf32>
    %238 = tpu.matmul %236, %237, %cst_82 {dimension_numbers = #tpu.dot_dimension_numbers<[1], [0], [0], [1], [0, 0, 1, 1], [], []>} : vector<21x8xf32>, vector<8x32xf32>, vector<21x32xf32> -> vector<21x32xf32>
    %239 = arith.addf %198, %238 : vector<21x32xf32>
    %240 = vector.extract_strided_slice %221 {offsets = [0, 8], sizes = [21, 8], strides = [1, 1]} : vector<21x96xf32> to vector<21x8xf32>
    %241 = vector.extract_strided_slice %221 {offsets = [0, 40], sizes = [21, 8], strides = [1, 1]} : vector<21x96xf32> to vector<21x8xf32>
    %242 = vector.extract_strided_slice %221 {offsets = [0, 72], sizes = [21, 8], strides = [1, 1]} : vector<21x96xf32> to vector<21x8xf32>
    %cst_83 = arith.constant dense<0.000000e+00> : vector<21x21xf32>
    %243 = tpu.matmul %240, %241, %cst_83 {dimension_numbers = #tpu.dot_dimension_numbers<[1], [1], [0], [0], [0, 0, 1, 0], [], []>} : vector<21x8xf32>, vector<21x8xf32>, vector<21x21xf32> -> vector<21x21xf32>
    %cst_84 = arith.constant dense<0xFF800000> : vector<21xf32>
    %244 = vector.multi_reduction <maximumf>, %243, %cst_84 [1] : vector<21x21xf32> to vector<21xf32>
    %245 = vector.shape_cast %244 : vector<21xf32> to vector<21x1xf32>
    %246 = vector.broadcast %245 : vector<21x1xf32> to vector<21x21xf32>
    %247 = arith.subf %243, %246 : vector<21x21xf32>
    %248 = math.exp %247 : vector<21x21xf32>
    %cst_85 = arith.constant dense<0.000000e+00> : vector<21xf32>
    %249 = vector.multi_reduction <add>, %248, %cst_85 [1] : vector<21x21xf32> to vector<21xf32>
    %250 = vector.shape_cast %249 : vector<21xf32> to vector<21x1xf32>
    %251 = tpu.reciprocal %250 {approx = true} : vector<21x1xf32> -> vector<21x1xf32>
    %252 = vector.broadcast %251 : vector<21x1xf32> to vector<21x21xf32>
    %253 = arith.mulf %248, %252 : vector<21x21xf32>
    %cst_86 = arith.constant dense<0.000000e+00> : vector<21x8xf32>
    %254 = tpu.matmul %253, %242, %cst_86 {dimension_numbers = #tpu.dot_dimension_numbers<[1], [0], [0], [1], [0, 0, 1, 1], [], []>} : vector<21x21xf32>, vector<21x8xf32>, vector<21x8xf32> -> vector<21x8xf32>
    %255 = vector.extract_strided_slice %17 {offsets = [8, 0], sizes = [8, 32], strides = [1, 1]} : vector<32x32xf32> to vector<8x32xf32>
    %cst_87 = arith.constant dense<0.000000e+00> : vector<21x32xf32>
    %256 = tpu.matmul %254, %255, %cst_87 {dimension_numbers = #tpu.dot_dimension_numbers<[1], [0], [0], [1], [0, 0, 1, 1], [], []>} : vector<21x8xf32>, vector<8x32xf32>, vector<21x32xf32> -> vector<21x32xf32>
    %257 = arith.addf %239, %256 : vector<21x32xf32>
    %258 = vector.extract_strided_slice %221 {offsets = [0, 16], sizes = [21, 8], strides = [1, 1]} : vector<21x96xf32> to vector<21x8xf32>
    %259 = vector.extract_strided_slice %221 {offsets = [0, 48], sizes = [21, 8], strides = [1, 1]} : vector<21x96xf32> to vector<21x8xf32>
    %260 = vector.extract_strided_slice %221 {offsets = [0, 80], sizes = [21, 8], strides = [1, 1]} : vector<21x96xf32> to vector<21x8xf32>
    %cst_88 = arith.constant dense<0.000000e+00> : vector<21x21xf32>
    %261 = tpu.matmul %258, %259, %cst_88 {dimension_numbers = #tpu.dot_dimension_numbers<[1], [1], [0], [0], [0, 0, 1, 0], [], []>} : vector<21x8xf32>, vector<21x8xf32>, vector<21x21xf32> -> vector<21x21xf32>
    %cst_89 = arith.constant dense<0xFF800000> : vector<21xf32>
    %262 = vector.multi_reduction <maximumf>, %261, %cst_89 [1] : vector<21x21xf32> to vector<21xf32>
    %263 = vector.shape_cast %262 : vector<21xf32> to vector<21x1xf32>
    %264 = vector.broadcast %263 : vector<21x1xf32> to vector<21x21xf32>
    %265 = arith.subf %261, %264 : vector<21x21xf32>
    %266 = math.exp %265 : vector<21x21xf32>
    %cst_90 = arith.constant dense<0.000000e+00> : vector<21xf32>
    %267 = vector.multi_reduction <add>, %266, %cst_90 [1] : vector<21x21xf32> to vector<21xf32>
    %268 = vector.shape_cast %267 : vector<21xf32> to vector<21x1xf32>
    %269 = tpu.reciprocal %268 {approx = true} : vector<21x1xf32> -> vector<21x1xf32>
    %270 = vector.broadcast %269 : vector<21x1xf32> to vector<21x21xf32>
    %271 = arith.mulf %266, %270 : vector<21x21xf32>
    %cst_91 = arith.constant dense<0.000000e+00> : vector<21x8xf32>
    %272 = tpu.matmul %271, %260, %cst_91 {dimension_numbers = #tpu.dot_dimension_numbers<[1], [0], [0], [1], [0, 0, 1, 1], [], []>} : vector<21x21xf32>, vector<21x8xf32>, vector<21x8xf32> -> vector<21x8xf32>
    %273 = vector.extract_strided_slice %17 {offsets = [16, 0], sizes = [8, 32], strides = [1, 1]} : vector<32x32xf32> to vector<8x32xf32>
    %cst_92 = arith.constant dense<0.000000e+00> : vector<21x32xf32>
    %274 = tpu.matmul %272, %273, %cst_92 {dimension_numbers = #tpu.dot_dimension_numbers<[1], [0], [0], [1], [0, 0, 1, 1], [], []>} : vector<21x8xf32>, vector<8x32xf32>, vector<21x32xf32> -> vector<21x32xf32>
    %275 = arith.addf %257, %274 : vector<21x32xf32>
    %276 = vector.extract_strided_slice %221 {offsets = [0, 24], sizes = [21, 8], strides = [1, 1]} : vector<21x96xf32> to vector<21x8xf32>
    %277 = vector.extract_strided_slice %221 {offsets = [0, 56], sizes = [21, 8], strides = [1, 1]} : vector<21x96xf32> to vector<21x8xf32>
    %278 = vector.extract_strided_slice %221 {offsets = [0, 88], sizes = [21, 8], strides = [1, 1]} : vector<21x96xf32> to vector<21x8xf32>
    %cst_93 = arith.constant dense<0.000000e+00> : vector<21x21xf32>
    %279 = tpu.matmul %276, %277, %cst_93 {dimension_numbers = #tpu.dot_dimension_numbers<[1], [1], [0], [0], [0, 0, 1, 0], [], []>} : vector<21x8xf32>, vector<21x8xf32>, vector<21x21xf32> -> vector<21x21xf32>
    %cst_94 = arith.constant dense<0xFF800000> : vector<21xf32>
    %280 = vector.multi_reduction <maximumf>, %279, %cst_94 [1] : vector<21x21xf32> to vector<21xf32>
    %281 = vector.shape_cast %280 : vector<21xf32> to vector<21x1xf32>
    %282 = vector.broadcast %281 : vector<21x1xf32> to vector<21x21xf32>
    %283 = arith.subf %279, %282 : vector<21x21xf32>
    %284 = math.exp %283 : vector<21x21xf32>
    %cst_95 = arith.constant dense<0.000000e+00> : vector<21xf32>
    %285 = vector.multi_reduction <add>, %284, %cst_95 [1] : vector<21x21xf32> to vector<21xf32>
    %286 = vector.shape_cast %285 : vector<21xf32> to vector<21x1xf32>
    %287 = tpu.reciprocal %286 {approx = true} : vector<21x1xf32> -> vector<21x1xf32>
    %288 = vector.broadcast %287 : vector<21x1xf32> to vector<21x21xf32>
    %289 = arith.mulf %284, %288 : vector<21x21xf32>
    %cst_96 = arith.constant dense<0.000000e+00> : vector<21x8xf32>
    %290 = tpu.matmul %289, %278, %cst_96 {dimension_numbers = #tpu.dot_dimension_numbers<[1], [0], [0], [1], [0, 0, 1, 1], [], []>} : vector<21x21xf32>, vector<21x8xf32>, vector<21x8xf32> -> vector<21x8xf32>
    %291 = vector.extract_strided_slice %17 {offsets = [24, 0], sizes = [8, 32], strides = [1, 1]} : vector<32x32xf32> to vector<8x32xf32>
    %cst_97 = arith.constant dense<0.000000e+00> : vector<21x32xf32>
    %292 = tpu.matmul %290, %291, %cst_97 {dimension_numbers = #tpu.dot_dimension_numbers<[1], [0], [0], [1], [0, 0, 1, 1], [], []>} : vector<21x8xf32>, vector<8x32xf32>, vector<21x32xf32> -> vector<21x32xf32>
    %293 = arith.addf %275, %292 : vector<21x32xf32>
    %294 = vector.broadcast %23 : vector<1x32xf32> to vector<21x32xf32>
    %295 = arith.addf %293, %294 : vector<21x32xf32>
    %cst_98 = arith.constant dense<0.000000e+00> : vector<21xf32>
    %296 = vector.multi_reduction <add>, %295, %cst_98 [1] : vector<21x32xf32> to vector<21xf32>
    %297 = vector.shape_cast %296 : vector<21xf32> to vector<21x1xf32>
    %cst_99 = arith.constant 3.200000e+01 : f32
    %298 = vector.broadcast %cst_99 : f32 to vector<21x1xf32>
    %299 = arith.divf %297, %298 : vector<21x1xf32>
    %300 = vector.broadcast %299 : vector<21x1xf32> to vector<21x32xf32>
    %301 = arith.subf %295, %300 : vector<21x32xf32>
    %302 = arith.mulf %301, %301 : vector<21x32xf32>
    %cst_100 = arith.constant dense<0.000000e+00> : vector<21xf32>
    %303 = vector.multi_reduction <add>, %302, %cst_100 [1] : vector<21x32xf32> to vector<21xf32>
    %304 = vector.shape_cast %303 : vector<21xf32> to vector<21x1xf32>
    %cst_101 = arith.constant 3.200000e+01 : f32
    %305 = vector.broadcast %cst_101 : f32 to vector<21x1xf32>
    %306 = arith.divf %304, %305 : vector<21x1xf32>
    %307 = vector.broadcast %299 : vector<21x1xf32> to vector<21x32xf32>
    %308 = arith.subf %295, %307 : vector<21x32xf32>
    %cst_102 = arith.constant 9.99999974E-6 : f32
    %309 = vector.broadcast %cst_102 : f32 to vector<21x1xf32>
    %310 = arith.addf %306, %309 : vector<21x1xf32>
    %311 = math.rsqrt %310 : vector<21x1xf32>
    %312 = vector.broadcast %311 : vector<21x1xf32> to vector<21x32xf32>
    %313 = arith.mulf %308, %312 : vector<21x32xf32>
    %314 = vector.broadcast %24 : vector<1x32xf32> to vector<21x32xf32>
    %315 = arith.mulf %313, %314 : vector<21x32xf32>
    %316 = vector.broadcast %25 : vector<1x32xf32> to vector<21x32xf32>
    %317 = arith.addf %315, %316 : vector<21x32xf32>
    %cst_103 = arith.constant dense<0.000000e+00> : vector<21x64xf32>
    %318 = tpu.matmul %317, %18, %cst_103 {dimension_numbers = #tpu.dot_dimension_numbers<[1], [0], [0], [1], [0, 0, 1, 1], [], []>} : vector<21x32xf32>, vector<32x64xf32>, vector<21x64xf32> -> vector<21x64xf32>
    %319 = vector.broadcast %26 : vector<1x64xf32> to vector<21x64xf32>
    %320 = arith.addf %318, %319 : vector<21x64xf32>
    %cst_104 = arith.constant 5.000000e-01 : f32
    %321 = vector.broadcast %cst_104 : f32 to vector<21x64xf32>
    %322 = arith.mulf %321, %320 : vector<21x64xf32>
    %cst_105 = arith.constant 0.707106769 : f32
    %323 = vector.broadcast %cst_105 : f32 to vector<21x64xf32>
    %324 = arith.mulf %320, %323 : vector<21x64xf32>
    %325 = math.erf %324 : vector<21x64xf32>
    %cst_106 = arith.constant 1.000000e+00 : f32
    %326 = vector.broadcast %cst_106 : f32 to vector<21x64xf32>
    %327 = arith.addf %326, %325 : vector<21x64xf32>
    %328 = arith.mulf %322, %327 : vector<21x64xf32>
    %cst_107 = arith.constant dense<0.000000e+00> : vector<21x32xf32>
    %329 = tpu.matmul %328, %19, %cst_107 {dimension_numbers = #tpu.dot_dimension_numbers<[1], [0], [0], [1], [0, 0, 1, 1], [], []>} : vector<21x64xf32>, vector<64x32xf32>, vector<21x32xf32> -> vector<21x32xf32>
    %330 = arith.addf %295, %329 : vector<21x32xf32>
    %331 = vector.broadcast %27 : vector<1x32xf32> to vector<21x32xf32>
    %332 = arith.addf %330, %331 : vector<21x32xf32>
    %cst_108 = arith.constant dense<0.000000e+00> : vector<21xf32>
    %333 = vector.multi_reduction <add>, %332, %cst_108 [1] : vector<21x32xf32> to vector<21xf32>
    %334 = vector.shape_cast %333 : vector<21xf32> to vector<21x1xf32>
    %cst_109 = arith.constant 3.200000e+01 : f32
    %335 = vector.broadcast %cst_109 : f32 to vector<21x1xf32>
    %336 = arith.divf %334, %335 : vector<21x1xf32>
    %337 = vector.broadcast %336 : vector<21x1xf32> to vector<21x32xf32>
    %338 = arith.subf %332, %337 : vector<21x32xf32>
    %339 = arith.mulf %338, %338 : vector<21x32xf32>
    %cst_110 = arith.constant dense<0.000000e+00> : vector<21xf32>
    %340 = vector.multi_reduction <add>, %339, %cst_110 [1] : vector<21x32xf32> to vector<21xf32>
    %341 = vector.shape_cast %340 : vector<21xf32> to vector<21x1xf32>
    %cst_111 = arith.constant 3.200000e+01 : f32
    %342 = vector.broadcast %cst_111 : f32 to vector<21x1xf32>
    %343 = arith.divf %341, %342 : vector<21x1xf32>
    %344 = vector.broadcast %336 : vector<21x1xf32> to vector<21x32xf32>
    %345 = arith.subf %332, %344 : vector<21x32xf32>
    %cst_112 = arith.constant 9.99999974E-6 : f32
    %346 = vector.broadcast %cst_112 : f32 to vector<21x1xf32>
    %347 = arith.addf %343, %346 : vector<21x1xf32>
    %348 = math.rsqrt %347 : vector<21x1xf32>
    %349 = vector.broadcast %348 : vector<21x1xf32> to vector<21x32xf32>
    %350 = arith.mulf %345, %349 : vector<21x32xf32>
    %351 = vector.broadcast %28 : vector<1x32xf32> to vector<21x32xf32>
    %352 = arith.mulf %350, %351 : vector<21x32xf32>
    %353 = vector.broadcast %29 : vector<1x32xf32> to vector<21x32xf32>
    %354 = arith.addf %352, %353 : vector<21x32xf32>
    %355 = vector.extract_strided_slice %354 {offsets = [0, 0], sizes = [1, 32], strides = [1, 1]} : vector<21x32xf32> to vector<1x32xf32>
    %c288 = arith.constant 288 : index
    %c0_113 = arith.constant 0 : index
    %356 = vector.load %arg1[%c288, %c0_113] : memref<808x128xf32, #tpu.memory_space<vmem>>, vector<20x36xf32>
    %cst_114 = arith.constant dense<0.000000e+00> : vector<20x80xf32>
    %357 = tpu.matmul %356, %0, %cst_114 {dimension_numbers = #tpu.dot_dimension_numbers<[1], [0], [0], [1], [0, 0, 1, 1], [], []>} : vector<20x36xf32>, vector<36x80xf32>, vector<20x80xf32> -> vector<20x80xf32>
    %c312 = arith.constant 312 : index
    %c0_115 = arith.constant 0 : index
    %358 = vector.load %arg1[%c312, %c0_115] : memref<808x128xf32, #tpu.memory_space<vmem>>, vector<20x80xf32>
    %359 = arith.addf %357, %358 : vector<20x80xf32>
    %cst_116 = arith.constant 0.000000e+00 : f32
    %360 = vector.broadcast %cst_116 : f32 to vector<20x80xf32>
    %361 = arith.maximumf %359, %360 : vector<20x80xf32>
    %362 = vector.extract_strided_slice %361 {offsets = [0, 0], sizes = [20, 77], strides = [1, 1]} : vector<20x80xf32> to vector<20x77xf32>
    %363 = vector.extract_strided_slice %361 {offsets = [0, 1], sizes = [20, 77], strides = [1, 1]} : vector<20x80xf32> to vector<20x77xf32>
    %364 = arith.maximumf %362, %363 : vector<20x77xf32>
    %365 = vector.extract_strided_slice %361 {offsets = [0, 2], sizes = [20, 77], strides = [1, 1]} : vector<20x80xf32> to vector<20x77xf32>
    %366 = arith.maximumf %364, %365 : vector<20x77xf32>
    %367 = vector.extract_strided_slice %361 {offsets = [0, 3], sizes = [20, 77], strides = [1, 1]} : vector<20x80xf32> to vector<20x77xf32>
    %368 = arith.maximumf %366, %367 : vector<20x77xf32>
    %cst_117 = arith.constant dense<0.000000e+00> : vector<20x20xf32>
    %369 = tpu.matmul %368, %1, %cst_117 {dimension_numbers = #tpu.dot_dimension_numbers<[1], [0], [0], [1], [0, 0, 1, 1], [], []>} : vector<20x77xf32>, vector<77x20xf32>, vector<20x20xf32> -> vector<20x20xf32>
    %c344 = arith.constant 344 : index
    %c0_118 = arith.constant 0 : index
    %370 = vector.load %arg1[%c344, %c0_118] : memref<808x128xf32, #tpu.memory_space<vmem>>, vector<32x96xf32>
    %c376 = arith.constant 376 : index
    %c0_119 = arith.constant 0 : index
    %371 = vector.load %arg1[%c376, %c0_119] : memref<808x128xf32, #tpu.memory_space<vmem>>, vector<32x32xf32>
    %c408 = arith.constant 408 : index
    %c0_120 = arith.constant 0 : index
    %372 = vector.load %arg1[%c408, %c0_120] : memref<808x128xf32, #tpu.memory_space<vmem>>, vector<32x64xf32>
    %c440 = arith.constant 440 : index
    %c0_121 = arith.constant 0 : index
    %373 = vector.load %arg1[%c440, %c0_121] : memref<808x128xf32, #tpu.memory_space<vmem>>, vector<64x32xf32>
    %c336 = arith.constant 336 : index
    %c0_122 = arith.constant 0 : index
    %374 = vector.load %arg1[%c336, %c0_122] : memref<808x128xf32, #tpu.memory_space<vmem>>, vector<6x32xf32>
    %c504 = arith.constant 504 : index
    %c0_123 = arith.constant 0 : index
    %375 = vector.load %arg1[%c504, %c0_123] : memref<808x128xf32, #tpu.memory_space<vmem>>, vector<1x32xf32>
    %c505 = arith.constant 505 : index
    %c0_124 = arith.constant 0 : index
    %376 = vector.load %arg1[%c505, %c0_124] : memref<808x128xf32, #tpu.memory_space<vmem>>, vector<1x32xf32>
    %c506 = arith.constant 506 : index
    %c0_125 = arith.constant 0 : index
    %377 = vector.load %arg1[%c506, %c0_125] : memref<808x128xf32, #tpu.memory_space<vmem>>, vector<1x32xf32>
    %c507 = arith.constant 507 : index
    %c0_126 = arith.constant 0 : index
    %378 = vector.load %arg1[%c507, %c0_126] : memref<808x128xf32, #tpu.memory_space<vmem>>, vector<1x32xf32>
    %c508 = arith.constant 508 : index
    %c0_127 = arith.constant 0 : index
    %379 = vector.load %arg1[%c508, %c0_127] : memref<808x128xf32, #tpu.memory_space<vmem>>, vector<1x32xf32>
    %c509 = arith.constant 509 : index
    %c0_128 = arith.constant 0 : index
    %380 = vector.load %arg1[%c509, %c0_128] : memref<808x128xf32, #tpu.memory_space<vmem>>, vector<1x64xf32>
    %c510 = arith.constant 510 : index
    %c0_129 = arith.constant 0 : index
    %381 = vector.load %arg1[%c510, %c0_129] : memref<808x128xf32, #tpu.memory_space<vmem>>, vector<1x32xf32>
    %c511 = arith.constant 511 : index
    %c0_130 = arith.constant 0 : index
    %382 = vector.load %arg1[%c511, %c0_130] : memref<808x128xf32, #tpu.memory_space<vmem>>, vector<1x32xf32>
    %c512 = arith.constant 512 : index
    %c0_131 = arith.constant 0 : index
    %383 = vector.load %arg1[%c512, %c0_131] : memref<808x128xf32, #tpu.memory_space<vmem>>, vector<1x32xf32>
    %384 = vector.extract_strided_slice %369 {offsets = [0, 0], sizes = [20, 10], strides = [1, 1]} : vector<20x20xf32> to vector<20x10xf32>
    %c520 = arith.constant 520 : index
    %c0_132 = arith.constant 0 : index
    %385 = vector.load %arg1[%c520, %c0_132] : memref<808x128xf32, #tpu.memory_space<vmem>>, vector<6x20xf32>
    %c552 = arith.constant 552 : index
    %c0_133 = arith.constant 0 : index
    %386 = vector.load %arg1[%c552, %c0_133] : memref<808x128xf32, #tpu.memory_space<vmem>>, vector<10x32xf32>
    %cst_134 = arith.constant dense<0.000000e+00> : vector<6x10xf32>
    %387 = tpu.matmul %385, %384, %cst_134 {dimension_numbers = #tpu.dot_dimension_numbers<[1], [0], [0], [1], [0, 0, 1, 1], [], []>} : vector<6x20xf32>, vector<20x10xf32>, vector<6x10xf32> -> vector<6x10xf32>
    %cst_135 = arith.constant dense<0.000000e+00> : vector<6x32xf32>
    %388 = tpu.matmul %387, %386, %cst_135 {dimension_numbers = #tpu.dot_dimension_numbers<[1], [0], [0], [1], [0, 0, 1, 1], [], []>} : vector<6x10xf32>, vector<10x32xf32>, vector<6x32xf32> -> vector<6x32xf32>
    %389 = arith.addf %374, %388 : vector<6x32xf32>
    %c528 = arith.constant 528 : index
    %c0_136 = arith.constant 0 : index
    %390 = vector.load %arg1[%c528, %c0_136] : memref<808x128xf32, #tpu.memory_space<vmem>>, vector<6x20xf32>
    %c568 = arith.constant 568 : index
    %c0_137 = arith.constant 0 : index
    %391 = vector.load %arg1[%c568, %c0_137] : memref<808x128xf32, #tpu.memory_space<vmem>>, vector<10x32xf32>
    %cst_138 = arith.constant dense<0.000000e+00> : vector<6x10xf32>
    %392 = tpu.matmul %390, %384, %cst_138 {dimension_numbers = #tpu.dot_dimension_numbers<[1], [0], [0], [1], [0, 0, 1, 1], [], []>} : vector<6x20xf32>, vector<20x10xf32>, vector<6x10xf32> -> vector<6x10xf32>
    %cst_139 = arith.constant dense<0.000000e+00> : vector<6x32xf32>
    %393 = tpu.matmul %392, %391, %cst_139 {dimension_numbers = #tpu.dot_dimension_numbers<[1], [0], [0], [1], [0, 0, 1, 1], [], []>} : vector<6x10xf32>, vector<10x32xf32>, vector<6x32xf32> -> vector<6x32xf32>
    %394 = arith.addf %389, %393 : vector<6x32xf32>
    %c536 = arith.constant 536 : index
    %c0_140 = arith.constant 0 : index
    %395 = vector.load %arg1[%c536, %c0_140] : memref<808x128xf32, #tpu.memory_space<vmem>>, vector<6x20xf32>
    %c584 = arith.constant 584 : index
    %c0_141 = arith.constant 0 : index
    %396 = vector.load %arg1[%c584, %c0_141] : memref<808x128xf32, #tpu.memory_space<vmem>>, vector<10x32xf32>
    %cst_142 = arith.constant dense<0.000000e+00> : vector<6x10xf32>
    %397 = tpu.matmul %395, %384, %cst_142 {dimension_numbers = #tpu.dot_dimension_numbers<[1], [0], [0], [1], [0, 0, 1, 1], [], []>} : vector<6x20xf32>, vector<20x10xf32>, vector<6x10xf32> -> vector<6x10xf32>
    %cst_143 = arith.constant dense<0.000000e+00> : vector<6x32xf32>
    %398 = tpu.matmul %397, %396, %cst_143 {dimension_numbers = #tpu.dot_dimension_numbers<[1], [0], [0], [1], [0, 0, 1, 1], [], []>} : vector<6x10xf32>, vector<10x32xf32>, vector<6x32xf32> -> vector<6x32xf32>
    %399 = arith.addf %394, %398 : vector<6x32xf32>
    %c544 = arith.constant 544 : index
    %c0_144 = arith.constant 0 : index
    %400 = vector.load %arg1[%c544, %c0_144] : memref<808x128xf32, #tpu.memory_space<vmem>>, vector<6x20xf32>
    %c600 = arith.constant 600 : index
    %c0_145 = arith.constant 0 : index
    %401 = vector.load %arg1[%c600, %c0_145] : memref<808x128xf32, #tpu.memory_space<vmem>>, vector<10x32xf32>
    %cst_146 = arith.constant dense<0.000000e+00> : vector<6x10xf32>
    %402 = tpu.matmul %400, %384, %cst_146 {dimension_numbers = #tpu.dot_dimension_numbers<[1], [0], [0], [1], [0, 0, 1, 1], [], []>} : vector<6x20xf32>, vector<20x10xf32>, vector<6x10xf32> -> vector<6x10xf32>
    %cst_147 = arith.constant dense<0.000000e+00> : vector<6x32xf32>
    %403 = tpu.matmul %402, %401, %cst_147 {dimension_numbers = #tpu.dot_dimension_numbers<[1], [0], [0], [1], [0, 0, 1, 1], [], []>} : vector<6x10xf32>, vector<10x32xf32>, vector<6x32xf32> -> vector<6x32xf32>
    %404 = arith.addf %399, %403 : vector<6x32xf32>
    %cst_148 = arith.constant dense<0.000000e+00> : vector<6xf32>
    %405 = vector.multi_reduction <add>, %404, %cst_148 [1] : vector<6x32xf32> to vector<6xf32>
    %406 = vector.shape_cast %405 : vector<6xf32> to vector<6x1xf32>
    %cst_149 = arith.constant 3.200000e+01 : f32
    %407 = vector.broadcast %cst_149 : f32 to vector<6x1xf32>
    %408 = arith.divf %406, %407 : vector<6x1xf32>
    %409 = vector.broadcast %408 : vector<6x1xf32> to vector<6x32xf32>
    %410 = arith.subf %404, %409 : vector<6x32xf32>
    %411 = arith.mulf %410, %410 : vector<6x32xf32>
    %cst_150 = arith.constant dense<0.000000e+00> : vector<6xf32>
    %412 = vector.multi_reduction <add>, %411, %cst_150 [1] : vector<6x32xf32> to vector<6xf32>
    %413 = vector.shape_cast %412 : vector<6xf32> to vector<6x1xf32>
    %cst_151 = arith.constant 3.200000e+01 : f32
    %414 = vector.broadcast %cst_151 : f32 to vector<6x1xf32>
    %415 = arith.divf %413, %414 : vector<6x1xf32>
    %416 = vector.broadcast %408 : vector<6x1xf32> to vector<6x32xf32>
    %417 = arith.subf %404, %416 : vector<6x32xf32>
    %cst_152 = arith.constant 9.99999974E-6 : f32
    %418 = vector.broadcast %cst_152 : f32 to vector<6x1xf32>
    %419 = arith.addf %415, %418 : vector<6x1xf32>
    %420 = math.rsqrt %419 : vector<6x1xf32>
    %421 = vector.broadcast %420 : vector<6x1xf32> to vector<6x32xf32>
    %422 = arith.mulf %417, %421 : vector<6x32xf32>
    %423 = vector.broadcast %375 : vector<1x32xf32> to vector<6x32xf32>
    %424 = arith.mulf %422, %423 : vector<6x32xf32>
    %425 = vector.broadcast %376 : vector<1x32xf32> to vector<6x32xf32>
    %426 = arith.addf %424, %425 : vector<6x32xf32>
    %cst_153 = arith.constant dense<0.000000e+00> : vector<6x96xf32>
    %427 = tpu.matmul %426, %370, %cst_153 {dimension_numbers = #tpu.dot_dimension_numbers<[1], [0], [0], [1], [0, 0, 1, 1], [], []>} : vector<6x32xf32>, vector<32x96xf32>, vector<6x96xf32> -> vector<6x96xf32>
    %428 = vector.extract_strided_slice %427 {offsets = [0, 0], sizes = [6, 8], strides = [1, 1]} : vector<6x96xf32> to vector<6x8xf32>
    %429 = vector.extract_strided_slice %427 {offsets = [0, 32], sizes = [6, 8], strides = [1, 1]} : vector<6x96xf32> to vector<6x8xf32>
    %430 = vector.extract_strided_slice %427 {offsets = [0, 64], sizes = [6, 8], strides = [1, 1]} : vector<6x96xf32> to vector<6x8xf32>
    %cst_154 = arith.constant dense<0.000000e+00> : vector<6x6xf32>
    %431 = tpu.matmul %428, %429, %cst_154 {dimension_numbers = #tpu.dot_dimension_numbers<[1], [1], [0], [0], [0, 0, 1, 0], [], []>} : vector<6x8xf32>, vector<6x8xf32>, vector<6x6xf32> -> vector<6x6xf32>
    %cst_155 = arith.constant dense<0xFF800000> : vector<6xf32>
    %432 = vector.multi_reduction <maximumf>, %431, %cst_155 [1] : vector<6x6xf32> to vector<6xf32>
    %433 = vector.shape_cast %432 : vector<6xf32> to vector<6x1xf32>
    %434 = vector.broadcast %433 : vector<6x1xf32> to vector<6x6xf32>
    %435 = arith.subf %431, %434 : vector<6x6xf32>
    %436 = math.exp %435 : vector<6x6xf32>
    %cst_156 = arith.constant dense<0.000000e+00> : vector<6xf32>
    %437 = vector.multi_reduction <add>, %436, %cst_156 [1] : vector<6x6xf32> to vector<6xf32>
    %438 = vector.shape_cast %437 : vector<6xf32> to vector<6x1xf32>
    %439 = tpu.reciprocal %438 {approx = true} : vector<6x1xf32> -> vector<6x1xf32>
    %440 = vector.broadcast %439 : vector<6x1xf32> to vector<6x6xf32>
    %441 = arith.mulf %436, %440 : vector<6x6xf32>
    %cst_157 = arith.constant dense<0.000000e+00> : vector<6x8xf32>
    %442 = tpu.matmul %441, %430, %cst_157 {dimension_numbers = #tpu.dot_dimension_numbers<[1], [0], [0], [1], [0, 0, 1, 1], [], []>} : vector<6x6xf32>, vector<6x8xf32>, vector<6x8xf32> -> vector<6x8xf32>
    %443 = vector.extract_strided_slice %371 {offsets = [0, 0], sizes = [8, 32], strides = [1, 1]} : vector<32x32xf32> to vector<8x32xf32>
    %cst_158 = arith.constant dense<0.000000e+00> : vector<6x32xf32>
    %444 = tpu.matmul %442, %443, %cst_158 {dimension_numbers = #tpu.dot_dimension_numbers<[1], [0], [0], [1], [0, 0, 1, 1], [], []>} : vector<6x8xf32>, vector<8x32xf32>, vector<6x32xf32> -> vector<6x32xf32>
    %445 = arith.addf %404, %444 : vector<6x32xf32>
    %446 = vector.extract_strided_slice %427 {offsets = [0, 8], sizes = [6, 8], strides = [1, 1]} : vector<6x96xf32> to vector<6x8xf32>
    %447 = vector.extract_strided_slice %427 {offsets = [0, 40], sizes = [6, 8], strides = [1, 1]} : vector<6x96xf32> to vector<6x8xf32>
    %448 = vector.extract_strided_slice %427 {offsets = [0, 72], sizes = [6, 8], strides = [1, 1]} : vector<6x96xf32> to vector<6x8xf32>
    %cst_159 = arith.constant dense<0.000000e+00> : vector<6x6xf32>
    %449 = tpu.matmul %446, %447, %cst_159 {dimension_numbers = #tpu.dot_dimension_numbers<[1], [1], [0], [0], [0, 0, 1, 0], [], []>} : vector<6x8xf32>, vector<6x8xf32>, vector<6x6xf32> -> vector<6x6xf32>
    %cst_160 = arith.constant dense<0xFF800000> : vector<6xf32>
    %450 = vector.multi_reduction <maximumf>, %449, %cst_160 [1] : vector<6x6xf32> to vector<6xf32>
    %451 = vector.shape_cast %450 : vector<6xf32> to vector<6x1xf32>
    %452 = vector.broadcast %451 : vector<6x1xf32> to vector<6x6xf32>
    %453 = arith.subf %449, %452 : vector<6x6xf32>
    %454 = math.exp %453 : vector<6x6xf32>
    %cst_161 = arith.constant dense<0.000000e+00> : vector<6xf32>
    %455 = vector.multi_reduction <add>, %454, %cst_161 [1] : vector<6x6xf32> to vector<6xf32>
    %456 = vector.shape_cast %455 : vector<6xf32> to vector<6x1xf32>
    %457 = tpu.reciprocal %456 {approx = true} : vector<6x1xf32> -> vector<6x1xf32>
    %458 = vector.broadcast %457 : vector<6x1xf32> to vector<6x6xf32>
    %459 = arith.mulf %454, %458 : vector<6x6xf32>
    %cst_162 = arith.constant dense<0.000000e+00> : vector<6x8xf32>
    %460 = tpu.matmul %459, %448, %cst_162 {dimension_numbers = #tpu.dot_dimension_numbers<[1], [0], [0], [1], [0, 0, 1, 1], [], []>} : vector<6x6xf32>, vector<6x8xf32>, vector<6x8xf32> -> vector<6x8xf32>
    %461 = vector.extract_strided_slice %371 {offsets = [8, 0], sizes = [8, 32], strides = [1, 1]} : vector<32x32xf32> to vector<8x32xf32>
    %cst_163 = arith.constant dense<0.000000e+00> : vector<6x32xf32>
    %462 = tpu.matmul %460, %461, %cst_163 {dimension_numbers = #tpu.dot_dimension_numbers<[1], [0], [0], [1], [0, 0, 1, 1], [], []>} : vector<6x8xf32>, vector<8x32xf32>, vector<6x32xf32> -> vector<6x32xf32>
    %463 = arith.addf %445, %462 : vector<6x32xf32>
    %464 = vector.extract_strided_slice %427 {offsets = [0, 16], sizes = [6, 8], strides = [1, 1]} : vector<6x96xf32> to vector<6x8xf32>
    %465 = vector.extract_strided_slice %427 {offsets = [0, 48], sizes = [6, 8], strides = [1, 1]} : vector<6x96xf32> to vector<6x8xf32>
    %466 = vector.extract_strided_slice %427 {offsets = [0, 80], sizes = [6, 8], strides = [1, 1]} : vector<6x96xf32> to vector<6x8xf32>
    %cst_164 = arith.constant dense<0.000000e+00> : vector<6x6xf32>
    %467 = tpu.matmul %464, %465, %cst_164 {dimension_numbers = #tpu.dot_dimension_numbers<[1], [1], [0], [0], [0, 0, 1, 0], [], []>} : vector<6x8xf32>, vector<6x8xf32>, vector<6x6xf32> -> vector<6x6xf32>
    %cst_165 = arith.constant dense<0xFF800000> : vector<6xf32>
    %468 = vector.multi_reduction <maximumf>, %467, %cst_165 [1] : vector<6x6xf32> to vector<6xf32>
    %469 = vector.shape_cast %468 : vector<6xf32> to vector<6x1xf32>
    %470 = vector.broadcast %469 : vector<6x1xf32> to vector<6x6xf32>
    %471 = arith.subf %467, %470 : vector<6x6xf32>
    %472 = math.exp %471 : vector<6x6xf32>
    %cst_166 = arith.constant dense<0.000000e+00> : vector<6xf32>
    %473 = vector.multi_reduction <add>, %472, %cst_166 [1] : vector<6x6xf32> to vector<6xf32>
    %474 = vector.shape_cast %473 : vector<6xf32> to vector<6x1xf32>
    %475 = tpu.reciprocal %474 {approx = true} : vector<6x1xf32> -> vector<6x1xf32>
    %476 = vector.broadcast %475 : vector<6x1xf32> to vector<6x6xf32>
    %477 = arith.mulf %472, %476 : vector<6x6xf32>
    %cst_167 = arith.constant dense<0.000000e+00> : vector<6x8xf32>
    %478 = tpu.matmul %477, %466, %cst_167 {dimension_numbers = #tpu.dot_dimension_numbers<[1], [0], [0], [1], [0, 0, 1, 1], [], []>} : vector<6x6xf32>, vector<6x8xf32>, vector<6x8xf32> -> vector<6x8xf32>
    %479 = vector.extract_strided_slice %371 {offsets = [16, 0], sizes = [8, 32], strides = [1, 1]} : vector<32x32xf32> to vector<8x32xf32>
    %cst_168 = arith.constant dense<0.000000e+00> : vector<6x32xf32>
    %480 = tpu.matmul %478, %479, %cst_168 {dimension_numbers = #tpu.dot_dimension_numbers<[1], [0], [0], [1], [0, 0, 1, 1], [], []>} : vector<6x8xf32>, vector<8x32xf32>, vector<6x32xf32> -> vector<6x32xf32>
    %481 = arith.addf %463, %480 : vector<6x32xf32>
    %482 = vector.extract_strided_slice %427 {offsets = [0, 24], sizes = [6, 8], strides = [1, 1]} : vector<6x96xf32> to vector<6x8xf32>
    %483 = vector.extract_strided_slice %427 {offsets = [0, 56], sizes = [6, 8], strides = [1, 1]} : vector<6x96xf32> to vector<6x8xf32>
    %484 = vector.extract_strided_slice %427 {offsets = [0, 88], sizes = [6, 8], strides = [1, 1]} : vector<6x96xf32> to vector<6x8xf32>
    %cst_169 = arith.constant dense<0.000000e+00> : vector<6x6xf32>
    %485 = tpu.matmul %482, %483, %cst_169 {dimension_numbers = #tpu.dot_dimension_numbers<[1], [1], [0], [0], [0, 0, 1, 0], [], []>} : vector<6x8xf32>, vector<6x8xf32>, vector<6x6xf32> -> vector<6x6xf32>
    %cst_170 = arith.constant dense<0xFF800000> : vector<6xf32>
    %486 = vector.multi_reduction <maximumf>, %485, %cst_170 [1] : vector<6x6xf32> to vector<6xf32>
    %487 = vector.shape_cast %486 : vector<6xf32> to vector<6x1xf32>
    %488 = vector.broadcast %487 : vector<6x1xf32> to vector<6x6xf32>
    %489 = arith.subf %485, %488 : vector<6x6xf32>
    %490 = math.exp %489 : vector<6x6xf32>
    %cst_171 = arith.constant dense<0.000000e+00> : vector<6xf32>
    %491 = vector.multi_reduction <add>, %490, %cst_171 [1] : vector<6x6xf32> to vector<6xf32>
    %492 = vector.shape_cast %491 : vector<6xf32> to vector<6x1xf32>
    %493 = tpu.reciprocal %492 {approx = true} : vector<6x1xf32> -> vector<6x1xf32>
    %494 = vector.broadcast %493 : vector<6x1xf32> to vector<6x6xf32>
    %495 = arith.mulf %490, %494 : vector<6x6xf32>
    %cst_172 = arith.constant dense<0.000000e+00> : vector<6x8xf32>
    %496 = tpu.matmul %495, %484, %cst_172 {dimension_numbers = #tpu.dot_dimension_numbers<[1], [0], [0], [1], [0, 0, 1, 1], [], []>} : vector<6x6xf32>, vector<6x8xf32>, vector<6x8xf32> -> vector<6x8xf32>
    %497 = vector.extract_strided_slice %371 {offsets = [24, 0], sizes = [8, 32], strides = [1, 1]} : vector<32x32xf32> to vector<8x32xf32>
    %cst_173 = arith.constant dense<0.000000e+00> : vector<6x32xf32>
    %498 = tpu.matmul %496, %497, %cst_173 {dimension_numbers = #tpu.dot_dimension_numbers<[1], [0], [0], [1], [0, 0, 1, 1], [], []>} : vector<6x8xf32>, vector<8x32xf32>, vector<6x32xf32> -> vector<6x32xf32>
    %499 = arith.addf %481, %498 : vector<6x32xf32>
    %500 = vector.broadcast %377 : vector<1x32xf32> to vector<6x32xf32>
    %501 = arith.addf %499, %500 : vector<6x32xf32>
    %cst_174 = arith.constant dense<0.000000e+00> : vector<6xf32>
    %502 = vector.multi_reduction <add>, %501, %cst_174 [1] : vector<6x32xf32> to vector<6xf32>
    %503 = vector.shape_cast %502 : vector<6xf32> to vector<6x1xf32>
    %cst_175 = arith.constant 3.200000e+01 : f32
    %504 = vector.broadcast %cst_175 : f32 to vector<6x1xf32>
    %505 = arith.divf %503, %504 : vector<6x1xf32>
    %506 = vector.broadcast %505 : vector<6x1xf32> to vector<6x32xf32>
    %507 = arith.subf %501, %506 : vector<6x32xf32>
    %508 = arith.mulf %507, %507 : vector<6x32xf32>
    %cst_176 = arith.constant dense<0.000000e+00> : vector<6xf32>
    %509 = vector.multi_reduction <add>, %508, %cst_176 [1] : vector<6x32xf32> to vector<6xf32>
    %510 = vector.shape_cast %509 : vector<6xf32> to vector<6x1xf32>
    %cst_177 = arith.constant 3.200000e+01 : f32
    %511 = vector.broadcast %cst_177 : f32 to vector<6x1xf32>
    %512 = arith.divf %510, %511 : vector<6x1xf32>
    %513 = vector.broadcast %505 : vector<6x1xf32> to vector<6x32xf32>
    %514 = arith.subf %501, %513 : vector<6x32xf32>
    %cst_178 = arith.constant 9.99999974E-6 : f32
    %515 = vector.broadcast %cst_178 : f32 to vector<6x1xf32>
    %516 = arith.addf %512, %515 : vector<6x1xf32>
    %517 = math.rsqrt %516 : vector<6x1xf32>
    %518 = vector.broadcast %517 : vector<6x1xf32> to vector<6x32xf32>
    %519 = arith.mulf %514, %518 : vector<6x32xf32>
    %520 = vector.broadcast %378 : vector<1x32xf32> to vector<6x32xf32>
    %521 = arith.mulf %519, %520 : vector<6x32xf32>
    %522 = vector.broadcast %379 : vector<1x32xf32> to vector<6x32xf32>
    %523 = arith.addf %521, %522 : vector<6x32xf32>
    %cst_179 = arith.constant dense<0.000000e+00> : vector<6x64xf32>
    %524 = tpu.matmul %523, %372, %cst_179 {dimension_numbers = #tpu.dot_dimension_numbers<[1], [0], [0], [1], [0, 0, 1, 1], [], []>} : vector<6x32xf32>, vector<32x64xf32>, vector<6x64xf32> -> vector<6x64xf32>
    %525 = vector.broadcast %380 : vector<1x64xf32> to vector<6x64xf32>
    %526 = arith.addf %524, %525 : vector<6x64xf32>
    %cst_180 = arith.constant 5.000000e-01 : f32
    %527 = vector.broadcast %cst_180 : f32 to vector<6x64xf32>
    %528 = arith.mulf %527, %526 : vector<6x64xf32>
    %cst_181 = arith.constant 0.707106769 : f32
    %529 = vector.broadcast %cst_181 : f32 to vector<6x64xf32>
    %530 = arith.mulf %526, %529 : vector<6x64xf32>
    %531 = math.erf %530 : vector<6x64xf32>
    %cst_182 = arith.constant 1.000000e+00 : f32
    %532 = vector.broadcast %cst_182 : f32 to vector<6x64xf32>
    %533 = arith.addf %532, %531 : vector<6x64xf32>
    %534 = arith.mulf %528, %533 : vector<6x64xf32>
    %cst_183 = arith.constant dense<0.000000e+00> : vector<6x32xf32>
    %535 = tpu.matmul %534, %373, %cst_183 {dimension_numbers = #tpu.dot_dimension_numbers<[1], [0], [0], [1], [0, 0, 1, 1], [], []>} : vector<6x64xf32>, vector<64x32xf32>, vector<6x32xf32> -> vector<6x32xf32>
    %536 = arith.addf %501, %535 : vector<6x32xf32>
    %537 = vector.broadcast %381 : vector<1x32xf32> to vector<6x32xf32>
    %538 = arith.addf %536, %537 : vector<6x32xf32>
    %cst_184 = arith.constant dense<0.000000e+00> : vector<6xf32>
    %539 = vector.multi_reduction <add>, %538, %cst_184 [1] : vector<6x32xf32> to vector<6xf32>
    %540 = vector.shape_cast %539 : vector<6xf32> to vector<6x1xf32>
    %cst_185 = arith.constant 3.200000e+01 : f32
    %541 = vector.broadcast %cst_185 : f32 to vector<6x1xf32>
    %542 = arith.divf %540, %541 : vector<6x1xf32>
    %543 = vector.broadcast %542 : vector<6x1xf32> to vector<6x32xf32>
    %544 = arith.subf %538, %543 : vector<6x32xf32>
    %545 = arith.mulf %544, %544 : vector<6x32xf32>
    %cst_186 = arith.constant dense<0.000000e+00> : vector<6xf32>
    %546 = vector.multi_reduction <add>, %545, %cst_186 [1] : vector<6x32xf32> to vector<6xf32>
    %547 = vector.shape_cast %546 : vector<6xf32> to vector<6x1xf32>
    %cst_187 = arith.constant 3.200000e+01 : f32
    %548 = vector.broadcast %cst_187 : f32 to vector<6x1xf32>
    %549 = arith.divf %547, %548 : vector<6x1xf32>
    %550 = vector.broadcast %542 : vector<6x1xf32> to vector<6x32xf32>
    %551 = arith.subf %538, %550 : vector<6x32xf32>
    %cst_188 = arith.constant 9.99999974E-6 : f32
    %552 = vector.broadcast %cst_188 : f32 to vector<6x1xf32>
    %553 = arith.addf %549, %552 : vector<6x1xf32>
    %554 = math.rsqrt %553 : vector<6x1xf32>
    %555 = vector.broadcast %554 : vector<6x1xf32> to vector<6x32xf32>
    %556 = arith.mulf %551, %555 : vector<6x32xf32>
    %557 = vector.broadcast %382 : vector<1x32xf32> to vector<6x32xf32>
    %558 = arith.mulf %556, %557 : vector<6x32xf32>
    %559 = vector.broadcast %383 : vector<1x32xf32> to vector<6x32xf32>
    %560 = arith.addf %558, %559 : vector<6x32xf32>
    %561 = vector.extract_strided_slice %560 {offsets = [0, 0], sizes = [1, 32], strides = [1, 1]} : vector<6x32xf32> to vector<1x32xf32>
    %562 = vector.extract_strided_slice %369 {offsets = [0, 10], sizes = [20, 10], strides = [1, 1]} : vector<20x20xf32> to vector<20x10xf32>
    %c520_189 = arith.constant 520 : index
    %c0_190 = arith.constant 0 : index
    %563 = vector.load %arg1[%c520_189, %c0_190] : memref<808x128xf32, #tpu.memory_space<vmem>>, vector<6x20xf32>
    %c552_191 = arith.constant 552 : index
    %c0_192 = arith.constant 0 : index
    %564 = vector.load %arg1[%c552_191, %c0_192] : memref<808x128xf32, #tpu.memory_space<vmem>>, vector<10x32xf32>
    %cst_193 = arith.constant dense<0.000000e+00> : vector<6x10xf32>
    %565 = tpu.matmul %563, %562, %cst_193 {dimension_numbers = #tpu.dot_dimension_numbers<[1], [0], [0], [1], [0, 0, 1, 1], [], []>} : vector<6x20xf32>, vector<20x10xf32>, vector<6x10xf32> -> vector<6x10xf32>
    %cst_194 = arith.constant dense<0.000000e+00> : vector<6x32xf32>
    %566 = tpu.matmul %565, %564, %cst_194 {dimension_numbers = #tpu.dot_dimension_numbers<[1], [0], [0], [1], [0, 0, 1, 1], [], []>} : vector<6x10xf32>, vector<10x32xf32>, vector<6x32xf32> -> vector<6x32xf32>
    %567 = arith.addf %374, %566 : vector<6x32xf32>
    %c528_195 = arith.constant 528 : index
    %c0_196 = arith.constant 0 : index
    %568 = vector.load %arg1[%c528_195, %c0_196] : memref<808x128xf32, #tpu.memory_space<vmem>>, vector<6x20xf32>
    %c568_197 = arith.constant 568 : index
    %c0_198 = arith.constant 0 : index
    %569 = vector.load %arg1[%c568_197, %c0_198] : memref<808x128xf32, #tpu.memory_space<vmem>>, vector<10x32xf32>
    %cst_199 = arith.constant dense<0.000000e+00> : vector<6x10xf32>
    %570 = tpu.matmul %568, %562, %cst_199 {dimension_numbers = #tpu.dot_dimension_numbers<[1], [0], [0], [1], [0, 0, 1, 1], [], []>} : vector<6x20xf32>, vector<20x10xf32>, vector<6x10xf32> -> vector<6x10xf32>
    %cst_200 = arith.constant dense<0.000000e+00> : vector<6x32xf32>
    %571 = tpu.matmul %570, %569, %cst_200 {dimension_numbers = #tpu.dot_dimension_numbers<[1], [0], [0], [1], [0, 0, 1, 1], [], []>} : vector<6x10xf32>, vector<10x32xf32>, vector<6x32xf32> -> vector<6x32xf32>
    %572 = arith.addf %567, %571 : vector<6x32xf32>
    %c536_201 = arith.constant 536 : index
    %c0_202 = arith.constant 0 : index
    %573 = vector.load %arg1[%c536_201, %c0_202] : memref<808x128xf32, #tpu.memory_space<vmem>>, vector<6x20xf32>
    %c584_203 = arith.constant 584 : index
    %c0_204 = arith.constant 0 : index
    %574 = vector.load %arg1[%c584_203, %c0_204] : memref<808x128xf32, #tpu.memory_space<vmem>>, vector<10x32xf32>
    %cst_205 = arith.constant dense<0.000000e+00> : vector<6x10xf32>
    %575 = tpu.matmul %573, %562, %cst_205 {dimension_numbers = #tpu.dot_dimension_numbers<[1], [0], [0], [1], [0, 0, 1, 1], [], []>} : vector<6x20xf32>, vector<20x10xf32>, vector<6x10xf32> -> vector<6x10xf32>
    %cst_206 = arith.constant dense<0.000000e+00> : vector<6x32xf32>
    %576 = tpu.matmul %575, %574, %cst_206 {dimension_numbers = #tpu.dot_dimension_numbers<[1], [0], [0], [1], [0, 0, 1, 1], [], []>} : vector<6x10xf32>, vector<10x32xf32>, vector<6x32xf32> -> vector<6x32xf32>
    %577 = arith.addf %572, %576 : vector<6x32xf32>
    %c544_207 = arith.constant 544 : index
    %c0_208 = arith.constant 0 : index
    %578 = vector.load %arg1[%c544_207, %c0_208] : memref<808x128xf32, #tpu.memory_space<vmem>>, vector<6x20xf32>
    %c600_209 = arith.constant 600 : index
    %c0_210 = arith.constant 0 : index
    %579 = vector.load %arg1[%c600_209, %c0_210] : memref<808x128xf32, #tpu.memory_space<vmem>>, vector<10x32xf32>
    %cst_211 = arith.constant dense<0.000000e+00> : vector<6x10xf32>
    %580 = tpu.matmul %578, %562, %cst_211 {dimension_numbers = #tpu.dot_dimension_numbers<[1], [0], [0], [1], [0, 0, 1, 1], [], []>} : vector<6x20xf32>, vector<20x10xf32>, vector<6x10xf32> -> vector<6x10xf32>
    %cst_212 = arith.constant dense<0.000000e+00> : vector<6x32xf32>
    %581 = tpu.matmul %580, %579, %cst_212 {dimension_numbers = #tpu.dot_dimension_numbers<[1], [0], [0], [1], [0, 0, 1, 1], [], []>} : vector<6x10xf32>, vector<10x32xf32>, vector<6x32xf32> -> vector<6x32xf32>
    %582 = arith.addf %577, %581 : vector<6x32xf32>
    %cst_213 = arith.constant dense<0.000000e+00> : vector<6xf32>
    %583 = vector.multi_reduction <add>, %582, %cst_213 [1] : vector<6x32xf32> to vector<6xf32>
    %584 = vector.shape_cast %583 : vector<6xf32> to vector<6x1xf32>
    %cst_214 = arith.constant 3.200000e+01 : f32
    %585 = vector.broadcast %cst_214 : f32 to vector<6x1xf32>
    %586 = arith.divf %584, %585 : vector<6x1xf32>
    %587 = vector.broadcast %586 : vector<6x1xf32> to vector<6x32xf32>
    %588 = arith.subf %582, %587 : vector<6x32xf32>
    %589 = arith.mulf %588, %588 : vector<6x32xf32>
    %cst_215 = arith.constant dense<0.000000e+00> : vector<6xf32>
    %590 = vector.multi_reduction <add>, %589, %cst_215 [1] : vector<6x32xf32> to vector<6xf32>
    %591 = vector.shape_cast %590 : vector<6xf32> to vector<6x1xf32>
    %cst_216 = arith.constant 3.200000e+01 : f32
    %592 = vector.broadcast %cst_216 : f32 to vector<6x1xf32>
    %593 = arith.divf %591, %592 : vector<6x1xf32>
    %594 = vector.broadcast %586 : vector<6x1xf32> to vector<6x32xf32>
    %595 = arith.subf %582, %594 : vector<6x32xf32>
    %cst_217 = arith.constant 9.99999974E-6 : f32
    %596 = vector.broadcast %cst_217 : f32 to vector<6x1xf32>
    %597 = arith.addf %593, %596 : vector<6x1xf32>
    %598 = math.rsqrt %597 : vector<6x1xf32>
    %599 = vector.broadcast %598 : vector<6x1xf32> to vector<6x32xf32>
    %600 = arith.mulf %595, %599 : vector<6x32xf32>
    %601 = vector.broadcast %375 : vector<1x32xf32> to vector<6x32xf32>
    %602 = arith.mulf %600, %601 : vector<6x32xf32>
    %603 = vector.broadcast %376 : vector<1x32xf32> to vector<6x32xf32>
    %604 = arith.addf %602, %603 : vector<6x32xf32>
    %cst_218 = arith.constant dense<0.000000e+00> : vector<6x96xf32>
    %605 = tpu.matmul %604, %370, %cst_218 {dimension_numbers = #tpu.dot_dimension_numbers<[1], [0], [0], [1], [0, 0, 1, 1], [], []>} : vector<6x32xf32>, vector<32x96xf32>, vector<6x96xf32> -> vector<6x96xf32>
    %606 = vector.extract_strided_slice %605 {offsets = [0, 0], sizes = [6, 8], strides = [1, 1]} : vector<6x96xf32> to vector<6x8xf32>
    %607 = vector.extract_strided_slice %605 {offsets = [0, 32], sizes = [6, 8], strides = [1, 1]} : vector<6x96xf32> to vector<6x8xf32>
    %608 = vector.extract_strided_slice %605 {offsets = [0, 64], sizes = [6, 8], strides = [1, 1]} : vector<6x96xf32> to vector<6x8xf32>
    %cst_219 = arith.constant dense<0.000000e+00> : vector<6x6xf32>
    %609 = tpu.matmul %606, %607, %cst_219 {dimension_numbers = #tpu.dot_dimension_numbers<[1], [1], [0], [0], [0, 0, 1, 0], [], []>} : vector<6x8xf32>, vector<6x8xf32>, vector<6x6xf32> -> vector<6x6xf32>
    %cst_220 = arith.constant dense<0xFF800000> : vector<6xf32>
    %610 = vector.multi_reduction <maximumf>, %609, %cst_220 [1] : vector<6x6xf32> to vector<6xf32>
    %611 = vector.shape_cast %610 : vector<6xf32> to vector<6x1xf32>
    %612 = vector.broadcast %611 : vector<6x1xf32> to vector<6x6xf32>
    %613 = arith.subf %609, %612 : vector<6x6xf32>
    %614 = math.exp %613 : vector<6x6xf32>
    %cst_221 = arith.constant dense<0.000000e+00> : vector<6xf32>
    %615 = vector.multi_reduction <add>, %614, %cst_221 [1] : vector<6x6xf32> to vector<6xf32>
    %616 = vector.shape_cast %615 : vector<6xf32> to vector<6x1xf32>
    %617 = tpu.reciprocal %616 {approx = true} : vector<6x1xf32> -> vector<6x1xf32>
    %618 = vector.broadcast %617 : vector<6x1xf32> to vector<6x6xf32>
    %619 = arith.mulf %614, %618 : vector<6x6xf32>
    %cst_222 = arith.constant dense<0.000000e+00> : vector<6x8xf32>
    %620 = tpu.matmul %619, %608, %cst_222 {dimension_numbers = #tpu.dot_dimension_numbers<[1], [0], [0], [1], [0, 0, 1, 1], [], []>} : vector<6x6xf32>, vector<6x8xf32>, vector<6x8xf32> -> vector<6x8xf32>
    %621 = vector.extract_strided_slice %371 {offsets = [0, 0], sizes = [8, 32], strides = [1, 1]} : vector<32x32xf32> to vector<8x32xf32>
    %cst_223 = arith.constant dense<0.000000e+00> : vector<6x32xf32>
    %622 = tpu.matmul %620, %621, %cst_223 {dimension_numbers = #tpu.dot_dimension_numbers<[1], [0], [0], [1], [0, 0, 1, 1], [], []>} : vector<6x8xf32>, vector<8x32xf32>, vector<6x32xf32> -> vector<6x32xf32>
    %623 = arith.addf %582, %622 : vector<6x32xf32>
    %624 = vector.extract_strided_slice %605 {offsets = [0, 8], sizes = [6, 8], strides = [1, 1]} : vector<6x96xf32> to vector<6x8xf32>
    %625 = vector.extract_strided_slice %605 {offsets = [0, 40], sizes = [6, 8], strides = [1, 1]} : vector<6x96xf32> to vector<6x8xf32>
    %626 = vector.extract_strided_slice %605 {offsets = [0, 72], sizes = [6, 8], strides = [1, 1]} : vector<6x96xf32> to vector<6x8xf32>
    %cst_224 = arith.constant dense<0.000000e+00> : vector<6x6xf32>
    %627 = tpu.matmul %624, %625, %cst_224 {dimension_numbers = #tpu.dot_dimension_numbers<[1], [1], [0], [0], [0, 0, 1, 0], [], []>} : vector<6x8xf32>, vector<6x8xf32>, vector<6x6xf32> -> vector<6x6xf32>
    %cst_225 = arith.constant dense<0xFF800000> : vector<6xf32>
    %628 = vector.multi_reduction <maximumf>, %627, %cst_225 [1] : vector<6x6xf32> to vector<6xf32>
    %629 = vector.shape_cast %628 : vector<6xf32> to vector<6x1xf32>
    %630 = vector.broadcast %629 : vector<6x1xf32> to vector<6x6xf32>
    %631 = arith.subf %627, %630 : vector<6x6xf32>
    %632 = math.exp %631 : vector<6x6xf32>
    %cst_226 = arith.constant dense<0.000000e+00> : vector<6xf32>
    %633 = vector.multi_reduction <add>, %632, %cst_226 [1] : vector<6x6xf32> to vector<6xf32>
    %634 = vector.shape_cast %633 : vector<6xf32> to vector<6x1xf32>
    %635 = tpu.reciprocal %634 {approx = true} : vector<6x1xf32> -> vector<6x1xf32>
    %636 = vector.broadcast %635 : vector<6x1xf32> to vector<6x6xf32>
    %637 = arith.mulf %632, %636 : vector<6x6xf32>
    %cst_227 = arith.constant dense<0.000000e+00> : vector<6x8xf32>
    %638 = tpu.matmul %637, %626, %cst_227 {dimension_numbers = #tpu.dot_dimension_numbers<[1], [0], [0], [1], [0, 0, 1, 1], [], []>} : vector<6x6xf32>, vector<6x8xf32>, vector<6x8xf32> -> vector<6x8xf32>
    %639 = vector.extract_strided_slice %371 {offsets = [8, 0], sizes = [8, 32], strides = [1, 1]} : vector<32x32xf32> to vector<8x32xf32>
    %cst_228 = arith.constant dense<0.000000e+00> : vector<6x32xf32>
    %640 = tpu.matmul %638, %639, %cst_228 {dimension_numbers = #tpu.dot_dimension_numbers<[1], [0], [0], [1], [0, 0, 1, 1], [], []>} : vector<6x8xf32>, vector<8x32xf32>, vector<6x32xf32> -> vector<6x32xf32>
    %641 = arith.addf %623, %640 : vector<6x32xf32>
    %642 = vector.extract_strided_slice %605 {offsets = [0, 16], sizes = [6, 8], strides = [1, 1]} : vector<6x96xf32> to vector<6x8xf32>
    %643 = vector.extract_strided_slice %605 {offsets = [0, 48], sizes = [6, 8], strides = [1, 1]} : vector<6x96xf32> to vector<6x8xf32>
    %644 = vector.extract_strided_slice %605 {offsets = [0, 80], sizes = [6, 8], strides = [1, 1]} : vector<6x96xf32> to vector<6x8xf32>
    %cst_229 = arith.constant dense<0.000000e+00> : vector<6x6xf32>
    %645 = tpu.matmul %642, %643, %cst_229 {dimension_numbers = #tpu.dot_dimension_numbers<[1], [1], [0], [0], [0, 0, 1, 0], [], []>} : vector<6x8xf32>, vector<6x8xf32>, vector<6x6xf32> -> vector<6x6xf32>
    %cst_230 = arith.constant dense<0xFF800000> : vector<6xf32>
    %646 = vector.multi_reduction <maximumf>, %645, %cst_230 [1] : vector<6x6xf32> to vector<6xf32>
    %647 = vector.shape_cast %646 : vector<6xf32> to vector<6x1xf32>
    %648 = vector.broadcast %647 : vector<6x1xf32> to vector<6x6xf32>
    %649 = arith.subf %645, %648 : vector<6x6xf32>
    %650 = math.exp %649 : vector<6x6xf32>
    %cst_231 = arith.constant dense<0.000000e+00> : vector<6xf32>
    %651 = vector.multi_reduction <add>, %650, %cst_231 [1] : vector<6x6xf32> to vector<6xf32>
    %652 = vector.shape_cast %651 : vector<6xf32> to vector<6x1xf32>
    %653 = tpu.reciprocal %652 {approx = true} : vector<6x1xf32> -> vector<6x1xf32>
    %654 = vector.broadcast %653 : vector<6x1xf32> to vector<6x6xf32>
    %655 = arith.mulf %650, %654 : vector<6x6xf32>
    %cst_232 = arith.constant dense<0.000000e+00> : vector<6x8xf32>
    %656 = tpu.matmul %655, %644, %cst_232 {dimension_numbers = #tpu.dot_dimension_numbers<[1], [0], [0], [1], [0, 0, 1, 1], [], []>} : vector<6x6xf32>, vector<6x8xf32>, vector<6x8xf32> -> vector<6x8xf32>
    %657 = vector.extract_strided_slice %371 {offsets = [16, 0], sizes = [8, 32], strides = [1, 1]} : vector<32x32xf32> to vector<8x32xf32>
    %cst_233 = arith.constant dense<0.000000e+00> : vector<6x32xf32>
    %658 = tpu.matmul %656, %657, %cst_233 {dimension_numbers = #tpu.dot_dimension_numbers<[1], [0], [0], [1], [0, 0, 1, 1], [], []>} : vector<6x8xf32>, vector<8x32xf32>, vector<6x32xf32> -> vector<6x32xf32>
    %659 = arith.addf %641, %658 : vector<6x32xf32>
    %660 = vector.extract_strided_slice %605 {offsets = [0, 24], sizes = [6, 8], strides = [1, 1]} : vector<6x96xf32> to vector<6x8xf32>
    %661 = vector.extract_strided_slice %605 {offsets = [0, 56], sizes = [6, 8], strides = [1, 1]} : vector<6x96xf32> to vector<6x8xf32>
    %662 = vector.extract_strided_slice %605 {offsets = [0, 88], sizes = [6, 8], strides = [1, 1]} : vector<6x96xf32> to vector<6x8xf32>
    %cst_234 = arith.constant dense<0.000000e+00> : vector<6x6xf32>
    %663 = tpu.matmul %660, %661, %cst_234 {dimension_numbers = #tpu.dot_dimension_numbers<[1], [1], [0], [0], [0, 0, 1, 0], [], []>} : vector<6x8xf32>, vector<6x8xf32>, vector<6x6xf32> -> vector<6x6xf32>
    %cst_235 = arith.constant dense<0xFF800000> : vector<6xf32>
    %664 = vector.multi_reduction <maximumf>, %663, %cst_235 [1] : vector<6x6xf32> to vector<6xf32>
    %665 = vector.shape_cast %664 : vector<6xf32> to vector<6x1xf32>
    %666 = vector.broadcast %665 : vector<6x1xf32> to vector<6x6xf32>
    %667 = arith.subf %663, %666 : vector<6x6xf32>
    %668 = math.exp %667 : vector<6x6xf32>
    %cst_236 = arith.constant dense<0.000000e+00> : vector<6xf32>
    %669 = vector.multi_reduction <add>, %668, %cst_236 [1] : vector<6x6xf32> to vector<6xf32>
    %670 = vector.shape_cast %669 : vector<6xf32> to vector<6x1xf32>
    %671 = tpu.reciprocal %670 {approx = true} : vector<6x1xf32> -> vector<6x1xf32>
    %672 = vector.broadcast %671 : vector<6x1xf32> to vector<6x6xf32>
    %673 = arith.mulf %668, %672 : vector<6x6xf32>
    %cst_237 = arith.constant dense<0.000000e+00> : vector<6x8xf32>
    %674 = tpu.matmul %673, %662, %cst_237 {dimension_numbers = #tpu.dot_dimension_numbers<[1], [0], [0], [1], [0, 0, 1, 1], [], []>} : vector<6x6xf32>, vector<6x8xf32>, vector<6x8xf32> -> vector<6x8xf32>
    %675 = vector.extract_strided_slice %371 {offsets = [24, 0], sizes = [8, 32], strides = [1, 1]} : vector<32x32xf32> to vector<8x32xf32>
    %cst_238 = arith.constant dense<0.000000e+00> : vector<6x32xf32>
    %676 = tpu.matmul %674, %675, %cst_238 {dimension_numbers = #tpu.dot_dimension_numbers<[1], [0], [0], [1], [0, 0, 1, 1], [], []>} : vector<6x8xf32>, vector<8x32xf32>, vector<6x32xf32> -> vector<6x32xf32>
    %677 = arith.addf %659, %676 : vector<6x32xf32>
    %678 = vector.broadcast %377 : vector<1x32xf32> to vector<6x32xf32>
    %679 = arith.addf %677, %678 : vector<6x32xf32>
    %cst_239 = arith.constant dense<0.000000e+00> : vector<6xf32>
    %680 = vector.multi_reduction <add>, %679, %cst_239 [1] : vector<6x32xf32> to vector<6xf32>
    %681 = vector.shape_cast %680 : vector<6xf32> to vector<6x1xf32>
    %cst_240 = arith.constant 3.200000e+01 : f32
    %682 = vector.broadcast %cst_240 : f32 to vector<6x1xf32>
    %683 = arith.divf %681, %682 : vector<6x1xf32>
    %684 = vector.broadcast %683 : vector<6x1xf32> to vector<6x32xf32>
    %685 = arith.subf %679, %684 : vector<6x32xf32>
    %686 = arith.mulf %685, %685 : vector<6x32xf32>
    %cst_241 = arith.constant dense<0.000000e+00> : vector<6xf32>
    %687 = vector.multi_reduction <add>, %686, %cst_241 [1] : vector<6x32xf32> to vector<6xf32>
    %688 = vector.shape_cast %687 : vector<6xf32> to vector<6x1xf32>
    %cst_242 = arith.constant 3.200000e+01 : f32
    %689 = vector.broadcast %cst_242 : f32 to vector<6x1xf32>
    %690 = arith.divf %688, %689 : vector<6x1xf32>
    %691 = vector.broadcast %683 : vector<6x1xf32> to vector<6x32xf32>
    %692 = arith.subf %679, %691 : vector<6x32xf32>
    %cst_243 = arith.constant 9.99999974E-6 : f32
    %693 = vector.broadcast %cst_243 : f32 to vector<6x1xf32>
    %694 = arith.addf %690, %693 : vector<6x1xf32>
    %695 = math.rsqrt %694 : vector<6x1xf32>
    %696 = vector.broadcast %695 : vector<6x1xf32> to vector<6x32xf32>
    %697 = arith.mulf %692, %696 : vector<6x32xf32>
    %698 = vector.broadcast %378 : vector<1x32xf32> to vector<6x32xf32>
    %699 = arith.mulf %697, %698 : vector<6x32xf32>
    %700 = vector.broadcast %379 : vector<1x32xf32> to vector<6x32xf32>
    %701 = arith.addf %699, %700 : vector<6x32xf32>
    %cst_244 = arith.constant dense<0.000000e+00> : vector<6x64xf32>
    %702 = tpu.matmul %701, %372, %cst_244 {dimension_numbers = #tpu.dot_dimension_numbers<[1], [0], [0], [1], [0, 0, 1, 1], [], []>} : vector<6x32xf32>, vector<32x64xf32>, vector<6x64xf32> -> vector<6x64xf32>
    %703 = vector.broadcast %380 : vector<1x64xf32> to vector<6x64xf32>
    %704 = arith.addf %702, %703 : vector<6x64xf32>
    %cst_245 = arith.constant 5.000000e-01 : f32
    %705 = vector.broadcast %cst_245 : f32 to vector<6x64xf32>
    %706 = arith.mulf %705, %704 : vector<6x64xf32>
    %cst_246 = arith.constant 0.707106769 : f32
    %707 = vector.broadcast %cst_246 : f32 to vector<6x64xf32>
    %708 = arith.mulf %704, %707 : vector<6x64xf32>
    %709 = math.erf %708 : vector<6x64xf32>
    %cst_247 = arith.constant 1.000000e+00 : f32
    %710 = vector.broadcast %cst_247 : f32 to vector<6x64xf32>
    %711 = arith.addf %710, %709 : vector<6x64xf32>
    %712 = arith.mulf %706, %711 : vector<6x64xf32>
    %cst_248 = arith.constant dense<0.000000e+00> : vector<6x32xf32>
    %713 = tpu.matmul %712, %373, %cst_248 {dimension_numbers = #tpu.dot_dimension_numbers<[1], [0], [0], [1], [0, 0, 1, 1], [], []>} : vector<6x64xf32>, vector<64x32xf32>, vector<6x32xf32> -> vector<6x32xf32>
    %714 = arith.addf %679, %713 : vector<6x32xf32>
    %715 = vector.broadcast %381 : vector<1x32xf32> to vector<6x32xf32>
    %716 = arith.addf %714, %715 : vector<6x32xf32>
    %cst_249 = arith.constant dense<0.000000e+00> : vector<6xf32>
    %717 = vector.multi_reduction <add>, %716, %cst_249 [1] : vector<6x32xf32> to vector<6xf32>
    %718 = vector.shape_cast %717 : vector<6xf32> to vector<6x1xf32>
    %cst_250 = arith.constant 3.200000e+01 : f32
    %719 = vector.broadcast %cst_250 : f32 to vector<6x1xf32>
    %720 = arith.divf %718, %719 : vector<6x1xf32>
    %721 = vector.broadcast %720 : vector<6x1xf32> to vector<6x32xf32>
    %722 = arith.subf %716, %721 : vector<6x32xf32>
    %723 = arith.mulf %722, %722 : vector<6x32xf32>
    %cst_251 = arith.constant dense<0.000000e+00> : vector<6xf32>
    %724 = vector.multi_reduction <add>, %723, %cst_251 [1] : vector<6x32xf32> to vector<6xf32>
    %725 = vector.shape_cast %724 : vector<6xf32> to vector<6x1xf32>
    %cst_252 = arith.constant 3.200000e+01 : f32
    %726 = vector.broadcast %cst_252 : f32 to vector<6x1xf32>
    %727 = arith.divf %725, %726 : vector<6x1xf32>
    %728 = vector.broadcast %720 : vector<6x1xf32> to vector<6x32xf32>
    %729 = arith.subf %716, %728 : vector<6x32xf32>
    %cst_253 = arith.constant 9.99999974E-6 : f32
    %730 = vector.broadcast %cst_253 : f32 to vector<6x1xf32>
    %731 = arith.addf %727, %730 : vector<6x1xf32>
    %732 = math.rsqrt %731 : vector<6x1xf32>
    %733 = vector.broadcast %732 : vector<6x1xf32> to vector<6x32xf32>
    %734 = arith.mulf %729, %733 : vector<6x32xf32>
    %735 = vector.broadcast %382 : vector<1x32xf32> to vector<6x32xf32>
    %736 = arith.mulf %734, %735 : vector<6x32xf32>
    %737 = vector.broadcast %383 : vector<1x32xf32> to vector<6x32xf32>
    %738 = arith.addf %736, %737 : vector<6x32xf32>
    %739 = vector.extract_strided_slice %738 {offsets = [0, 0], sizes = [1, 32], strides = [1, 1]} : vector<6x32xf32> to vector<1x32xf32>
    %740 = arith.addf %192, %561 : vector<1x32xf32>
    %c696 = arith.constant 696 : index
    %c0_254 = arith.constant 0 : index
    %741 = vector.load %arg1[%c696, %c0_254] : memref<808x128xf32, #tpu.memory_space<vmem>>, vector<1x32xf32>
    %c697 = arith.constant 697 : index
    %c0_255 = arith.constant 0 : index
    %742 = vector.load %arg1[%c697, %c0_255] : memref<808x128xf32, #tpu.memory_space<vmem>>, vector<1x32xf32>
    %c704 = arith.constant 704 : index
    %c0_256 = arith.constant 0 : index
    %743 = vector.load %arg1[%c704, %c0_256] : memref<808x128xf32, #tpu.memory_space<vmem>>, vector<32x10xf32>
    %c800 = arith.constant 800 : index
    %c0_257 = arith.constant 0 : index
    %744 = vector.load %arg1[%c800, %c0_257] : memref<808x128xf32, #tpu.memory_space<vmem>>, vector<1x10xf32>
    %cst_258 = arith.constant dense<0.000000e+00> : vector<1xf32>
    %745 = vector.multi_reduction <add>, %192, %cst_258 [1] : vector<1x32xf32> to vector<1xf32>
    %746 = vector.shape_cast %745 : vector<1xf32> to vector<1x1xf32>
    %cst_259 = arith.constant 3.200000e+01 : f32
    %747 = vector.broadcast %cst_259 : f32 to vector<1x1xf32>
    %748 = arith.divf %746, %747 : vector<1x1xf32>
    %749 = vector.broadcast %748 : vector<1x1xf32> to vector<1x32xf32>
    %750 = arith.subf %192, %749 : vector<1x32xf32>
    %751 = arith.mulf %750, %750 : vector<1x32xf32>
    %cst_260 = arith.constant dense<0.000000e+00> : vector<1xf32>
    %752 = vector.multi_reduction <add>, %751, %cst_260 [1] : vector<1x32xf32> to vector<1xf32>
    %753 = vector.shape_cast %752 : vector<1xf32> to vector<1x1xf32>
    %cst_261 = arith.constant 3.200000e+01 : f32
    %754 = vector.broadcast %cst_261 : f32 to vector<1x1xf32>
    %755 = arith.divf %753, %754 : vector<1x1xf32>
    %756 = vector.broadcast %748 : vector<1x1xf32> to vector<1x32xf32>
    %757 = arith.subf %192, %756 : vector<1x32xf32>
    %cst_262 = arith.constant 9.99999974E-6 : f32
    %758 = vector.broadcast %cst_262 : f32 to vector<1x1xf32>
    %759 = arith.addf %755, %758 : vector<1x1xf32>
    %760 = math.rsqrt %759 : vector<1x1xf32>
    %761 = vector.broadcast %760 : vector<1x1xf32> to vector<1x32xf32>
    %762 = arith.mulf %757, %761 : vector<1x32xf32>
    %763 = arith.mulf %762, %741 : vector<1x32xf32>
    %764 = arith.addf %763, %742 : vector<1x32xf32>
    %cst_263 = arith.constant dense<0.000000e+00> : vector<1x10xf32>
    %765 = tpu.matmul %764, %743, %cst_263 {dimension_numbers = #tpu.dot_dimension_numbers<[1], [0], [0], [1], [0, 0, 1, 1], [], []>} : vector<1x32xf32>, vector<32x10xf32>, vector<1x10xf32> -> vector<1x10xf32>
    %766 = arith.addf %765, %744 : vector<1x10xf32>
    %c0_264 = arith.constant 0 : index
    %c0_265 = arith.constant 0 : index
    %767 = vector.load %arg2[%c0_264, %c0_265] : memref<6x10xf32, #tpu.memory_space<vmem>>, vector<1x10xf32>
    tpu.vector_store %arg2[%c0_264, %c0_265], %766 {strides = array<i32>} : memref<6x10xf32, #tpu.memory_space<vmem>>, vector<1x10xf32>,
    %c698 = arith.constant 698 : index
    %c0_266 = arith.constant 0 : index
    %768 = vector.load %arg1[%c698, %c0_266] : memref<808x128xf32, #tpu.memory_space<vmem>>, vector<1x32xf32>
    %c699 = arith.constant 699 : index
    %c0_267 = arith.constant 0 : index
    %769 = vector.load %arg1[%c699, %c0_267] : memref<808x128xf32, #tpu.memory_space<vmem>>, vector<1x32xf32>
    %c736 = arith.constant 736 : index
    %c0_268 = arith.constant 0 : index
    %770 = vector.load %arg1[%c736, %c0_268] : memref<808x128xf32, #tpu.memory_space<vmem>>, vector<32x10xf32>
    %c801 = arith.constant 801 : index
    %c0_269 = arith.constant 0 : index
    %771 = vector.load %arg1[%c801, %c0_269] : memref<808x128xf32, #tpu.memory_space<vmem>>, vector<1x10xf32>
    %cst_270 = arith.constant dense<0.000000e+00> : vector<1xf32>
    %772 = vector.multi_reduction <add>, %561, %cst_270 [1] : vector<1x32xf32> to vector<1xf32>
    %773 = vector.shape_cast %772 : vector<1xf32> to vector<1x1xf32>
    %cst_271 = arith.constant 3.200000e+01 : f32
    %774 = vector.broadcast %cst_271 : f32 to vector<1x1xf32>
    %775 = arith.divf %773, %774 : vector<1x1xf32>
    %776 = vector.broadcast %775 : vector<1x1xf32> to vector<1x32xf32>
    %777 = arith.subf %561, %776 : vector<1x32xf32>
    %778 = arith.mulf %777, %777 : vector<1x32xf32>
    %cst_272 = arith.constant dense<0.000000e+00> : vector<1xf32>
    %779 = vector.multi_reduction <add>, %778, %cst_272 [1] : vector<1x32xf32> to vector<1xf32>
    %780 = vector.shape_cast %779 : vector<1xf32> to vector<1x1xf32>
    %cst_273 = arith.constant 3.200000e+01 : f32
    %781 = vector.broadcast %cst_273 : f32 to vector<1x1xf32>
    %782 = arith.divf %780, %781 : vector<1x1xf32>
    %783 = vector.broadcast %775 : vector<1x1xf32> to vector<1x32xf32>
    %784 = arith.subf %561, %783 : vector<1x32xf32>
    %cst_274 = arith.constant 9.99999974E-6 : f32
    %785 = vector.broadcast %cst_274 : f32 to vector<1x1xf32>
    %786 = arith.addf %782, %785 : vector<1x1xf32>
    %787 = math.rsqrt %786 : vector<1x1xf32>
    %788 = vector.broadcast %787 : vector<1x1xf32> to vector<1x32xf32>
    %789 = arith.mulf %784, %788 : vector<1x32xf32>
    %790 = arith.mulf %789, %768 : vector<1x32xf32>
    %791 = arith.addf %790, %769 : vector<1x32xf32>
    %cst_275 = arith.constant dense<0.000000e+00> : vector<1x10xf32>
    %792 = tpu.matmul %791, %770, %cst_275 {dimension_numbers = #tpu.dot_dimension_numbers<[1], [0], [0], [1], [0, 0, 1, 1], [], []>} : vector<1x32xf32>, vector<32x10xf32>, vector<1x10xf32> -> vector<1x10xf32>
    %793 = arith.addf %792, %771 : vector<1x10xf32>
    %c2 = arith.constant 2 : index
    %c0_276 = arith.constant 0 : index
    %794 = vector.load %arg2[%c2, %c0_276] : memref<6x10xf32, #tpu.memory_space<vmem>>, vector<1x10xf32>
    tpu.vector_store %arg2[%c2, %c0_276], %793 {strides = array<i32>} : memref<6x10xf32, #tpu.memory_space<vmem>>, vector<1x10xf32>,
    %c700 = arith.constant 700 : index
    %c0_277 = arith.constant 0 : index
    %795 = vector.load %arg1[%c700, %c0_277] : memref<808x128xf32, #tpu.memory_space<vmem>>, vector<1x32xf32>
    %c701 = arith.constant 701 : index
    %c0_278 = arith.constant 0 : index
    %796 = vector.load %arg1[%c701, %c0_278] : memref<808x128xf32, #tpu.memory_space<vmem>>, vector<1x32xf32>
    %c768 = arith.constant 768 : index
    %c0_279 = arith.constant 0 : index
    %797 = vector.load %arg1[%c768, %c0_279] : memref<808x128xf32, #tpu.memory_space<vmem>>, vector<32x10xf32>
    %c802 = arith.constant 802 : index
    %c0_280 = arith.constant 0 : index
    %798 = vector.load %arg1[%c802, %c0_280] : memref<808x128xf32, #tpu.memory_space<vmem>>, vector<1x10xf32>
    %cst_281 = arith.constant dense<0.000000e+00> : vector<1xf32>
    %799 = vector.multi_reduction <add>, %740, %cst_281 [1] : vector<1x32xf32> to vector<1xf32>
    %800 = vector.shape_cast %799 : vector<1xf32> to vector<1x1xf32>
    %cst_282 = arith.constant 3.200000e+01 : f32
    %801 = vector.broadcast %cst_282 : f32 to vector<1x1xf32>
    %802 = arith.divf %800, %801 : vector<1x1xf32>
    %803 = vector.broadcast %802 : vector<1x1xf32> to vector<1x32xf32>
    %804 = arith.subf %740, %803 : vector<1x32xf32>
    %805 = arith.mulf %804, %804 : vector<1x32xf32>
    %cst_283 = arith.constant dense<0.000000e+00> : vector<1xf32>
    %806 = vector.multi_reduction <add>, %805, %cst_283 [1] : vector<1x32xf32> to vector<1xf32>
    %807 = vector.shape_cast %806 : vector<1xf32> to vector<1x1xf32>
    %cst_284 = arith.constant 3.200000e+01 : f32
    %808 = vector.broadcast %cst_284 : f32 to vector<1x1xf32>
    %809 = arith.divf %807, %808 : vector<1x1xf32>
    %810 = vector.broadcast %802 : vector<1x1xf32> to vector<1x32xf32>
    %811 = arith.subf %740, %810 : vector<1x32xf32>
    %cst_285 = arith.constant 9.99999974E-6 : f32
    %812 = vector.broadcast %cst_285 : f32 to vector<1x1xf32>
    %813 = arith.addf %809, %812 : vector<1x1xf32>
    %814 = math.rsqrt %813 : vector<1x1xf32>
    %815 = vector.broadcast %814 : vector<1x1xf32> to vector<1x32xf32>
    %816 = arith.mulf %811, %815 : vector<1x32xf32>
    %817 = arith.mulf %816, %795 : vector<1x32xf32>
    %818 = arith.addf %817, %796 : vector<1x32xf32>
    %cst_286 = arith.constant dense<0.000000e+00> : vector<1x10xf32>
    %819 = tpu.matmul %818, %797, %cst_286 {dimension_numbers = #tpu.dot_dimension_numbers<[1], [0], [0], [1], [0, 0, 1, 1], [], []>} : vector<1x32xf32>, vector<32x10xf32>, vector<1x10xf32> -> vector<1x10xf32>
    %820 = arith.addf %819, %798 : vector<1x10xf32>
    %c4 = arith.constant 4 : index
    %c0_287 = arith.constant 0 : index
    %821 = vector.load %arg2[%c4, %c0_287] : memref<6x10xf32, #tpu.memory_space<vmem>>, vector<1x10xf32>
    tpu.vector_store %arg2[%c4, %c0_287], %820 {strides = array<i32>} : memref<6x10xf32, #tpu.memory_space<vmem>>, vector<1x10xf32>,
    %822 = arith.addf %355, %739 : vector<1x32xf32>
    %c696_288 = arith.constant 696 : index
    %c0_289 = arith.constant 0 : index
    %823 = vector.load %arg1[%c696_288, %c0_289] : memref<808x128xf32, #tpu.memory_space<vmem>>, vector<1x32xf32>
    %c697_290 = arith.constant 697 : index
    %c0_291 = arith.constant 0 : index
    %824 = vector.load %arg1[%c697_290, %c0_291] : memref<808x128xf32, #tpu.memory_space<vmem>>, vector<1x32xf32>
    %c704_292 = arith.constant 704 : index
    %c0_293 = arith.constant 0 : index
    %825 = vector.load %arg1[%c704_292, %c0_293] : memref<808x128xf32, #tpu.memory_space<vmem>>, vector<32x10xf32>
    %c800_294 = arith.constant 800 : index
    %c0_295 = arith.constant 0 : index
    %826 = vector.load %arg1[%c800_294, %c0_295] : memref<808x128xf32, #tpu.memory_space<vmem>>, vector<1x10xf32>
    %cst_296 = arith.constant dense<0.000000e+00> : vector<1xf32>
    %827 = vector.multi_reduction <add>, %355, %cst_296 [1] : vector<1x32xf32> to vector<1xf32>
    %828 = vector.shape_cast %827 : vector<1xf32> to vector<1x1xf32>
    %cst_297 = arith.constant 3.200000e+01 : f32
    %829 = vector.broadcast %cst_297 : f32 to vector<1x1xf32>
    %830 = arith.divf %828, %829 : vector<1x1xf32>
    %831 = vector.broadcast %830 : vector<1x1xf32> to vector<1x32xf32>
    %832 = arith.subf %355, %831 : vector<1x32xf32>
    %833 = arith.mulf %832, %832 : vector<1x32xf32>
    %cst_298 = arith.constant dense<0.000000e+00> : vector<1xf32>
    %834 = vector.multi_reduction <add>, %833, %cst_298 [1] : vector<1x32xf32> to vector<1xf32>
    %835 = vector.shape_cast %834 : vector<1xf32> to vector<1x1xf32>
    %cst_299 = arith.constant 3.200000e+01 : f32
    %836 = vector.broadcast %cst_299 : f32 to vector<1x1xf32>
    %837 = arith.divf %835, %836 : vector<1x1xf32>
    %838 = vector.broadcast %830 : vector<1x1xf32> to vector<1x32xf32>
    %839 = arith.subf %355, %838 : vector<1x32xf32>
    %cst_300 = arith.constant 9.99999974E-6 : f32
    %840 = vector.broadcast %cst_300 : f32 to vector<1x1xf32>
    %841 = arith.addf %837, %840 : vector<1x1xf32>
    %842 = math.rsqrt %841 : vector<1x1xf32>
    %843 = vector.broadcast %842 : vector<1x1xf32> to vector<1x32xf32>
    %844 = arith.mulf %839, %843 : vector<1x32xf32>
    %845 = arith.mulf %844, %823 : vector<1x32xf32>
    %846 = arith.addf %845, %824 : vector<1x32xf32>
    %cst_301 = arith.constant dense<0.000000e+00> : vector<1x10xf32>
    %847 = tpu.matmul %846, %825, %cst_301 {dimension_numbers = #tpu.dot_dimension_numbers<[1], [0], [0], [1], [0, 0, 1, 1], [], []>} : vector<1x32xf32>, vector<32x10xf32>, vector<1x10xf32> -> vector<1x10xf32>
    %848 = arith.addf %847, %826 : vector<1x10xf32>
    %c1 = arith.constant 1 : index
    %c0_302 = arith.constant 0 : index
    %849 = vector.load %arg2[%c1, %c0_302] : memref<6x10xf32, #tpu.memory_space<vmem>>, vector<1x10xf32>
    tpu.vector_store %arg2[%c1, %c0_302], %848 {strides = array<i32>} : memref<6x10xf32, #tpu.memory_space<vmem>>, vector<1x10xf32>,
    %c698_303 = arith.constant 698 : index
    %c0_304 = arith.constant 0 : index
    %850 = vector.load %arg1[%c698_303, %c0_304] : memref<808x128xf32, #tpu.memory_space<vmem>>, vector<1x32xf32>
    %c699_305 = arith.constant 699 : index
    %c0_306 = arith.constant 0 : index
    %851 = vector.load %arg1[%c699_305, %c0_306] : memref<808x128xf32, #tpu.memory_space<vmem>>, vector<1x32xf32>
    %c736_307 = arith.constant 736 : index
    %c0_308 = arith.constant 0 : index
    %852 = vector.load %arg1[%c736_307, %c0_308] : memref<808x128xf32, #tpu.memory_space<vmem>>, vector<32x10xf32>
    %c801_309 = arith.constant 801 : index
    %c0_310 = arith.constant 0 : index
    %853 = vector.load %arg1[%c801_309, %c0_310] : memref<808x128xf32, #tpu.memory_space<vmem>>, vector<1x10xf32>
    %cst_311 = arith.constant dense<0.000000e+00> : vector<1xf32>
    %854 = vector.multi_reduction <add>, %739, %cst_311 [1] : vector<1x32xf32> to vector<1xf32>
    %855 = vector.shape_cast %854 : vector<1xf32> to vector<1x1xf32>
    %cst_312 = arith.constant 3.200000e+01 : f32
    %856 = vector.broadcast %cst_312 : f32 to vector<1x1xf32>
    %857 = arith.divf %855, %856 : vector<1x1xf32>
    %858 = vector.broadcast %857 : vector<1x1xf32> to vector<1x32xf32>
    %859 = arith.subf %739, %858 : vector<1x32xf32>
    %860 = arith.mulf %859, %859 : vector<1x32xf32>
    %cst_313 = arith.constant dense<0.000000e+00> : vector<1xf32>
    %861 = vector.multi_reduction <add>, %860, %cst_313 [1] : vector<1x32xf32> to vector<1xf32>
    %862 = vector.shape_cast %861 : vector<1xf32> to vector<1x1xf32>
    %cst_314 = arith.constant 3.200000e+01 : f32
    %863 = vector.broadcast %cst_314 : f32 to vector<1x1xf32>
    %864 = arith.divf %862, %863 : vector<1x1xf32>
    %865 = vector.broadcast %857 : vector<1x1xf32> to vector<1x32xf32>
    %866 = arith.subf %739, %865 : vector<1x32xf32>
    %cst_315 = arith.constant 9.99999974E-6 : f32
    %867 = vector.broadcast %cst_315 : f32 to vector<1x1xf32>
    %868 = arith.addf %864, %867 : vector<1x1xf32>
    %869 = math.rsqrt %868 : vector<1x1xf32>
    %870 = vector.broadcast %869 : vector<1x1xf32> to vector<1x32xf32>
    %871 = arith.mulf %866, %870 : vector<1x32xf32>
    %872 = arith.mulf %871, %850 : vector<1x32xf32>
    %873 = arith.addf %872, %851 : vector<1x32xf32>
    %cst_316 = arith.constant dense<0.000000e+00> : vector<1x10xf32>
    %874 = tpu.matmul %873, %852, %cst_316 {dimension_numbers = #tpu.dot_dimension_numbers<[1], [0], [0], [1], [0, 0, 1, 1], [], []>} : vector<1x32xf32>, vector<32x10xf32>, vector<1x10xf32> -> vector<1x10xf32>
    %875 = arith.addf %874, %853 : vector<1x10xf32>
    %c3 = arith.constant 3 : index
    %c0_317 = arith.constant 0 : index
    %876 = vector.load %arg2[%c3, %c0_317] : memref<6x10xf32, #tpu.memory_space<vmem>>, vector<1x10xf32>
    tpu.vector_store %arg2[%c3, %c0_317], %875 {strides = array<i32>} : memref<6x10xf32, #tpu.memory_space<vmem>>, vector<1x10xf32>,
    %c700_318 = arith.constant 700 : index
    %c0_319 = arith.constant 0 : index
    %877 = vector.load %arg1[%c700_318, %c0_319] : memref<808x128xf32, #tpu.memory_space<vmem>>, vector<1x32xf32>
    %c701_320 = arith.constant 701 : index
    %c0_321 = arith.constant 0 : index
    %878 = vector.load %arg1[%c701_320, %c0_321] : memref<808x128xf32, #tpu.memory_space<vmem>>, vector<1x32xf32>
    %c768_322 = arith.constant 768 : index
    %c0_323 = arith.constant 0 : index
    %879 = vector.load %arg1[%c768_322, %c0_323] : memref<808x128xf32, #tpu.memory_space<vmem>>, vector<32x10xf32>
    %c802_324 = arith.constant 802 : index
    %c0_325 = arith.constant 0 : index
    %880 = vector.load %arg1[%c802_324, %c0_325] : memref<808x128xf32, #tpu.memory_space<vmem>>, vector<1x10xf32>
    %cst_326 = arith.constant dense<0.000000e+00> : vector<1xf32>
    %881 = vector.multi_reduction <add>, %822, %cst_326 [1] : vector<1x32xf32> to vector<1xf32>
    %882 = vector.shape_cast %881 : vector<1xf32> to vector<1x1xf32>
    %cst_327 = arith.constant 3.200000e+01 : f32
    %883 = vector.broadcast %cst_327 : f32 to vector<1x1xf32>
    %884 = arith.divf %882, %883 : vector<1x1xf32>
    %885 = vector.broadcast %884 : vector<1x1xf32> to vector<1x32xf32>
    %886 = arith.subf %822, %885 : vector<1x32xf32>
    %887 = arith.mulf %886, %886 : vector<1x32xf32>
    %cst_328 = arith.constant dense<0.000000e+00> : vector<1xf32>
    %888 = vector.multi_reduction <add>, %887, %cst_328 [1] : vector<1x32xf32> to vector<1xf32>
    %889 = vector.shape_cast %888 : vector<1xf32> to vector<1x1xf32>
    %cst_329 = arith.constant 3.200000e+01 : f32
    %890 = vector.broadcast %cst_329 : f32 to vector<1x1xf32>
    %891 = arith.divf %889, %890 : vector<1x1xf32>
    %892 = vector.broadcast %884 : vector<1x1xf32> to vector<1x32xf32>
    %893 = arith.subf %822, %892 : vector<1x32xf32>
    %cst_330 = arith.constant 9.99999974E-6 : f32
    %894 = vector.broadcast %cst_330 : f32 to vector<1x1xf32>
    %895 = arith.addf %891, %894 : vector<1x1xf32>
    %896 = math.rsqrt %895 : vector<1x1xf32>
    %897 = vector.broadcast %896 : vector<1x1xf32> to vector<1x32xf32>
    %898 = arith.mulf %893, %897 : vector<1x32xf32>
    %899 = arith.mulf %898, %877 : vector<1x32xf32>
    %900 = arith.addf %899, %878 : vector<1x32xf32>
    %cst_331 = arith.constant dense<0.000000e+00> : vector<1x10xf32>
    %901 = tpu.matmul %900, %879, %cst_331 {dimension_numbers = #tpu.dot_dimension_numbers<[1], [0], [0], [1], [0, 0, 1, 1], [], []>} : vector<1x32xf32>, vector<32x10xf32>, vector<1x10xf32> -> vector<1x10xf32>
    %902 = arith.addf %901, %880 : vector<1x10xf32>
    %c5 = arith.constant 5 : index
    %c0_332 = arith.constant 0 : index
    %903 = vector.load %arg2[%c5, %c0_332] : memref<6x10xf32, #tpu.memory_space<vmem>>, vector<1x10xf32>
    tpu.vector_store %arg2[%c5, %c0_332], %902 {strides = array<i32>} : memref<6x10xf32, #tpu.memory_space<vmem>>, vector<1x10xf32>,
    return
  }
}

</mosaic_0001>

<llo_original>
// kernel: vit_trahgr_forward.1
$region0: #{vit_trahgr_forward.1}
  #allocation0 [shape = 'u32[]', space=smem, size = 0x4, offset = 0x4, fixed_abs, tag = 'smem constant byte address 0x4 - core index']
  #allocation1 [shape = 'u32[72,128]{1,0:T(1,128)}', space=vmem, size = 0x9000, scoped, tag = 'internal scratch']
  %s0 = inlined_call_operand.vmem [shape: f32[36,80], index: 0, kind: input, shape index: {}]
  %s1 = inlined_call_operand.hbm [shape: f32[808,128], index: 1, kind: input, shape index: {}]
  %s2 = inlined_call_operand.vmem [shape: f32[6,10], index: 2, kind: output, shape index: {}]
  %s3 = sld [smem:[#allocation0]]
  $region22: #{vit_trahgr_forward.1} parent=0
    _
  %s5 = ssub.s32 1, %s3
  %s6 = scalar_select 0, %s5, %s3
  $region1: #{vit_trahgr_forward.1} parent=0
    #allocation2 [shape = 'u8[413696]{0}', space=vmem, size = 0x65000, scoped, tag = 'input window, operand 1, single buffered']
    #allocation3 [shape = 's32[1]{0}', space=sflag, size = 0x4, scoped, tag = 'scoped memory for vit_trahgr_forward.1']
    %7 = vsyncpa [#allocation3], 0
    // Predicated region
    $region2: #{vit_trahgr_forward.1} parent=1 // pred_check
      _
    $region3: #{vit_trahgr_forward.1} parent=1 // pred_check_branch
      %9 = sbr.rel (0) target = $region5
    $region4: #{vit_trahgr_forward.1} parent=1 // pred_region
      _
    $region5: #{vit_trahgr_forward.1} parent=1 // pred_fallthru
      _
    // Predicated region
    $region6: #{vit_trahgr_forward.1} parent=1 // pred_check
      _
    $region7: #{vit_trahgr_forward.1} parent=1 // pred_check_branch
      %11 = sbr.rel (0) target = $region9
    $region8: #{vit_trahgr_forward.1} parent=1 // pred_region
      %13 = vsyncadd [#allocation3], 0
      %s14 = sshll.u32 %s1, 4
      %s15 = int_to_ptr.hbm [resolvable:$true] %s14
      %s16 = sshll.u32 [#allocation2], 4
      %s17 = int_to_ptr.vmem [resolvable:$true] %s16
      %22 = dma.hbm_to_vmem [thread:$0]  %s15, 12928, %s17, [#allocation3], 128, 128, 8
    $region9: #{vit_trahgr_forward.1} parent=1 // pred_fallthru
      _
    // Predicated region
    $region10: #{vit_trahgr_forward.1} parent=1 // pred_check
      _
    $region11: #{vit_trahgr_forward.1} parent=1 // pred_check_branch
      %24 = sbr.rel (0) target = $region13
    $region12: #{vit_trahgr_forward.1} parent=1 // pred_region
      %26 = dma.done [#allocation3], 12928
    $region13: #{vit_trahgr_forward.1} parent=1 // pred_fallthru
      _
    %v27 = vld [vmem:[%s0] sm:$0xff]
    %v28 = vld [vmem:[%s0 + $0x8] sm:$0xff]
    %v29 = vld [vmem:[%s0 + $0x10] sm:$0xff]
    %v30 = vld [vmem:[%s0 + $0x18] sm:$0xff]
    %v31 = vld [vmem:[%s0 + $0x20] sm:$0xf]
    %v32 = vld [vmem:[#allocation2 + $0x268] sm:$0xff]
    %v33 = vld [vmem:[#allocation2 + $0x270] sm:$0xff]
    %v34 = vld [vmem:[#allocation2 + $0x278] sm:$0xff]
    %v35 = vld [vmem:[#allocation2 + $0x280] sm:$0xff]
    %v36 = vld [vmem:[#allocation2 + $0x288] sm:$0xff]
    %v37 = vld [vmem:[#allocation2 + $0x290] sm:$0xff]
    %v38 = vld [vmem:[#allocation2 + $0x298] sm:$0xff]
    %v39 = vld [vmem:[#allocation2 + $0x2a0] sm:$0xff]
    %v40 = vld [vmem:[#allocation2 + $0x2a8] sm:$0xff]
    %v41 = vld [vmem:[#allocation2 + $0x2b0] sm:$0x1f]
    %v42 = vld [vmem:[#allocation2] sm:$0xff]
    %v43 = vld [vmem:[#allocation2 + $0x8] sm:$0xff]
    %v44 = vld [vmem:[#allocation2 + $0x10] sm:$0xf]
    %v45 = vld [vmem:[#allocation2 + $0x18] sm:$0xff]
    %v46 = vld [vmem:[#allocation2 + $0x20] sm:$0xff]
    %v47 = vld [vmem:[#allocation2 + $0x28] sm:$0xf]
    %vm48 = vcmask 293888
    %v50 = vsel %vm48, %v42, 0
    %v53 = vsel %vm48, %v43, 0
    %v56 = vsel %vm48, %v44, 0
    %vm58 = vcmask 1043456
    %v60 = vsel %vm58, %v31, 0
    %62 = vmatpush.msra.mxu0 0.0
    %63 = vmatpush.msra.mxu0 0.0
    %64 = vmatpush.msra.mxu0 0.0
    %65 = vmatpush.msra.mxu0 0.0
    %66 = vmatpush.msra.mxu0 0.0
    %67 = vmatpush.msra.mxu0 0.0
    %68 = vmatpush.msra.mxu0 0.0
    %69 = vmatpush.msra.mxu0 0.0
    %70 = vmatpush.msra.mxu0 0.0
    %71 = vmatpush.msra.mxu0 0.0
    %72 = vmatpush.msra.mxu0 0.0
    %73 = vmatpush.msra.mxu0 %v60
    %74 = vmatpush.msra.mxu0 %v30
    %75 = vmatpush.msra.mxu0 %v29
    %76 = vmatpush.msra.mxu0 %v28
    %77 = vmatpush.msra.mxu0 %v27
    %78 = vmatmul.f32.gmra.mxu0 %v50
    %v79 = vpop.f32.mrf.mxu0
    %v80 = vadd.f32 %v45, %v79
    %81 = vmatmul.f32.gmra.mxu0 %v53
    %v82 = vpop.f32.mrf.mxu0
    %v83 = vadd.f32 %v46, %v82
    %84 = vmatmul.f32.gmra.mxu0 %v56
    %v85 = vpop.f32.mrf.mxu0
    %v86 = vadd.f32 %v47, %v85
    %87 = vdwg.mxu0
    %v88 = vmax.f32 %v80, 0.0
    %v89 = vmax.f32 %v83, 0.0
    %v90 = vmax.f32 %v86, 0.0
    %94 = vrot.lane.b32.xlu0 %v88, 127
    %v95 = vpop.permute.xlu0 %94
    %96 = vrot.lane.b32.xlu0 %v89, 127
    %v97 = vpop.permute.xlu0 %96
    %98 = vrot.lane.b32.xlu0 %v90, 127
    %v99 = vpop.permute.xlu0 %98
    %v103 = vmax.f32 %v88, %v95
    %v104 = vmax.f32 %v89, %v97
    %v105 = vmax.f32 %v90, %v99
    %106 = vrot.lane.b32.xlu0 %v88, 126
    %v107 = vpop.permute.xlu0 %106
    %108 = vrot.lane.b32.xlu0 %v89, 126
    %v109 = vpop.permute.xlu0 %108
    %110 = vrot.lane.b32.xlu0 %v90, 126
    %v111 = vpop.permute.xlu0 %110
    %v115 = vmax.f32 %v103, %v107
    %v116 = vmax.f32 %v104, %v109
    %v117 = vmax.f32 %v105, %v111
    %118 = vrot.lane.b32.xlu0 %v88, 125
    %v119 = vpop.permute.xlu0 %118
    %120 = vrot.lane.b32.xlu0 %v89, 125
    %v121 = vpop.permute.xlu0 %120
    %122 = vrot.lane.b32.xlu0 %v90, 125
    %v123 = vpop.permute.xlu0 %122
    %v127 = vmax.f32 %v115, %v119
    %v128 = vmax.f32 %v116, %v121
    %v129 = vmax.f32 %v117, %v123
    %vm130 = vcmask 629760
    %v132 = vsel %vm130, %v127, 0
    %v135 = vsel %vm130, %v128, 0
    %v138 = vsel %vm130, %v129, 0
    %vm140 = vcmask 1044480
    %v142 = vsel %vm140, %v41, 0
    %144 = vmatpush.msra.mxu0 0.0
    %145 = vmatpush.msra.mxu0 0.0
    %146 = vmatpush.msra.mxu0 0.0
    %147 = vmatpush.msra.mxu0 0.0
    %148 = vmatpush.msra.mxu0 0.0
    %149 = vmatpush.msra.mxu0 0.0
    %150 = vmatpush.msra.mxu0 %v142
    %151 = vmatpush.msra.mxu0 %v40
    %152 = vmatpush.msra.mxu0 %v39
    %153 = vmatpush.msra.mxu0 %v38
    %154 = vmatpush.msra.mxu0 %v37
    %155 = vmatpush.msra.mxu0 %v36
    %156 = vmatpush.msra.mxu0 %v35
    %157 = vmatpush.msra.mxu0 %v34
    %158 = vmatpush.msra.mxu0 %v33
    %159 = vmatpush.msra.mxu0 %v32
    %160 = vmatmul.f32.gmra.mxu0 %v132
    %v161 = vpop.f32.mrf.mxu0
    %v162 = vadd.f32 0.0, %v161
    %163 = vmatmul.f32.gmra.mxu0 %v135
    %v164 = vpop.f32.mrf.mxu0
    %v165 = vadd.f32 0.0, %v164
    %166 = vmatmul.f32.gmra.mxu0 %v138
    %v167 = vpop.f32.mrf.mxu0
    %v168 = vadd.f32 0.0, %v167
    %169 = vdwg.mxu0
    %v170 = vld [vmem:[#allocation2 + $0x48] sm:$0xff]
    %v171 = vld [vmem:[#allocation2 + $0x50] sm:$0xff]
    %v172 = vld [vmem:[#allocation2 + $0x58] sm:$0xff]
    %v173 = vld [vmem:[#allocation2 + $0x60] sm:$0xff]
    %v174 = vld [vmem:[#allocation2 + $0x68] sm:$0xff]
    %v175 = vld [vmem:[#allocation2 + $0x70] sm:$0xff]
    %v176 = vld [vmem:[#allocation2 + $0x78] sm:$0xff]
    %v177 = vld [vmem:[#allocation2 + $0x80] sm:$0xff]
    %v178 = vld [vmem:[#allocation2 + $0x88] sm:$0xff]
    %v179 = vld [vmem:[#allocation2 + $0x90] sm:$0xff]
    %v180 = vld [vmem:[#allocation2 + $0x98] sm:$0xff]
    %v181 = vld [vmem:[#allocation2 + $0xa0] sm:$0xff]
    %v182 = vld [vmem:[#allocation2 + $0xa8] sm:$0xff]
    %v183 = vld [vmem:[#allocation2 + $0xb0] sm:$0xff]
    %v184 = vld [vmem:[#allocation2 + $0xb8] sm:$0xff]
    %v185 = vld [vmem:[#allocation2 + $0xc0] sm:$0xff]
    %v186 = vld [vmem:[#allocation2 + $0xc8] sm:$0xff]
    %v187 = vld [vmem:[#allocation2 + $0xd0] sm:$0xff]
    %v188 = vld [vmem:[#allocation2 + $0xd8] sm:$0xff]
    %v189 = vld [vmem:[#allocation2 + $0xe0] sm:$0xff]
    %v190 = vld [vmem:[#allocation2 + $0x30] sm:$0xff]
    %v191 = vld [vmem:[#allocation2 + $0x38] sm:$0xff]
    %v192 = vld [vmem:[#allocation2 + $0x40] sm:$0x1f]
    %v193 = vld [vmem:[#allocation2 + $0xe8] sm:$0x1]
    %v194 = vld [vmem:[#allocation2 + $0xe9] sm:$0x1]
    %v195 = vld [vmem:[#allocation2 + $0xea] sm:$0x1]
    %v196 = vld [vmem:[#allocation2 + $0xeb] sm:$0x1]
    %v197 = vld [vmem:[#allocation2 + $0xec] sm:$0x1]
    %v198 = vld [vmem:[#allocation2 + $0xed] sm:$0x1]
    %v199 = vld [vmem:[#allocation2 + $0xee] sm:$0x1]
    %v200 = vld [vmem:[#allocation2 + $0xef] sm:$0x1]
    %v201 = vld [vmem:[#allocation2 + $0xf0] sm:$0x1]
    %v202 = vld [vmem:[#allocation2 + $0xf8] sm:$0xff]
    %v203 = vld [vmem:[#allocation2 + $0x100] sm:$0xff]
    %v204 = vld [vmem:[#allocation2 + $0x108] sm:$0x1f]
    %v205 = vld [vmem:[#allocation2 + $0x110] sm:$0xff]
    %v206 = vld [vmem:[#allocation2 + $0x118] sm:$0x3]
    %vm207 = vcmask 162816
    %v209 = vsel %vm207, %v202, 0
    %v212 = vsel %vm207, %v203, 0
    %v215 = vsel %vm207, %v204, 0
    %v218 = vsel %vm58, %v168, 0
    %220 = vmatpush.msra.mxu0 0.0
    %221 = vmatpush.msra.mxu0 0.0
    %222 = vmatpush.msra.mxu0 0.0
    %223 = vmatpush.msra.mxu0 0.0
    %224 = vmatpush.msra.mxu0 0.0
    %225 = vmatpush.msra.mxu0 0.0
    %226 = vmatpush.msra.mxu0 0.0
    %227 = vmatpush.msra.mxu0 0.0
    %228 = vmatpush.msra.mxu0 0.0
    %229 = vmatpush.msra.mxu0 0.0
    %230 = vmatpush.msra.mxu0 0.0
    %231 = vmatpush.msra.mxu0 0.0
    %232 = vmatpush.msra.mxu0 0.0
    %233 = vmatpush.msra.mxu0 %v218
    %234 = vmatpush.msra.mxu0 %v165
    %235 = vmatpush.msra.mxu0 %v162
    %236 = vmatmul.f32.gmra.mxu0 %v209
    %v237 = vpop.f32.mrf.mxu0
    %v238 = vadd.f32 0.0, %v237
    %239 = vmatmul.f32.gmra.mxu0 %v212
    %v240 = vpop.f32.mrf.mxu0
    %v241 = vadd.f32 0.0, %v240
    %242 = vmatmul.f32.gmra.mxu0 %v215
    %v243 = vpop.f32.mrf.mxu0
    %v244 = vadd.f32 0.0, %v243
    %245 = vdwg.mxu0
    %vm246 = vcmask 80896
    %v248 = vsel %vm246, %v238, 0
    %v251 = vsel %vm246, %v241, 0
    %v254 = vsel %vm246, %v244, 0
    %vm256 = vcmask 1041408
    %v258 = vsel %vm256, %v206, 0
    %260 = vmatpush.msra.mxu0 0.0
    %261 = vmatpush.msra.mxu0 0.0
    %262 = vmatpush.msra.mxu0 0.0
    %263 = vmatpush.msra.mxu0 0.0
    %264 = vmatpush.msra.mxu0 0.0
    %265 = vmatpush.msra.mxu0 0.0
    %266 = vmatpush.msra.mxu0 0.0
    %267 = vmatpush.msra.mxu0 0.0
    %268 = vmatpush.msra.mxu0 0.0
    %269 = vmatpush.msra.mxu0 0.0
    %270 = vmatpush.msra.mxu0 0.0
    %271 = vmatpush.msra.mxu0 0.0
    %272 = vmatpush.msra.mxu0 0.0
    %273 = vmatpush.msra.mxu0 0.0
    %274 = vmatpush.msra.mxu0 %v258
    %275 = vmatpush.msra.mxu0 %v205
    %276 = vmatmul.f32.gmra.mxu0 %v248
    %v277 = vpop.f32.mrf.mxu0
    %v278 = vadd.f32 0.0, %v277
    %279 = vmatmul.f32.gmra.mxu0 %v251
    %v280 = vpop.f32.mrf.mxu0
    %v281 = vadd.f32 0.0, %v280
    %282 = vmatmul.f32.gmra.mxu0 %v254
    %v283 = vpop.f32.mrf.mxu0
    %v284 = vadd.f32 0.0, %v283
    %285 = vdwg.mxu0
    %v286 = vadd.f32 %v190, %v278
    %v287 = vadd.f32 %v191, %v281
    %v288 = vadd.f32 %v192, %v284
    %vm289 = vcmask 261120
    %v290 = vsel %vm289, %v286, 0.0
    %291 = vadd.xlane.f32.xlu0 %v290
    %v292 = vpop.xlane.xlu0 %291
    %v293 = vsel %vm289, %v287, 0.0
    %294 = vadd.xlane.f32.xlu0 %v293
    %v295 = vpop.xlane.xlu0 %294
    %vm296 = vcmask 258048
    %v297 = vsel %vm296, %v288, 0.0
    %298 = vadd.xlane.f32.xlu0 %v297
    %v299 = vpop.xlane.xlu0 %298
    %v300 = vrcp.pop 32.0
    %v301 = vmul.f32 32.0, %v300
    %v302 = vsub.f32 1.0, %v301
    %v303 = vmul.f32 %v300, %v302
    %v304 = vadd.f32 %v300, %v303
    %vm305 = vweird.f32 %v300
    %v306 = vsel %vm305, %v300, %v304
    %v307 = vmul.f32 %v292, %v306
    %v308 = vmul.f32 %v295, %v306
    %v309 = vmul.f32 %v299, %v306
    %v310 = vsub.f32 %v286, %v307
    %v311 = vsub.f32 %v287, %v308
    %v312 = vsub.f32 %v288, %v309
    %v313 = vmul.f32 %v310, %v310
    %v314 = vmul.f32 %v311, %v311
    %v315 = vmul.f32 %v312, %v312
    %v316 = vsel %vm289, %v313, 0.0
    %317 = vadd.xlane.f32.xlu0 %v316
    %v318 = vpop.xlane.xlu0 %317
    %v319 = vsel %vm289, %v314, 0.0
    %320 = vadd.xlane.f32.xlu0 %v319
    %v321 = vpop.xlane.xlu0 %320
    %v322 = vsel %vm296, %v315, 0.0
    %323 = vadd.xlane.f32.xlu0 %v322
    %v324 = vpop.xlane.xlu0 %323
    %v325 = vmul.f32 %v318, %v306
    %v326 = vmul.f32 %v321, %v306
    %v327 = vmul.f32 %v324, %v306
    %v328 = vadd.f32 %v325, 1e-05
    %v329 = vadd.f32 %v326, 1e-05
    %v330 = vadd.f32 %v327, 1e-05
    %v331 = vrsqrt.pop %v328
    %v332 = vmul.f32 %v331, %v328
    %v333 = vmul.f32 %v332, %v331
    %v334 = vmul.f32 0.5, %v333
    %v335 = vsub.f32 1.5, %v334
    %v336 = vmul.f32 %v331, %v335
    %vm337 = vweird.f32 %v328
    %vm338 = vweird.f32 %v331
    %vm339 = vmor %vm337, %vm338
    %v340 = vsel %vm339, %v331, %v336
    %v341 = vrsqrt.pop %v329
    %v342 = vmul.f32 %v341, %v329
    %v343 = vmul.f32 %v342, %v341
    %v344 = vmul.f32 0.5, %v343
    %v345 = vsub.f32 1.5, %v344
    %v346 = vmul.f32 %v341, %v345
    %vm347 = vweird.f32 %v329
    %vm348 = vweird.f32 %v341
    %vm349 = vmor %vm347, %vm348
    %v350 = vsel %vm349, %v341, %v346
    %v351 = vrsqrt.pop %v330
    %v352 = vmul.f32 %v351, %v330
    %v353 = vmul.f32 %v352, %v351
    %v354 = vmul.f32 0.5, %v353
    %v355 = vsub.f32 1.5, %v354
    %v356 = vmul.f32 %v351, %v355
    %vm357 = vweird.f32 %v330
    %vm358 = vweird.f32 %v351
    %vm359 = vmor %vm357, %vm358
    %v360 = vsel %vm359, %v351, %v356
    %v361 = vmul.f32 %v310, %v340
    %v362 = vmul.f32 %v311, %v350
    %v363 = vmul.f32 %v312, %v360
    %v364 = vperm.slane %v193, 0
    %v365 = vmul.f32 %v361, %v364
    %v366 = vmul.f32 %v362, %v364
    %v367 = vmul.f32 %v363, %v364
    %v368 = vperm.slane %v194, 0
    %v369 = vadd.f32 %v365, %v368
    %v370 = vadd.f32 %v366, %v368
    %v371 = vadd.f32 %v367, %v368
    %v373 = vsel %vm289, %v369, 0
    %v376 = vsel %vm289, %v370, 0
    %v379 = vsel %vm289, %v371, 0
    %381 = vmatpush.msra.mxu0 0.0
    %382 = vmatpush.msra.mxu0 0.0
    %383 = vmatpush.msra.mxu0 0.0
    %384 = vmatpush.msra.mxu0 0.0
    %385 = vmatpush.msra.mxu0 0.0
    %386 = vmatpush.msra.mxu0 0.0
    %387 = vmatpush.msra.mxu0 0.0
    %388 = vmatpush.msra.mxu0 0.0
    %389 = vmatpush.msra.mxu0 0.0
    %390 = vmatpush.msra.mxu0 0.0
    %391 = vmatpush.msra.mxu0 0.0
    %392 = vmatpush.msra.mxu0 0.0
    %393 = vmatpush.msra.mxu0 %v173
    %394 = vmatpush.msra.mxu0 %v172
    %395 = vmatpush.msra.mxu0 %v171
    %396 = vmatpush.msra.mxu0 %v170
    %397 = vmatmul.f32.gmra.mxu0 %v373
    %v398 = vpop.f32.mrf.mxu0
    %v399 = vadd.f32 0.0, %v398
    %400 = vmatmul.f32.gmra.mxu0 %v376
    %v401 = vpop.f32.mrf.mxu0
    %v402 = vadd.f32 0.0, %v401
    %403 = vmatmul.f32.gmra.mxu0 %v379
    %v404 = vpop.f32.mrf.mxu0
    %v405 = vadd.f32 0.0, %v404
    %406 = vdwg.mxu0
    %410 = vrot.lane.b32.xlu0 %v399, 96
    %v411 = vpop.permute.xlu0 %410
    %412 = vrot.lane.b32.xlu0 %v402, 96
    %v413 = vpop.permute.xlu0 %412
    %414 = vrot.lane.b32.xlu0 %v405, 96
    %v415 = vpop.permute.xlu0 %414
    %vm416 = vcmask 64512
    %v417 = vsel %vm416, %v399, 0
    %v419 = vsel %vm416, %v402, 0
    %v421 = vsel %vm416, %v405, 0
    %v423 = vsel %vm416, %v411, 0
    %v425 = vsel %vm416, %v413, 0
    %v427 = vsel %vm416, %v415, 0
    %429 = vmatpush.xpose.msra.mxu0 0.0
    %430 = vmatpush.xpose.msra.mxu0 0.0
    %431 = vmatpush.xpose.msra.mxu0 0.0
    %432 = vmatpush.xpose.msra.mxu0 0.0
    %433 = vmatpush.xpose.msra.mxu0 0.0
    %434 = vmatpush.xpose.msra.mxu0 0.0
    %435 = vmatpush.xpose.msra.mxu0 0.0
    %436 = vmatpush.xpose.msra.mxu0 0.0
    %437 = vmatpush.xpose.msra.mxu0 0.0
    %438 = vmatpush.xpose.msra.mxu0 0.0
    %439 = vmatpush.xpose.msra.mxu0 0.0
    %440 = vmatpush.xpose.msra.mxu0 0.0
    %441 = vmatpush.xpose.msra.mxu0 0.0
    %442 = vmatpush.xpose.msra.mxu0 %v427
    %443 = vmatpush.xpose.msra.mxu0 %v425
    %444 = vmatpush.xpose.msra.mxu0 %v423
    %445 = vmatmul.f32.gmra.mxu0 %v417
    %v446 = vpop.f32.mrf.mxu0
    %v447 = vadd.f32 0.0, %v446
    %448 = vmatmul.f32.gmra.mxu0 %v419
    %v449 = vpop.f32.mrf.mxu0
    %v450 = vadd.f32 0.0, %v449
    %451 = vmatmul.f32.gmra.mxu0 %v421
    %v452 = vpop.f32.mrf.mxu0
    %v453 = vadd.f32 0.0, %v452
    %454 = vdwg.mxu0
    %vm455 = vcmask 171008
    %v456 = vsel %vm455, %v447, -inf
    %457 = vmax.xlane.f32.xlu0 %v456
    %v458 = vpop.xlane.xlu0 %457
    %v459 = vsel %vm455, %v450, -inf
    %460 = vmax.xlane.f32.xlu0 %v459
    %v461 = vpop.xlane.xlu0 %460
    %vm462 = vcmask 167936
    %v463 = vsel %vm462, %v453, -inf
    %464 = vmax.xlane.f32.xlu0 %v463
    %v465 = vpop.xlane.xlu0 %464
    %v466 = vsub.f32 %v447, %v458
    %v467 = vsub.f32 %v450, %v461
    %v468 = vsub.f32 %v453, %v465
    %v469 = vmul.f32 %v466, 1.442695
    %v470 = vpow.pop %v469
    %v471 = vmul.f32 %v467, 1.442695
    %v472 = vpow.pop %v471
    %v473 = vmul.f32 %v468, 1.442695
    %v474 = vpow.pop %v473
    %v475 = vsel %vm455, %v470, 0.0
    %476 = vadd.xlane.f32.xlu0 %v475
    %v477 = vpop.xlane.xlu0 %476
    %v478 = vsel %vm455, %v472, 0.0
    %479 = vadd.xlane.f32.xlu0 %v478
    %v480 = vpop.xlane.xlu0 %479
    %v481 = vsel %vm462, %v474, 0.0
    %482 = vadd.xlane.f32.xlu0 %v481
    %v483 = vpop.xlane.xlu0 %482
    %v484 = vrcp.pop %v477
    %v485 = vrcp.pop %v480
    %v486 = vrcp.pop %v483
    %v487 = vmul.f32 %v470, %v484
    %v488 = vmul.f32 %v472, %v485
    %v489 = vmul.f32 %v474, %v486
    %490 = vrot.lane.b32.xlu0 %v399, 64
    %v491 = vpop.permute.xlu0 %490
    %492 = vrot.lane.b32.xlu0 %v402, 64
    %v493 = vpop.permute.xlu0 %492
    %494 = vrot.lane.b32.xlu0 %v405, 64
    %v495 = vpop.permute.xlu0 %494
    %v499 = vsel %vm455, %v487, 0
    %v502 = vsel %vm455, %v488, 0
    %v505 = vsel %vm455, %v489, 0
    %v507 = vsel %vm140, %v495, 0
    %509 = vmatpush.msra.mxu0 0.0
    %510 = vmatpush.msra.mxu0 0.0
    %511 = vmatpush.msra.mxu0 0.0
    %512 = vmatpush.msra.mxu0 0.0
    %513 = vmatpush.msra.mxu0 0.0
    %514 = vmatpush.msra.mxu0 0.0
    %515 = vmatpush.msra.mxu0 0.0
    %516 = vmatpush.msra.mxu0 0.0
    %517 = vmatpush.msra.mxu0 0.0
    %518 = vmatpush.msra.mxu0 0.0
    %519 = vmatpush.msra.mxu0 0.0
    %520 = vmatpush.msra.mxu0 0.0
    %521 = vmatpush.msra.mxu0 0.0
    %522 = vmatpush.msra.mxu0 %v507
    %523 = vmatpush.msra.mxu0 %v493
    %524 = vmatpush.msra.mxu0 %v491
    %525 = vmatmul.f32.gmra.mxu0 %v499
    %v526 = vpop.f32.mrf.mxu0
    %v527 = vadd.f32 0.0, %v526
    %528 = vmatmul.f32.gmra.mxu0 %v502
    %v529 = vpop.f32.mrf.mxu0
    %v530 = vadd.f32 0.0, %v529
    %531 = vmatmul.f32.gmra.mxu0 %v505
    %v532 = vpop.f32.mrf.mxu0
    %v533 = vadd.f32 0.0, %v532
    %534 = vdwg.mxu0
    %v536 = vsel %vm416, %v527, 0
    %v539 = vsel %vm416, %v530, 0
    %v542 = vsel %vm416, %v533, 0
    %544 = vmatpush.msra.mxu0 0.0
    %545 = vmatpush.msra.mxu0 0.0
    %546 = vmatpush.msra.mxu0 0.0
    %547 = vmatpush.msra.mxu0 0.0
    %548 = vmatpush.msra.mxu0 0.0
    %549 = vmatpush.msra.mxu0 0.0
    %550 = vmatpush.msra.mxu0 0.0
    %551 = vmatpush.msra.mxu0 0.0
    %552 = vmatpush.msra.mxu0 0.0
    %553 = vmatpush.msra.mxu0 0.0
    %554 = vmatpush.msra.mxu0 0.0
    %555 = vmatpush.msra.mxu0 0.0
    %556 = vmatpush.msra.mxu0 0.0
    %557 = vmatpush.msra.mxu0 0.0
    %558 = vmatpush.msra.mxu0 0.0
    %559 = vmatpush.msra.mxu0 %v174
    %560 = vmatmul.f32.gmra.mxu0 %v536
    %v561 = vpop.f32.mrf.mxu0
    %v562 = vadd.f32 0.0, %v561
    %563 = vmatmul.f32.gmra.mxu0 %v539
    %v564 = vpop.f32.mrf.mxu0
    %v565 = vadd.f32 0.0, %v564
    %566 = vmatmul.f32.gmra.mxu0 %v542
    %v567 = vpop.f32.mrf.mxu0
    %v568 = vadd.f32 0.0, %v567
    %569 = vdwg.mxu0
    %v570 = vadd.f32 %v286, %v562
    %v571 = vadd.f32 %v287, %v565
    %v572 = vadd.f32 %v288, %v568
    %573 = vrot.lane.b32.xlu0 %v399, 120
    %v574 = vpop.permute.xlu0 %573
    %575 = vrot.lane.b32.xlu0 %v402, 120
    %v576 = vpop.permute.xlu0 %575
    %577 = vrot.lane.b32.xlu0 %v405, 120
    %v578 = vpop.permute.xlu0 %577
    %579 = vrot.lane.b32.xlu0 %v399, 88
    %v580 = vpop.permute.xlu0 %579
    %581 = vrot.lane.b32.xlu0 %v402, 88
    %v582 = vpop.permute.xlu0 %581
    %583 = vrot.lane.b32.xlu0 %v405, 88
    %v584 = vpop.permute.xlu0 %583
    %v585 = vsel %vm416, %v574, 0
    %v587 = vsel %vm416, %v576, 0
    %v589 = vsel %vm416, %v578, 0
    %v591 = vsel %vm416, %v580, 0
    %v593 = vsel %vm416, %v582, 0
    %v595 = vsel %vm416, %v584, 0
    %597 = vmatpush.xpose.msra.mxu0 0.0
    %598 = vmatpush.xpose.msra.mxu0 0.0
    %599 = vmatpush.xpose.msra.mxu0 0.0
    %600 = vmatpush.xpose.msra.mxu0 0.0
    %601 = vmatpush.xpose.msra.mxu0 0.0
    %602 = vmatpush.xpose.msra.mxu0 0.0
    %603 = vmatpush.xpose.msra.mxu0 0.0
    %604 = vmatpush.xpose.msra.mxu0 0.0
    %605 = vmatpush.xpose.msra.mxu0 0.0
    %606 = vmatpush.xpose.msra.mxu0 0.0
    %607 = vmatpush.xpose.msra.mxu0 0.0
    %608 = vmatpush.xpose.msra.mxu0 0.0
    %609 = vmatpush.xpose.msra.mxu0 0.0
    %610 = vmatpush.xpose.msra.mxu0 %v595
    %611 = vmatpush.xpose.msra.mxu0 %v593
    %612 = vmatpush.xpose.msra.mxu0 %v591
    %613 = vmatmul.f32.gmra.mxu0 %v585
    %v614 = vpop.f32.mrf.mxu0
    %v615 = vadd.f32 0.0, %v614
    %616 = vmatmul.f32.gmra.mxu0 %v587
    %v617 = vpop.f32.mrf.mxu0
    %v618 = vadd.f32 0.0, %v617
    %619 = vmatmul.f32.gmra.mxu0 %v589
    %v620 = vpop.f32.mrf.mxu0
    %v621 = vadd.f32 0.0, %v620
    %622 = vdwg.mxu0
    %v623 = vsel %vm455, %v615, -inf
    %624 = vmax.xlane.f32.xlu0 %v623
    %v625 = vpop.xlane.xlu0 %624
    %v626 = vsel %vm455, %v618, -inf
    %627 = vmax.xlane.f32.xlu0 %v626
    %v628 = vpop.xlane.xlu0 %627
    %v629 = vsel %vm462, %v621, -inf
    %630 = vmax.xlane.f32.xlu0 %v629
    %v631 = vpop.xlane.xlu0 %630
    %v632 = vsub.f32 %v615, %v625
    %v633 = vsub.f32 %v618, %v628
    %v634 = vsub.f32 %v621, %v631
    %v635 = vmul.f32 %v632, 1.442695
    %v636 = vpow.pop %v635
    %v637 = vmul.f32 %v633, 1.442695
    %v638 = vpow.pop %v637
    %v639 = vmul.f32 %v634, 1.442695
    %v640 = vpow.pop %v639
    %v641 = vsel %vm455, %v636, 0.0
    %642 = vadd.xlane.f32.xlu0 %v641
    %v643 = vpop.xlane.xlu0 %642
    %v644 = vsel %vm455, %v638, 0.0
    %645 = vadd.xlane.f32.xlu0 %v644
    %v646 = vpop.xlane.xlu0 %645
    %v647 = vsel %vm462, %v640, 0.0
    %648 = vadd.xlane.f32.xlu0 %v647
    %v649 = vpop.xlane.xlu0 %648
    %v650 = vrcp.pop %v643
    %v651 = vrcp.pop %v646
    %v652 = vrcp.pop %v649
    %v653 = vmul.f32 %v636, %v650
    %v654 = vmul.f32 %v638, %v651
    %v655 = vmul.f32 %v640, %v652
    %656 = vrot.lane.b32.xlu0 %v399, 56
    %v657 = vpop.permute.xlu0 %656
    %658 = vrot.lane.b32.xlu0 %v402, 56
    %v659 = vpop.permute.xlu0 %658
    %660 = vrot.lane.b32.xlu0 %v405, 56
    %v661 = vpop.permute.xlu0 %660
    %v665 = vsel %vm455, %v653, 0
    %v668 = vsel %vm455, %v654, 0
    %v671 = vsel %vm455, %v655, 0
    %v673 = vsel %vm140, %v661, 0
    %675 = vmatpush.msra.mxu0 0.0
    %676 = vmatpush.msra.mxu0 0.0
    %677 = vmatpush.msra.mxu0 0.0
    %678 = vmatpush.msra.mxu0 0.0
    %679 = vmatpush.msra.mxu0 0.0
    %680 = vmatpush.msra.mxu0 0.0
    %681 = vmatpush.msra.mxu0 0.0
    %682 = vmatpush.msra.mxu0 0.0
    %683 = vmatpush.msra.mxu0 0.0
    %684 = vmatpush.msra.mxu0 0.0
    %685 = vmatpush.msra.mxu0 0.0
    %686 = vmatpush.msra.mxu0 0.0
    %687 = vmatpush.msra.mxu0 0.0
    %688 = vmatpush.msra.mxu0 %v673
    %689 = vmatpush.msra.mxu0 %v659
    %690 = vmatpush.msra.mxu0 %v657
    %691 = vmatmul.f32.gmra.mxu0 %v665
    %v692 = vpop.f32.mrf.mxu0
    %v693 = vadd.f32 0.0, %v692
    %694 = vmatmul.f32.gmra.mxu0 %v668
    %v695 = vpop.f32.mrf.mxu0
    %v696 = vadd.f32 0.0, %v695
    %697 = vmatmul.f32.gmra.mxu0 %v671
    %v698 = vpop.f32.mrf.mxu0
    %v699 = vadd.f32 0.0, %v698
    %700 = vdwg.mxu0
    %v702 = vsel %vm416, %v693, 0
    %v705 = vsel %vm416, %v696, 0
    %v708 = vsel %vm416, %v699, 0
    %710 = vmatpush.msra.mxu0 0.0
    %711 = vmatpush.msra.mxu0 0.0
    %712 = vmatpush.msra.mxu0 0.0
    %713 = vmatpush.msra.mxu0 0.0
    %714 = vmatpush.msra.mxu0 0.0
    %715 = vmatpush.msra.mxu0 0.0
    %716 = vmatpush.msra.mxu0 0.0
    %717 = vmatpush.msra.mxu0 0.0
    %718 = vmatpush.msra.mxu0 0.0
    %719 = vmatpush.msra.mxu0 0.0
    %720 = vmatpush.msra.mxu0 0.0
    %721 = vmatpush.msra.mxu0 0.0
    %722 = vmatpush.msra.mxu0 0.0
    %723 = vmatpush.msra.mxu0 0.0
    %724 = vmatpush.msra.mxu0 0.0
    %725 = vmatpush.msra.mxu0 %v175
    %726 = vmatmul.f32.gmra.mxu0 %v702
    %v727 = vpop.f32.mrf.mxu0
    %v728 = vadd.f32 0.0, %v727
    %729 = vmatmul.f32.gmra.mxu0 %v705
    %v730 = vpop.f32.mrf.mxu0
    %v731 = vadd.f32 0.0, %v730
    %732 = vmatmul.f32.gmra.mxu0 %v708
    %v733 = vpop.f32.mrf.mxu0
    %v734 = vadd.f32 0.0, %v733
    %735 = vdwg.mxu0
    %v736 = vadd.f32 %v570, %v728
    %v737 = vadd.f32 %v571, %v731
    %v738 = vadd.f32 %v572, %v734
    %739 = vrot.lane.b32.xlu0 %v399, 112
    %v740 = vpop.permute.xlu0 %739
    %741 = vrot.lane.b32.xlu0 %v402, 112
    %v742 = vpop.permute.xlu0 %741
    %743 = vrot.lane.b32.xlu0 %v405, 112
    %v744 = vpop.permute.xlu0 %743
    %745 = vrot.lane.b32.xlu0 %v399, 80
    %v746 = vpop.permute.xlu0 %745
    %747 = vrot.lane.b32.xlu0 %v402, 80
    %v748 = vpop.permute.xlu0 %747
    %749 = vrot.lane.b32.xlu0 %v405, 80
    %v750 = vpop.permute.xlu0 %749
    %v751 = vsel %vm416, %v740, 0
    %v753 = vsel %vm416, %v742, 0
    %v755 = vsel %vm416, %v744, 0
    %v757 = vsel %vm416, %v746, 0
    %v759 = vsel %vm416, %v748, 0
    %v761 = vsel %vm416, %v750, 0
    %763 = vmatpush.xpose.msra.mxu0 0.0
    %764 = vmatpush.xpose.msra.mxu0 0.0
    %765 = vmatpush.xpose.msra.mxu0 0.0
    %766 = vmatpush.xpose.msra.mxu0 0.0
    %767 = vmatpush.xpose.msra.mxu0 0.0
    %768 = vmatpush.xpose.msra.mxu0 0.0
    %769 = vmatpush.xpose.msra.mxu0 0.0
    %770 = vmatpush.xpose.msra.mxu0 0.0
    %771 = vmatpush.xpose.msra.mxu0 0.0
    %772 = vmatpush.xpose.msra.mxu0 0.0
    %773 = vmatpush.xpose.msra.mxu0 0.0
    %774 = vmatpush.xpose.msra.mxu0 0.0
    %775 = vmatpush.xpose.msra.mxu0 0.0
    %776 = vmatpush.xpose.msra.mxu0 %v761
    %777 = vmatpush.xpose.msra.mxu0 %v759
    %778 = vmatpush.xpose.msra.mxu0 %v757
    %779 = vmatmul.f32.gmra.mxu0 %v751
    %v780 = vpop.f32.mrf.mxu0
    %v781 = vadd.f32 0.0, %v780
    %782 = vmatmul.f32.gmra.mxu0 %v753
    %v783 = vpop.f32.mrf.mxu0
    %v784 = vadd.f32 0.0, %v783
    %785 = vmatmul.f32.gmra.mxu0 %v755
    %v786 = vpop.f32.mrf.mxu0
    %v787 = vadd.f32 0.0, %v786
    %788 = vdwg.mxu0
    %v789 = vsel %vm455, %v781, -inf
    %790 = vmax.xlane.f32.xlu0 %v789
    %v791 = vpop.xlane.xlu0 %790
    %v792 = vsel %vm455, %v784, -inf
    %793 = vmax.xlane.f32.xlu0 %v792
    %v794 = vpop.xlane.xlu0 %793
    %v795 = vsel %vm462, %v787, -inf
    %796 = vmax.xlane.f32.xlu0 %v795
    %v797 = vpop.xlane.xlu0 %796
    %v798 = vsub.f32 %v781, %v791
    %v799 = vsub.f32 %v784, %v794
    %v800 = vsub.f32 %v787, %v797
    %v801 = vmul.f32 %v798, 1.442695
    %v802 = vpow.pop %v801
    %v803 = vmul.f32 %v799, 1.442695
    %v804 = vpow.pop %v803
    %v805 = vmul.f32 %v800, 1.442695
    %v806 = vpow.pop %v805
    %v807 = vsel %vm455, %v802, 0.0
    %808 = vadd.xlane.f32.xlu0 %v807
    %v809 = vpop.xlane.xlu0 %808
    %v810 = vsel %vm455, %v804, 0.0
    %811 = vadd.xlane.f32.xlu0 %v810
    %v812 = vpop.xlane.xlu0 %811
    %v813 = vsel %vm462, %v806, 0.0
    %814 = vadd.xlane.f32.xlu0 %v813
    %v815 = vpop.xlane.xlu0 %814
    %v816 = vrcp.pop %v809
    %v817 = vrcp.pop %v812
    %v818 = vrcp.pop %v815
    %v819 = vmul.f32 %v802, %v816
    %v820 = vmul.f32 %v804, %v817
    %v821 = vmul.f32 %v806, %v818
    %822 = vrot.lane.b32.xlu0 %v399, 48
    %v823 = vpop.permute.xlu0 %822
    %824 = vrot.lane.b32.xlu0 %v402, 48
    %v825 = vpop.permute.xlu0 %824
    %826 = vrot.lane.b32.xlu0 %v405, 48
    %v827 = vpop.permute.xlu0 %826
    %v831 = vsel %vm455, %v819, 0
    %v834 = vsel %vm455, %v820, 0
    %v837 = vsel %vm455, %v821, 0
    %v839 = vsel %vm140, %v827, 0
    %841 = vmatpush.msra.mxu0 0.0
    %842 = vmatpush.msra.mxu0 0.0
    %843 = vmatpush.msra.mxu0 0.0
    %844 = vmatpush.msra.mxu0 0.0
    %845 = vmatpush.msra.mxu0 0.0
    %846 = vmatpush.msra.mxu0 0.0
    %847 = vmatpush.msra.mxu0 0.0
    %848 = vmatpush.msra.mxu0 0.0
    %849 = vmatpush.msra.mxu0 0.0
    %850 = vmatpush.msra.mxu0 0.0
    %851 = vmatpush.msra.mxu0 0.0
    %852 = vmatpush.msra.mxu0 0.0
    %853 = vmatpush.msra.mxu0 0.0
    %854 = vmatpush.msra.mxu0 %v839
    %855 = vmatpush.msra.mxu0 %v825
    %856 = vmatpush.msra.mxu0 %v823
    %857 = vmatmul.f32.gmra.mxu0 %v831
    %v858 = vpop.f32.mrf.mxu0
    %v859 = vadd.f32 0.0, %v858
    %860 = vmatmul.f32.gmra.mxu0 %v834
    %v861 = vpop.f32.mrf.mxu0
    %v862 = vadd.f32 0.0, %v861
    %863 = vmatmul.f32.gmra.mxu0 %v837
    %v864 = vpop.f32.mrf.mxu0
    %v865 = vadd.f32 0.0, %v864
    %866 = vdwg.mxu0
    %v868 = vsel %vm416, %v859, 0
    %v871 = vsel %vm416, %v862, 0
    %v874 = vsel %vm416, %v865, 0
    %876 = vmatpush.msra.mxu0 0.0
    %877 = vmatpush.msra.mxu0 0.0
    %878 = vmatpush.msra.mxu0 0.0
    %879 = vmatpush.msra.mxu0 0.0
    %880 = vmatpush.msra.mxu0 0.0
    %881 = vmatpush.msra.mxu0 0.0
    %882 = vmatpush.msra.mxu0 0.0
    %883 = vmatpush.msra.mxu0 0.0
    %884 = vmatpush.msra.mxu0 0.0
    %885 = vmatpush.msra.mxu0 0.0
    %886 = vmatpush.msra.mxu0 0.0
    %887 = vmatpush.msra.mxu0 0.0
    %888 = vmatpush.msra.mxu0 0.0
    %889 = vmatpush.msra.mxu0 0.0
    %890 = vmatpush.msra.mxu0 0.0
    %891 = vmatpush.msra.mxu0 %v176
    %892 = vmatmul.f32.gmra.mxu0 %v868
    %v893 = vpop.f32.mrf.mxu0
    %v894 = vadd.f32 0.0, %v893
    %895 = vmatmul.f32.gmra.mxu0 %v871
    %v896 = vpop.f32.mrf.mxu0
    %v897 = vadd.f32 0.0, %v896
    %898 = vmatmul.f32.gmra.mxu0 %v874
    %v899 = vpop.f32.mrf.mxu0
    %v900 = vadd.f32 0.0, %v899
    %901 = vdwg.mxu0
    %v902 = vadd.f32 %v736, %v894
    %v903 = vadd.f32 %v737, %v897
    %v904 = vadd.f32 %v738, %v900
    %905 = vrot.lane.b32.xlu0 %v399, 104
    %v906 = vpop.permute.xlu0 %905
    %907 = vrot.lane.b32.xlu0 %v402, 104
    %v908 = vpop.permute.xlu0 %907
    %909 = vrot.lane.b32.xlu0 %v405, 104
    %v910 = vpop.permute.xlu0 %909
    %911 = vrot.lane.b32.xlu0 %v399, 72
    %v912 = vpop.permute.xlu0 %911
    %913 = vrot.lane.b32.xlu0 %v402, 72
    %v914 = vpop.permute.xlu0 %913
    %915 = vrot.lane.b32.xlu0 %v405, 72
    %v916 = vpop.permute.xlu0 %915
    %v917 = vsel %vm416, %v906, 0
    %v919 = vsel %vm416, %v908, 0
    %v921 = vsel %vm416, %v910, 0
    %v923 = vsel %vm416, %v912, 0
    %v925 = vsel %vm416, %v914, 0
    %v927 = vsel %vm416, %v916, 0
    %929 = vmatpush.xpose.msra.mxu0 0.0
    %930 = vmatpush.xpose.msra.mxu0 0.0
    %931 = vmatpush.xpose.msra.mxu0 0.0
    %932 = vmatpush.xpose.msra.mxu0 0.0
    %933 = vmatpush.xpose.msra.mxu0 0.0
    %934 = vmatpush.xpose.msra.mxu0 0.0
    %935 = vmatpush.xpose.msra.mxu0 0.0
    %936 = vmatpush.xpose.msra.mxu0 0.0
    %937 = vmatpush.xpose.msra.mxu0 0.0
    %938 = vmatpush.xpose.msra.mxu0 0.0
    %939 = vmatpush.xpose.msra.mxu0 0.0
    %940 = vmatpush.xpose.msra.mxu0 0.0
    %941 = vmatpush.xpose.msra.mxu0 0.0
    %942 = vmatpush.xpose.msra.mxu0 %v927
    %943 = vmatpush.xpose.msra.mxu0 %v925
    %944 = vmatpush.xpose.msra.mxu0 %v923
    %945 = vmatmul.f32.gmra.mxu0 %v917
    %v946 = vpop.f32.mrf.mxu0
    %v947 = vadd.f32 0.0, %v946
    %948 = vmatmul.f32.gmra.mxu0 %v919
    %v949 = vpop.f32.mrf.mxu0
    %v950 = vadd.f32 0.0, %v949
    %951 = vmatmul.f32.gmra.mxu0 %v921
    %v952 = vpop.f32.mrf.mxu0
    %v953 = vadd.f32 0.0, %v952
    %954 = vdwg.mxu0
    %v955 = vsel %vm455, %v947, -inf
    %956 = vmax.xlane.f32.xlu0 %v955
    %v957 = vpop.xlane.xlu0 %956
    %v958 = vsel %vm455, %v950, -inf
    %959 = vmax.xlane.f32.xlu0 %v958
    %v960 = vpop.xlane.xlu0 %959
    %v961 = vsel %vm462, %v953, -inf
    %962 = vmax.xlane.f32.xlu0 %v961
    %v963 = vpop.xlane.xlu0 %962
    %v964 = vsub.f32 %v947, %v957
    %v965 = vsub.f32 %v950, %v960
    %v966 = vsub.f32 %v953, %v963
    %v967 = vmul.f32 %v964, 1.442695
    %v968 = vpow.pop %v967
    %v969 = vmul.f32 %v965, 1.442695
    %v970 = vpow.pop %v969
    %v971 = vmul.f32 %v966, 1.442695
    %v972 = vpow.pop %v971
    %v973 = vsel %vm455, %v968, 0.0
    %974 = vadd.xlane.f32.xlu0 %v973
    %v975 = vpop.xlane.xlu0 %974
    %v976 = vsel %vm455, %v970, 0.0
    %977 = vadd.xlane.f32.xlu0 %v976
    %v978 = vpop.xlane.xlu0 %977
    %v979 = vsel %vm462, %v972, 0.0
    %980 = vadd.xlane.f32.xlu0 %v979
    %v981 = vpop.xlane.xlu0 %980
    %v982 = vrcp.pop %v975
    %v983 = vrcp.pop %v978
    %v984 = vrcp.pop %v981
    %v985 = vmul.f32 %v968, %v982
    %v986 = vmul.f32 %v970, %v983
    %v987 = vmul.f32 %v972, %v984
    %988 = vrot.lane.b32.xlu0 %v399, 40
    %v989 = vpop.permute.xlu0 %988
    %990 = vrot.lane.b32.xlu0 %v402, 40
    %v991 = vpop.permute.xlu0 %990
    %992 = vrot.lane.b32.xlu0 %v405, 40
    %v993 = vpop.permute.xlu0 %992
    %v997 = vsel %vm455, %v985, 0
    %v1000 = vsel %vm455, %v986, 0
    %v1003 = vsel %vm455, %v987, 0
    %v1005 = vsel %vm140, %v993, 0
    %1007 = vmatpush.msra.mxu0 0.0
    %1008 = vmatpush.msra.mxu0 0.0
    %1009 = vmatpush.msra.mxu0 0.0
    %1010 = vmatpush.msra.mxu0 0.0
    %1011 = vmatpush.msra.mxu0 0.0
    %1012 = vmatpush.msra.mxu0 0.0
    %1013 = vmatpush.msra.mxu0 0.0
    %1014 = vmatpush.msra.mxu0 0.0
    %1015 = vmatpush.msra.mxu0 0.0
    %1016 = vmatpush.msra.mxu0 0.0
    %1017 = vmatpush.msra.mxu0 0.0
    %1018 = vmatpush.msra.mxu0 0.0
    %1019 = vmatpush.msra.mxu0 0.0
    %1020 = vmatpush.msra.mxu0 %v1005
    %1021 = vmatpush.msra.mxu0 %v991
    %1022 = vmatpush.msra.mxu0 %v989
    %1023 = vmatmul.f32.gmra.mxu0 %v997
    %v1024 = vpop.f32.mrf.mxu0
    %v1025 = vadd.f32 0.0, %v1024
    %1026 = vmatmul.f32.gmra.mxu0 %v1000
    %v1027 = vpop.f32.mrf.mxu0
    %v1028 = vadd.f32 0.0, %v1027
    %1029 = vmatmul.f32.gmra.mxu0 %v1003
    %v1030 = vpop.f32.mrf.mxu0
    %v1031 = vadd.f32 0.0, %v1030
    %1032 = vdwg.mxu0
    %v1034 = vsel %vm416, %v1025, 0
    %v1037 = vsel %vm416, %v1028, 0
    %v1040 = vsel %vm416, %v1031, 0
    %1042 = vmatpush.msra.mxu0 0.0
    %1043 = vmatpush.msra.mxu0 0.0
    %1044 = vmatpush.msra.mxu0 0.0
    %1045 = vmatpush.msra.mxu0 0.0
    %1046 = vmatpush.msra.mxu0 0.0
    %1047 = vmatpush.msra.mxu0 0.0
    %1048 = vmatpush.msra.mxu0 0.0
    %1049 = vmatpush.msra.mxu0 0.0
    %1050 = vmatpush.msra.mxu0 0.0
    %1051 = vmatpush.msra.mxu0 0.0
    %1052 = vmatpush.msra.mxu0 0.0
    %1053 = vmatpush.msra.mxu0 0.0
    %1054 = vmatpush.msra.mxu0 0.0
    %1055 = vmatpush.msra.mxu0 0.0
    %1056 = vmatpush.msra.mxu0 0.0
    %1057 = vmatpush.msra.mxu0 %v177
    %1058 = vmatmul.f32.gmra.mxu0 %v1034
    %v1059 = vpop.f32.mrf.mxu0
    %v1060 = vadd.f32 0.0, %v1059
    %1061 = vmatmul.f32.gmra.mxu0 %v1037
    %v1062 = vpop.f32.mrf.mxu0
    %v1063 = vadd.f32 0.0, %v1062
    %1064 = vmatmul.f32.gmra.mxu0 %v1040
    %v1065 = vpop.f32.mrf.mxu0
    %v1066 = vadd.f32 0.0, %v1065
    %1067 = vdwg.mxu0
    %v1068 = vadd.f32 %v902, %v1060
    %v1069 = vadd.f32 %v903, %v1063
    %v1070 = vadd.f32 %v904, %v1066
    %v1071 = vperm.slane %v195, 0
    %v1072 = vadd.f32 %v1068, %v1071
    %v1073 = vadd.f32 %v1069, %v1071
    %v1074 = vadd.f32 %v1070, %v1071
    %v1075 = vsel %vm289, %v1072, 0.0
    %1076 = vadd.xlane.f32.xlu0 %v1075
    %v1077 = vpop.xlane.xlu0 %1076
    %v1078 = vsel %vm289, %v1073, 0.0
    %1079 = vadd.xlane.f32.xlu0 %v1078
    %v1080 = vpop.xlane.xlu0 %1079
    %v1081 = vsel %vm296, %v1074, 0.0
    %1082 = vadd.xlane.f32.xlu0 %v1081
    %v1083 = vpop.xlane.xlu0 %1082
    %v1084 = vmul.f32 %v1077, %v306
    %v1085 = vmul.f32 %v1080, %v306
    %v1086 = vmul.f32 %v1083, %v306
    %v1087 = vsub.f32 %v1072, %v1084
    %v1088 = vsub.f32 %v1073, %v1085
    %v1089 = vsub.f32 %v1074, %v1086
    %v1090 = vmul.f32 %v1087, %v1087
    %v1091 = vmul.f32 %v1088, %v1088
    %v1092 = vmul.f32 %v1089, %v1089
    %v1093 = vsel %vm289, %v1090, 0.0
    %1094 = vadd.xlane.f32.xlu0 %v1093
    %v1095 = vpop.xlane.xlu0 %1094
    %v1096 = vsel %vm289, %v1091, 0.0
    %1097 = vadd.xlane.f32.xlu0 %v1096
    %v1098 = vpop.xlane.xlu0 %1097
    %v1099 = vsel %vm296, %v1092, 0.0
    %1100 = vadd.xlane.f32.xlu0 %v1099
    %v1101 = vpop.xlane.xlu0 %1100
    %v1102 = vmul.f32 %v1095, %v306
    %v1103 = vmul.f32 %v1098, %v306
    %v1104 = vmul.f32 %v1101, %v306
    %v1105 = vadd.f32 %v1102, 1e-05
    %v1106 = vadd.f32 %v1103, 1e-05
    %v1107 = vadd.f32 %v1104, 1e-05
    %v1108 = vrsqrt.pop %v1105
    %v1109 = vmul.f32 %v1108, %v1105
    %v1110 = vmul.f32 %v1109, %v1108
    %v1111 = vmul.f32 0.5, %v1110
    %v1112 = vsub.f32 1.5, %v1111
    %v1113 = vmul.f32 %v1108, %v1112
    %vm1114 = vweird.f32 %v1105
    %vm1115 = vweird.f32 %v1108
    %vm1116 = vmor %vm1114, %vm1115
    %v1117 = vsel %vm1116, %v1108, %v1113
    %v1118 = vrsqrt.pop %v1106
    %v1119 = vmul.f32 %v1118, %v1106
    %v1120 = vmul.f32 %v1119, %v1118
    %v1121 = vmul.f32 0.5, %v1120
    %v1122 = vsub.f32 1.5, %v1121
    %v1123 = vmul.f32 %v1118, %v1122
    %vm1124 = vweird.f32 %v1106
    %vm1125 = vweird.f32 %v1118
    %vm1126 = vmor %vm1124, %vm1125
    %v1127 = vsel %vm1126, %v1118, %v1123
    %v1128 = vrsqrt.pop %v1107
    %v1129 = vmul.f32 %v1128, %v1107
    %v1130 = vmul.f32 %v1129, %v1128
    %v1131 = vmul.f32 0.5, %v1130
    %v1132 = vsub.f32 1.5, %v1131
    %v1133 = vmul.f32 %v1128, %v1132
    %vm1134 = vweird.f32 %v1107
    %vm1135 = vweird.f32 %v1128
    %vm1136 = vmor %vm1134, %vm1135
    %v1137 = vsel %vm1136, %v1128, %v1133
    %v1138 = vmul.f32 %v1087, %v1117
    %v1139 = vmul.f32 %v1088, %v1127
    %v1140 = vmul.f32 %v1089, %v1137
    %v1141 = vperm.slane %v196, 0
    %v1142 = vmul.f32 %v1138, %v1141
    %v1143 = vmul.f32 %v1139, %v1141
    %v1144 = vmul.f32 %v1140, %v1141
    %v1145 = vperm.slane %v197, 0
    %v1146 = vadd.f32 %v1142, %v1145
    %v1147 = vadd.f32 %v1143, %v1145
    %v1148 = vadd.f32 %v1144, %v1145
    %v1149 = vperm.slane %v198, 0
    %v1151 = vsel %vm289, %v1146, 0
    %v1154 = vsel %vm289, %v1147, 0
    %v1157 = vsel %vm289, %v1148, 0
    %1159 = vmatpush.msra.mxu0 0.0
    %1160 = vmatpush.msra.mxu0 0.0
    %1161 = vmatpush.msra.mxu0 0.0
    %1162 = vmatpush.msra.mxu0 0.0
    %1163 = vmatpush.msra.mxu0 0.0
    %1164 = vmatpush.msra.mxu0 0.0
    %1165 = vmatpush.msra.mxu0 0.0
    %1166 = vmatpush.msra.mxu0 0.0
    %1167 = vmatpush.msra.mxu0 0.0
    %1168 = vmatpush.msra.mxu0 0.0
    %1169 = vmatpush.msra.mxu0 0.0
    %1170 = vmatpush.msra.mxu0 0.0
    %1171 = vmatpush.msra.mxu0 %v181
    %1172 = vmatpush.msra.mxu0 %v180
    %1173 = vmatpush.msra.mxu0 %v179
    %1174 = vmatpush.msra.mxu0 %v178
    %1175 = vmatmul.f32.gmra.mxu0 %v1151
    %v1176 = vpop.f32.mrf.mxu0
    %v1177 = vadd.f32 %v1149, %v1176
    %1178 = vmatmul.f32.gmra.mxu0 %v1154
    %v1179 = vpop.f32.mrf.mxu0
    %v1180 = vadd.f32 %v1149, %v1179
    %1181 = vmatmul.f32.gmra.mxu0 %v1157
    %v1182 = vpop.f32.mrf.mxu0
    %v1183 = vadd.f32 %v1149, %v1182
    %1184 = vdwg.mxu0
    %v1185 = vmul.f32 %v1177, 0.5
    %v1186 = vmul.f32 %v1180, 0.5
    %v1187 = vmul.f32 %v1183, 0.5
    %v1188 = vmul.f32 %v1177, 0.70710677
    %v1189 = vmul.f32 %v1180, 0.70710677
    %v1190 = vmul.f32 %v1183, 0.70710677
    %v1191 = vmul.f32 %v1188, %v1188
    %v1192 = vmin.f32 16.0, %v1191
    %v1193 = vmul.f32 %v1192, 2.1237322e-06
    %v1194 = vadd.f32 %v1193, 0.00028619796
    %v1195 = vmul.f32 %v1192, %v1194
    %v1196 = vadd.f32 %v1195, 0.0036580483
    %v1197 = vmul.f32 %v1192, %v1196
    %v1198 = vadd.f32 %v1197, 0.05243302
    %v1199 = vmul.f32 %v1192, %v1198
    %v1200 = vadd.f32 %v1199, 0.18741608
    %v1201 = vmul.f32 %v1192, %v1200
    %v1202 = vadd.f32 %v1201, 1.1283791
    %v1203 = vmul.f32 %v1188, %v1202
    %v1204 = vmul.f32 %v1192, 3.8918573e-05
    %v1205 = vadd.f32 %v1204, 0.001143296
    %v1206 = vmul.f32 %v1192, %v1205
    %v1207 = vadd.f32 %v1206, 0.014752088
    %v1208 = vmul.f32 %v1192, %v1207
    %v1209 = vadd.f32 %v1208, 0.112945676
    %v1210 = vmul.f32 %v1192, %v1209
    %v1211 = vadd.f32 %v1210, 0.4994258
    %v1212 = vmul.f32 %v1192, %v1211
    %v1213 = vadd.f32 %v1212, 1.0
    %v1214 = vrcp.pop %v1213
    %v1215 = vmul.f32 %v1213, %v1214
    %v1216 = vsub.f32 1.0, %v1215
    %v1217 = vmul.f32 %v1214, %v1216
    %v1218 = vadd.f32 %v1214, %v1217
    %vm1219 = vweird.f32 %v1213
    %vm1220 = vweird.f32 %v1214
    %vm1221 = vmor %vm1219, %vm1220
    %v1222 = vsel %vm1221, %v1214, %v1218
    %v1223 = vand.u32 2147483647, %v1213
    %vm1224 = vcmp.eq.f32.partialorder %v1223, 8.507059e+37
    %v1225 = vand.u32 %v1213, 2147483648
    %v1226 = vor.u32 1.1754944e-38, %v1225
    %v1227 = vsel %vm1224, %v1226, %v1222
    %v1228 = vmul.f32 %v1203, %v1227
    %v1229 = vmin.f32 %v1228, 1.0
    %v1230 = vmax.f32 %v1229, -1.0
    %v1231 = vmul.f32 %v1189, %v1189
    %v1232 = vmin.f32 16.0, %v1231
    %v1233 = vmul.f32 %v1232, 2.1237322e-06
    %v1234 = vadd.f32 %v1233, 0.00028619796
    %v1235 = vmul.f32 %v1232, %v1234
    %v1236 = vadd.f32 %v1235, 0.0036580483
    %v1237 = vmul.f32 %v1232, %v1236
    %v1238 = vadd.f32 %v1237, 0.05243302
    %v1239 = vmul.f32 %v1232, %v1238
    %v1240 = vadd.f32 %v1239, 0.18741608
    %v1241 = vmul.f32 %v1232, %v1240
    %v1242 = vadd.f32 %v1241, 1.1283791
    %v1243 = vmul.f32 %v1189, %v1242
    %v1244 = vmul.f32 %v1232, 3.8918573e-05
    %v1245 = vadd.f32 %v1244, 0.001143296
    %v1246 = vmul.f32 %v1232, %v1245
    %v1247 = vadd.f32 %v1246, 0.014752088
    %v1248 = vmul.f32 %v1232, %v1247
    %v1249 = vadd.f32 %v1248, 0.112945676
    %v1250 = vmul.f32 %v1232, %v1249
    %v1251 = vadd.f32 %v1250, 0.4994258
    %v1252 = vmul.f32 %v1232, %v1251
    %v1253 = vadd.f32 %v1252, 1.0
    %v1254 = vrcp.pop %v1253
    %v1255 = vmul.f32 %v1253, %v1254
    %v1256 = vsub.f32 1.0, %v1255
    %v1257 = vmul.f32 %v1254, %v1256
    %v1258 = vadd.f32 %v1254, %v1257
    %vm1259 = vweird.f32 %v1253
    %vm1260 = vweird.f32 %v1254
    %vm1261 = vmor %vm1259, %vm1260
    %v1262 = vsel %vm1261, %v1254, %v1258
    %v1263 = vand.u32 2147483647, %v1253
    %vm1264 = vcmp.eq.f32.partialorder %v1263, 8.507059e+37
    %v1265 = vand.u32 %v1253, 2147483648
    %v1266 = vor.u32 1.1754944e-38, %v1265
    %v1267 = vsel %vm1264, %v1266, %v1262
    %v1268 = vmul.f32 %v1243, %v1267
    %v1269 = vmin.f32 %v1268, 1.0
    %v1270 = vmax.f32 %v1269, -1.0
    %v1271 = vmul.f32 %v1190, %v1190
    %v1272 = vmin.f32 16.0, %v1271
    %v1273 = vmul.f32 %v1272, 2.1237322e-06
    %v1274 = vadd.f32 %v1273, 0.00028619796
    %v1275 = vmul.f32 %v1272, %v1274
    %v1276 = vadd.f32 %v1275, 0.0036580483
    %v1277 = vmul.f32 %v1272, %v1276
    %v1278 = vadd.f32 %v1277, 0.05243302
    %v1279 = vmul.f32 %v1272, %v1278
    %v1280 = vadd.f32 %v1279, 0.18741608
    %v1281 = vmul.f32 %v1272, %v1280
    %v1282 = vadd.f32 %v1281, 1.1283791
    %v1283 = vmul.f32 %v1190, %v1282
    %v1284 = vmul.f32 %v1272, 3.8918573e-05
    %v1285 = vadd.f32 %v1284, 0.001143296
    %v1286 = vmul.f32 %v1272, %v1285
    %v1287 = vadd.f32 %v1286, 0.014752088
    %v1288 = vmul.f32 %v1272, %v1287
    %v1289 = vadd.f32 %v1288, 0.112945676
    %v1290 = vmul.f32 %v1272, %v1289
    %v1291 = vadd.f32 %v1290, 0.4994258
    %v1292 = vmul.f32 %v1272, %v1291
    %v1293 = vadd.f32 %v1292, 1.0
    %v1294 = vrcp.pop %v1293
    %v1295 = vmul.f32 %v1293, %v1294
    %v1296 = vsub.f32 1.0, %v1295
    %v1297 = vmul.f32 %v1294, %v1296
    %v1298 = vadd.f32 %v1294, %v1297
    %vm1299 = vweird.f32 %v1293
    %vm1300 = vweird.f32 %v1294
    %vm1301 = vmor %vm1299, %vm1300
    %v1302 = vsel %vm1301, %v1294, %v1298
    %v1303 = vand.u32 2147483647, %v1293
    %vm1304 = vcmp.eq.f32.partialorder %v1303, 8.507059e+37
    %v1305 = vand.u32 %v1293, 2147483648
    %v1306 = vor.u32 1.1754944e-38, %v1305
    %v1307 = vsel %vm1304, %v1306, %v1302
    %v1308 = vmul.f32 %v1283, %v1307
    %v1309 = vmin.f32 %v1308, 1.0
    %v1310 = vmax.f32 %v1309, -1.0
    %v1311 = vadd.f32 %v1230, 1.0
    %v1312 = vadd.f32 %v1270, 1.0
    %v1313 = vadd.f32 %v1310, 1.0
    %v1314 = vmul.f32 %v1185, %v1311
    %v1315 = vmul.f32 %v1186, %v1312
    %v1316 = vmul.f32 %v1187, %v1313
    %vm1317 = vcmask 523264
    %v1319 = vsel %vm1317, %v1314, 0
    %v1322 = vsel %vm1317, %v1315, 0
    %v1325 = vsel %vm1317, %v1316, 0
    %1327 = vmatpush.msra.mxu0 0.0
    %1328 = vmatpush.msra.mxu0 0.0
    %1329 = vmatpush.msra.mxu0 0.0
    %1330 = vmatpush.msra.mxu0 0.0
    %1331 = vmatpush.msra.mxu0 0.0
    %1332 = vmatpush.msra.mxu0 0.0
    %1333 = vmatpush.msra.mxu0 0.0
    %1334 = vmatpush.msra.mxu0 0.0
    %1335 = vmatpush.msra.mxu0 %v189
    %1336 = vmatpush.msra.mxu0 %v188
    %1337 = vmatpush.msra.mxu0 %v187
    %1338 = vmatpush.msra.mxu0 %v186
    %1339 = vmatpush.msra.mxu0 %v185
    %1340 = vmatpush.msra.mxu0 %v184
    %1341 = vmatpush.msra.mxu0 %v183
    %1342 = vmatpush.msra.mxu0 %v182
    %1343 = vmatmul.f32.gmra.mxu0 %v1319
    %v1344 = vpop.f32.mrf.mxu0
    %v1345 = vadd.f32 0.0, %v1344
    %1346 = vmatmul.f32.gmra.mxu0 %v1322
    %v1347 = vpop.f32.mrf.mxu0
    %1348 = vmatmul.f32.gmra.mxu0 %v1325
    %v1349 = vpop.f32.mrf.mxu0
    %1350 = vdwg.mxu0
    %v1351 = vadd.f32 %v1072, %v1345
    %v1352 = vperm.slane %v199, 0
    %v1353 = vadd.f32 %v1351, %v1352
    %v1354 = vsel %vm289, %v1353, 0.0
    %1355 = vadd.xlane.f32.xlu0 %v1354
    %v1356 = vpop.xlane.xlu0 %1355
    %v1357 = vmul.f32 %v1356, %v306
    %v1358 = vsub.f32 %v1353, %v1357
    %v1359 = vmul.f32 %v1358, %v1358
    %v1360 = vsel %vm289, %v1359, 0.0
    %1361 = vadd.xlane.f32.xlu0 %v1360
    %v1362 = vpop.xlane.xlu0 %1361
    %v1363 = vmul.f32 %v1362, %v306
    %v1364 = vadd.f32 %v1363, 1e-05
    %v1365 = vrsqrt.pop %v1364
    %v1366 = vmul.f32 %v1365, %v1364
    %v1367 = vmul.f32 %v1366, %v1365
    %v1368 = vmul.f32 0.5, %v1367
    %v1369 = vsub.f32 1.5, %v1368
    %v1370 = vmul.f32 %v1365, %v1369
    %vm1371 = vweird.f32 %v1364
    %vm1372 = vweird.f32 %v1365
    %vm1373 = vmor %vm1371, %vm1372
    %v1374 = vsel %vm1373, %v1365, %v1370
    %v1375 = vmul.f32 %v1358, %v1374
    %v1376 = vperm.slane %v200, 0
    %v1377 = vmul.f32 %v1375, %v1376
    %v1378 = vperm.slane %v201, 0
    %v1379 = vadd.f32 %v1377, %v1378
    %1382 = vrot.lane.b32.xlu0 %v162, 118
    %v1383 = vpop.permute.xlu0 %1382
    %1384 = vrot.lane.b32.xlu0 %v165, 118
    %v1385 = vpop.permute.xlu0 %1384
    %1386 = vrot.lane.b32.xlu0 %v168, 118
    %v1387 = vpop.permute.xlu0 %1386
    %v1390 = vsel %vm58, %v1387, 0
    %1392 = vmatpush.msra.mxu0 0.0
    %1393 = vmatpush.msra.mxu0 0.0
    %1394 = vmatpush.msra.mxu0 0.0
    %1395 = vmatpush.msra.mxu0 0.0
    %1396 = vmatpush.msra.mxu0 0.0
    %1397 = vmatpush.msra.mxu0 0.0
    %1398 = vmatpush.msra.mxu0 0.0
    %1399 = vmatpush.msra.mxu0 0.0
    %1400 = vmatpush.msra.mxu0 0.0
    %1401 = vmatpush.msra.mxu0 0.0
    %1402 = vmatpush.msra.mxu0 0.0
    %1403 = vmatpush.msra.mxu0 0.0
    %1404 = vmatpush.msra.mxu0 0.0
    %1405 = vmatpush.msra.mxu0 %v1390
    %1406 = vmatpush.msra.mxu0 %v1385
    %1407 = vmatpush.msra.mxu0 %v1383
    %1408 = vmatmul.f32.gmra.mxu0 %v209
    %v1409 = vpop.f32.mrf.mxu0
    %v1410 = vadd.f32 0.0, %v1409
    %1411 = vmatmul.f32.gmra.mxu0 %v212
    %v1412 = vpop.f32.mrf.mxu0
    %v1413 = vadd.f32 0.0, %v1412
    %1414 = vmatmul.f32.gmra.mxu0 %v215
    %v1415 = vpop.f32.mrf.mxu0
    %v1416 = vadd.f32 0.0, %v1415
    %1417 = vdwg.mxu0
    %v1419 = vsel %vm246, %v1410, 0
    %v1422 = vsel %vm246, %v1413, 0
    %v1425 = vsel %vm246, %v1416, 0
    %1427 = vmatpush.msra.mxu0 0.0
    %1428 = vmatpush.msra.mxu0 0.0
    %1429 = vmatpush.msra.mxu0 0.0
    %1430 = vmatpush.msra.mxu0 0.0
    %1431 = vmatpush.msra.mxu0 0.0
    %1432 = vmatpush.msra.mxu0 0.0
    %1433 = vmatpush.msra.mxu0 0.0
    %1434 = vmatpush.msra.mxu0 0.0
    %1435 = vmatpush.msra.mxu0 0.0
    %1436 = vmatpush.msra.mxu0 0.0
    %1437 = vmatpush.msra.mxu0 0.0
    %1438 = vmatpush.msra.mxu0 0.0
    %1439 = vmatpush.msra.mxu0 0.0
    %1440 = vmatpush.msra.mxu0 0.0
    %1441 = vmatpush.msra.mxu0 %v258
    %1442 = vmatpush.msra.mxu0 %v205
    %1443 = vmatmul.f32.gmra.mxu0 %v1419
    %v1444 = vpop.f32.mrf.mxu0
    %v1445 = vadd.f32 0.0, %v1444
    %1446 = vmatmul.f32.gmra.mxu0 %v1422
    %v1447 = vpop.f32.mrf.mxu0
    %v1448 = vadd.f32 0.0, %v1447
    %1449 = vmatmul.f32.gmra.mxu0 %v1425
    %v1450 = vpop.f32.mrf.mxu0
    %v1451 = vadd.f32 0.0, %v1450
    %1452 = vdwg.mxu0
    %v1453 = vadd.f32 %v190, %v1445
    %v1454 = vadd.f32 %v191, %v1448
    %v1455 = vadd.f32 %v192, %v1451
    %v1456 = vsel %vm289, %v1453, 0.0
    %1457 = vadd.xlane.f32.xlu0 %v1456
    %v1458 = vpop.xlane.xlu0 %1457
    %v1459 = vsel %vm289, %v1454, 0.0
    %1460 = vadd.xlane.f32.xlu0 %v1459
    %v1461 = vpop.xlane.xlu0 %1460
    %v1462 = vsel %vm296, %v1455, 0.0
    %1463 = vadd.xlane.f32.xlu0 %v1462
    %v1464 = vpop.xlane.xlu0 %1463
    %v1465 = vmul.f32 %v1458, %v306
    %v1466 = vmul.f32 %v1461, %v306
    %v1467 = vmul.f32 %v1464, %v306
    %v1468 = vsub.f32 %v1453, %v1465
    %v1469 = vsub.f32 %v1454, %v1466
    %v1470 = vsub.f32 %v1455, %v1467
    %v1471 = vmul.f32 %v1468, %v1468
    %v1472 = vmul.f32 %v1469, %v1469
    %v1473 = vmul.f32 %v1470, %v1470
    %v1474 = vsel %vm289, %v1471, 0.0
    %1475 = vadd.xlane.f32.xlu0 %v1474
    %v1476 = vpop.xlane.xlu0 %1475
    %v1477 = vsel %vm289, %v1472, 0.0
    %1478 = vadd.xlane.f32.xlu0 %v1477
    %v1479 = vpop.xlane.xlu0 %1478
    %v1480 = vsel %vm296, %v1473, 0.0
    %1481 = vadd.xlane.f32.xlu0 %v1480
    %v1482 = vpop.xlane.xlu0 %1481
    %v1483 = vmul.f32 %v1476, %v306
    %v1484 = vmul.f32 %v1479, %v306
    %v1485 = vmul.f32 %v1482, %v306
    %v1486 = vadd.f32 %v1483, 1e-05
    %v1487 = vadd.f32 %v1484, 1e-05
    %v1488 = vadd.f32 %v1485, 1e-05
    %v1489 = vrsqrt.pop %v1486
    %v1490 = vmul.f32 %v1489, %v1486
    %v1491 = vmul.f32 %v1490, %v1489
    %v1492 = vmul.f32 0.5, %v1491
    %v1493 = vsub.f32 1.5, %v1492
    %v1494 = vmul.f32 %v1489, %v1493
    %vm1495 = vweird.f32 %v1486
    %vm1496 = vweird.f32 %v1489
    %vm1497 = vmor %vm1495, %vm1496
    %v1498 = vsel %vm1497, %v1489, %v1494
    %v1499 = vrsqrt.pop %v1487
    %v1500 = vmul.f32 %v1499, %v1487
    %v1501 = vmul.f32 %v1500, %v1499
    %v1502 = vmul.f32 0.5, %v1501
    %v1503 = vsub.f32 1.5, %v1502
    %v1504 = vmul.f32 %v1499, %v1503
    %vm1505 = vweird.f32 %v1487
    %vm1506 = vweird.f32 %v1499
    %vm1507 = vmor %vm1505, %vm1506
    %v1508 = vsel %vm1507, %v1499, %v1504
    %v1509 = vrsqrt.pop %v1488
    %v1510 = vmul.f32 %v1509, %v1488
    %v1511 = vmul.f32 %v1510, %v1509
    %v1512 = vmul.f32 0.5, %v1511
    %v1513 = vsub.f32 1.5, %v1512
    %v1514 = vmul.f32 %v1509, %v1513
    %vm1515 = vweird.f32 %v1488
    %vm1516 = vweird.f32 %v1509
    %vm1517 = vmor %vm1515, %vm1516
    %v1518 = vsel %vm1517, %v1509, %v1514
    %v1519 = vmul.f32 %v1468, %v1498
    %v1520 = vmul.f32 %v1469, %v1508
    %v1521 = vmul.f32 %v1470, %v1518
    %v1522 = vmul.f32 %v1519, %v364
    %v1523 = vmul.f32 %v1520, %v364
    %v1524 = vmul.f32 %v1521, %v364
    %v1525 = vadd.f32 %v1522, %v368
    %v1526 = vadd.f32 %v1523, %v368
    %v1527 = vadd.f32 %v1524, %v368
    %v1529 = vsel %vm289, %v1525, 0
    %v1532 = vsel %vm289, %v1526, 0
    %v1535 = vsel %vm289, %v1527, 0
    %1537 = vmatpush.msra.mxu0 0.0
    %1538 = vmatpush.msra.mxu0 0.0
    %1539 = vmatpush.msra.mxu0 0.0
    %1540 = vmatpush.msra.mxu0 0.0
    %1541 = vmatpush.msra.mxu0 0.0
    %1542 = vmatpush.msra.mxu0 0.0
    %1543 = vmatpush.msra.mxu0 0.0
    %1544 = vmatpush.msra.mxu0 0.0
    %1545 = vmatpush.msra.mxu0 0.0
    %1546 = vmatpush.msra.mxu0 0.0
    %1547 = vmatpush.msra.mxu0 0.0
    %1548 = vmatpush.msra.mxu0 0.0
    %1549 = vmatpush.msra.mxu0 %v173
    %1550 = vmatpush.msra.mxu0 %v172
    %1551 = vmatpush.msra.mxu0 %v171
    %1552 = vmatpush.msra.mxu0 %v170
    %1553 = vmatmul.f32.gmra.mxu0 %v1529
    %v1554 = vpop.f32.mrf.mxu0
    %v1555 = vadd.f32 0.0, %v1554
    %1556 = vmatmul.f32.gmra.mxu0 %v1532
    %v1557 = vpop.f32.mrf.mxu0
    %v1558 = vadd.f32 0.0, %v1557
    %1559 = vmatmul.f32.gmra.mxu0 %v1535
    %v1560 = vpop.f32.mrf.mxu0
    %v1561 = vadd.f32 0.0, %v1560
    %1562 = vdwg.mxu0
    %1566 = vrot.lane.b32.xlu0 %v1555, 96
    %v1567 = vpop.permute.xlu0 %1566
    %1568 = vrot.lane.b32.xlu0 %v1558, 96
    %v1569 = vpop.permute.xlu0 %1568
    %1570 = vrot.lane.b32.xlu0 %v1561, 96
    %v1571 = vpop.permute.xlu0 %1570
    %v1572 = vsel %vm416, %v1555, 0
    %v1574 = vsel %vm416, %v1558, 0
    %v1576 = vsel %vm416, %v1561, 0
    %v1578 = vsel %vm416, %v1567, 0
    %v1580 = vsel %vm416, %v1569, 0
    %v1582 = vsel %vm416, %v1571, 0
    %1584 = vmatpush.xpose.msra.mxu0 0.0
    %1585 = vmatpush.xpose.msra.mxu0 0.0
    %1586 = vmatpush.xpose.msra.mxu0 0.0
    %1587 = vmatpush.xpose.msra.mxu0 0.0
    %1588 = vmatpush.xpose.msra.mxu0 0.0
    %1589 = vmatpush.xpose.msra.mxu0 0.0
    %1590 = vmatpush.xpose.msra.mxu0 0.0
    %1591 = vmatpush.xpose.msra.mxu0 0.0
    %1592 = vmatpush.xpose.msra.mxu0 0.0
    %1593 = vmatpush.xpose.msra.mxu0 0.0
    %1594 = vmatpush.xpose.msra.mxu0 0.0
    %1595 = vmatpush.xpose.msra.mxu0 0.0
    %1596 = vmatpush.xpose.msra.mxu0 0.0
    %1597 = vmatpush.xpose.msra.mxu0 %v1582
    %1598 = vmatpush.xpose.msra.mxu0 %v1580
    %1599 = vmatpush.xpose.msra.mxu0 %v1578
    %1600 = vmatmul.f32.gmra.mxu0 %v1572
    %v1601 = vpop.f32.mrf.mxu0
    %v1602 = vadd.f32 0.0, %v1601
    %1603 = vmatmul.f32.gmra.mxu0 %v1574
    %v1604 = vpop.f32.mrf.mxu0
    %v1605 = vadd.f32 0.0, %v1604
    %1606 = vmatmul.f32.gmra.mxu0 %v1576
    %v1607 = vpop.f32.mrf.mxu0
    %v1608 = vadd.f32 0.0, %v1607
    %1609 = vdwg.mxu0
    %v1610 = vsel %vm455, %v1602, -inf
    %1611 = vmax.xlane.f32.xlu0 %v1610
    %v1612 = vpop.xlane.xlu0 %1611
    %v1613 = vsel %vm455, %v1605, -inf
    %1614 = vmax.xlane.f32.xlu0 %v1613
    %v1615 = vpop.xlane.xlu0 %1614
    %v1616 = vsel %vm462, %v1608, -inf
    %1617 = vmax.xlane.f32.xlu0 %v1616
    %v1618 = vpop.xlane.xlu0 %1617
    %v1619 = vsub.f32 %v1602, %v1612
    %v1620 = vsub.f32 %v1605, %v1615
    %v1621 = vsub.f32 %v1608, %v1618
    %v1622 = vmul.f32 %v1619, 1.442695
    %v1623 = vpow.pop %v1622
    %v1624 = vmul.f32 %v1620, 1.442695
    %v1625 = vpow.pop %v1624
    %v1626 = vmul.f32 %v1621, 1.442695
    %v1627 = vpow.pop %v1626
    %v1628 = vsel %vm455, %v1623, 0.0
    %1629 = vadd.xlane.f32.xlu0 %v1628
    %v1630 = vpop.xlane.xlu0 %1629
    %v1631 = vsel %vm455, %v1625, 0.0
    %1632 = vadd.xlane.f32.xlu0 %v1631
    %v1633 = vpop.xlane.xlu0 %1632
    %v1634 = vsel %vm462, %v1627, 0.0
    %1635 = vadd.xlane.f32.xlu0 %v1634
    %v1636 = vpop.xlane.xlu0 %1635
    %v1637 = vrcp.pop %v1630
    %v1638 = vrcp.pop %v1633
    %v1639 = vrcp.pop %v1636
    %v1640 = vmul.f32 %v1623, %v1637
    %v1641 = vmul.f32 %v1625, %v1638
    %v1642 = vmul.f32 %v1627, %v1639
    %1643 = vrot.lane.b32.xlu0 %v1555, 64
    %v1644 = vpop.permute.xlu0 %1643
    %1645 = vrot.lane.b32.xlu0 %v1558, 64
    %v1646 = vpop.permute.xlu0 %1645
    %1647 = vrot.lane.b32.xlu0 %v1561, 64
    %v1648 = vpop.permute.xlu0 %1647
    %v1652 = vsel %vm455, %v1640, 0
    %v1655 = vsel %vm455, %v1641, 0
    %v1658 = vsel %vm455, %v1642, 0
    %v1660 = vsel %vm140, %v1648, 0
    %1662 = vmatpush.msra.mxu0 0.0
    %1663 = vmatpush.msra.mxu0 0.0
    %1664 = vmatpush.msra.mxu0 0.0
    %1665 = vmatpush.msra.mxu0 0.0
    %1666 = vmatpush.msra.mxu0 0.0
    %1667 = vmatpush.msra.mxu0 0.0
    %1668 = vmatpush.msra.mxu0 0.0
    %1669 = vmatpush.msra.mxu0 0.0
    %1670 = vmatpush.msra.mxu0 0.0
    %1671 = vmatpush.msra.mxu0 0.0
    %1672 = vmatpush.msra.mxu0 0.0
    %1673 = vmatpush.msra.mxu0 0.0
    %1674 = vmatpush.msra.mxu0 0.0
    %1675 = vmatpush.msra.mxu0 %v1660
    %1676 = vmatpush.msra.mxu0 %v1646
    %1677 = vmatpush.msra.mxu0 %v1644
    %1678 = vmatmul.f32.gmra.mxu0 %v1652
    %v1679 = vpop.f32.mrf.mxu0
    %v1680 = vadd.f32 0.0, %v1679
    %1681 = vmatmul.f32.gmra.mxu0 %v1655
    %v1682 = vpop.f32.mrf.mxu0
    %v1683 = vadd.f32 0.0, %v1682
    %1684 = vmatmul.f32.gmra.mxu0 %v1658
    %v1685 = vpop.f32.mrf.mxu0
    %v1686 = vadd.f32 0.0, %v1685
    %1687 = vdwg.mxu0
    %v1689 = vsel %vm416, %v1680, 0
    %v1692 = vsel %vm416, %v1683, 0
    %v1695 = vsel %vm416, %v1686, 0
    %1697 = vmatpush.msra.mxu0 0.0
    %1698 = vmatpush.msra.mxu0 0.0
    %1699 = vmatpush.msra.mxu0 0.0
    %1700 = vmatpush.msra.mxu0 0.0
    %1701 = vmatpush.msra.mxu0 0.0
    %1702 = vmatpush.msra.mxu0 0.0
    %1703 = vmatpush.msra.mxu0 0.0
    %1704 = vmatpush.msra.mxu0 0.0
    %1705 = vmatpush.msra.mxu0 0.0
    %1706 = vmatpush.msra.mxu0 0.0
    %1707 = vmatpush.msra.mxu0 0.0
    %1708 = vmatpush.msra.mxu0 0.0
    %1709 = vmatpush.msra.mxu0 0.0
    %1710 = vmatpush.msra.mxu0 0.0
    %1711 = vmatpush.msra.mxu0 0.0
    %1712 = vmatpush.msra.mxu0 %v174
    %1713 = vmatmul.f32.gmra.mxu0 %v1689
    %v1714 = vpop.f32.mrf.mxu0
    %v1715 = vadd.f32 0.0, %v1714
    %1716 = vmatmul.f32.gmra.mxu0 %v1692
    %v1717 = vpop.f32.mrf.mxu0
    %v1718 = vadd.f32 0.0, %v1717
    %1719 = vmatmul.f32.gmra.mxu0 %v1695
    %v1720 = vpop.f32.mrf.mxu0
    %v1721 = vadd.f32 0.0, %v1720
    %1722 = vdwg.mxu0
    %v1723 = vadd.f32 %v1453, %v1715
    %v1724 = vadd.f32 %v1454, %v1718
    %v1725 = vadd.f32 %v1455, %v1721
    %1726 = vrot.lane.b32.xlu0 %v1555, 120
    %v1727 = vpop.permute.xlu0 %1726
    %1728 = vrot.lane.b32.xlu0 %v1558, 120
    %v1729 = vpop.permute.xlu0 %1728
    %1730 = vrot.lane.b32.xlu0 %v1561, 120
    %v1731 = vpop.permute.xlu0 %1730
    %1732 = vrot.lane.b32.xlu0 %v1555, 88
    %v1733 = vpop.permute.xlu0 %1732
    %1734 = vrot.lane.b32.xlu0 %v1558, 88
    %v1735 = vpop.permute.xlu0 %1734
    %1736 = vrot.lane.b32.xlu0 %v1561, 88
    %v1737 = vpop.permute.xlu0 %1736
    %v1738 = vsel %vm416, %v1727, 0
    %v1740 = vsel %vm416, %v1729, 0
    %v1742 = vsel %vm416, %v1731, 0
    %v1744 = vsel %vm416, %v1733, 0
    %v1746 = vsel %vm416, %v1735, 0
    %v1748 = vsel %vm416, %v1737, 0
    %1750 = vmatpush.xpose.msra.mxu0 0.0
    %1751 = vmatpush.xpose.msra.mxu0 0.0
    %1752 = vmatpush.xpose.msra.mxu0 0.0
    %1753 = vmatpush.xpose.msra.mxu0 0.0
    %1754 = vmatpush.xpose.msra.mxu0 0.0
    %1755 = vmatpush.xpose.msra.mxu0 0.0
    %1756 = vmatpush.xpose.msra.mxu0 0.0
    %1757 = vmatpush.xpose.msra.mxu0 0.0
    %1758 = vmatpush.xpose.msra.mxu0 0.0
    %1759 = vmatpush.xpose.msra.mxu0 0.0
    %1760 = vmatpush.xpose.msra.mxu0 0.0
    %1761 = vmatpush.xpose.msra.mxu0 0.0
    %1762 = vmatpush.xpose.msra.mxu0 0.0
    %1763 = vmatpush.xpose.msra.mxu0 %v1748
    %1764 = vmatpush.xpose.msra.mxu0 %v1746
    %1765 = vmatpush.xpose.msra.mxu0 %v1744
    %1766 = vmatmul.f32.gmra.mxu0 %v1738
    %v1767 = vpop.f32.mrf.mxu0
    %v1768 = vadd.f32 0.0, %v1767
    %1769 = vmatmul.f32.gmra.mxu0 %v1740
    %v1770 = vpop.f32.mrf.mxu0
    %v1771 = vadd.f32 0.0, %v1770
    %1772 = vmatmul.f32.gmra.mxu0 %v1742
    %v1773 = vpop.f32.mrf.mxu0
    %v1774 = vadd.f32 0.0, %v1773
    %1775 = vdwg.mxu0
    %v1776 = vsel %vm455, %v1768, -inf
    %1777 = vmax.xlane.f32.xlu0 %v1776
    %v1778 = vpop.xlane.xlu0 %1777
    %v1779 = vsel %vm455, %v1771, -inf
    %1780 = vmax.xlane.f32.xlu0 %v1779
    %v1781 = vpop.xlane.xlu0 %1780
    %v1782 = vsel %vm462, %v1774, -inf
    %1783 = vmax.xlane.f32.xlu0 %v1782
    %v1784 = vpop.xlane.xlu0 %1783
    %v1785 = vsub.f32 %v1768, %v1778
    %v1786 = vsub.f32 %v1771, %v1781
    %v1787 = vsub.f32 %v1774, %v1784
    %v1788 = vmul.f32 %v1785, 1.442695
    %v1789 = vpow.pop %v1788
    %v1790 = vmul.f32 %v1786, 1.442695
    %v1791 = vpow.pop %v1790
    %v1792 = vmul.f32 %v1787, 1.442695
    %v1793 = vpow.pop %v1792
    %v1794 = vsel %vm455, %v1789, 0.0
    %1795 = vadd.xlane.f32.xlu0 %v1794
    %v1796 = vpop.xlane.xlu0 %1795
    %v1797 = vsel %vm455, %v1791, 0.0
    %1798 = vadd.xlane.f32.xlu0 %v1797
    %v1799 = vpop.xlane.xlu0 %1798
    %v1800 = vsel %vm462, %v1793, 0.0
    %1801 = vadd.xlane.f32.xlu0 %v1800
    %v1802 = vpop.xlane.xlu0 %1801
    %v1803 = vrcp.pop %v1796
    %v1804 = vrcp.pop %v1799
    %v1805 = vrcp.pop %v1802
    %v1806 = vmul.f32 %v1789, %v1803
    %v1807 = vmul.f32 %v1791, %v1804
    %v1808 = vmul.f32 %v1793, %v1805
    %1809 = vrot.lane.b32.xlu0 %v1555, 56
    %v1810 = vpop.permute.xlu0 %1809
    %1811 = vrot.lane.b32.xlu0 %v1558, 56
    %v1812 = vpop.permute.xlu0 %1811
    %1813 = vrot.lane.b32.xlu0 %v1561, 56
    %v1814 = vpop.permute.xlu0 %1813
    %v1818 = vsel %vm455, %v1806, 0
    %v1821 = vsel %vm455, %v1807, 0
    %v1824 = vsel %vm455, %v1808, 0
    %v1826 = vsel %vm140, %v1814, 0
    %1828 = vmatpush.msra.mxu0 0.0
    %1829 = vmatpush.msra.mxu0 0.0
    %1830 = vmatpush.msra.mxu0 0.0
    %1831 = vmatpush.msra.mxu0 0.0
    %1832 = vmatpush.msra.mxu0 0.0
    %1833 = vmatpush.msra.mxu0 0.0
    %1834 = vmatpush.msra.mxu0 0.0
    %1835 = vmatpush.msra.mxu0 0.0
    %1836 = vmatpush.msra.mxu0 0.0
    %1837 = vmatpush.msra.mxu0 0.0
    %1838 = vmatpush.msra.mxu0 0.0
    %1839 = vmatpush.msra.mxu0 0.0
    %1840 = vmatpush.msra.mxu0 0.0
    %1841 = vmatpush.msra.mxu0 %v1826
    %1842 = vmatpush.msra.mxu0 %v1812
    %1843 = vmatpush.msra.mxu0 %v1810
    %1844 = vmatmul.f32.gmra.mxu0 %v1818
    %v1845 = vpop.f32.mrf.mxu0
    %v1846 = vadd.f32 0.0, %v1845
    %1847 = vmatmul.f32.gmra.mxu0 %v1821
    %v1848 = vpop.f32.mrf.mxu0
    %v1849 = vadd.f32 0.0, %v1848
    %1850 = vmatmul.f32.gmra.mxu0 %v1824
    %v1851 = vpop.f32.mrf.mxu0
    %v1852 = vadd.f32 0.0, %v1851
    %1853 = vdwg.mxu0
    %v1855 = vsel %vm416, %v1846, 0
    %v1858 = vsel %vm416, %v1849, 0
    %v1861 = vsel %vm416, %v1852, 0
    %1863 = vmatpush.msra.mxu0 0.0
    %1864 = vmatpush.msra.mxu0 0.0
    %1865 = vmatpush.msra.mxu0 0.0
    %1866 = vmatpush.msra.mxu0 0.0
    %1867 = vmatpush.msra.mxu0 0.0
    %1868 = vmatpush.msra.mxu0 0.0
    %1869 = vmatpush.msra.mxu0 0.0
    %1870 = vmatpush.msra.mxu0 0.0
    %1871 = vmatpush.msra.mxu0 0.0
    %1872 = vmatpush.msra.mxu0 0.0
    %1873 = vmatpush.msra.mxu0 0.0
    %1874 = vmatpush.msra.mxu0 0.0
    %1875 = vmatpush.msra.mxu0 0.0
    %1876 = vmatpush.msra.mxu0 0.0
    %1877 = vmatpush.msra.mxu0 0.0
    %1878 = vmatpush.msra.mxu0 %v175
    %1879 = vmatmul.f32.gmra.mxu0 %v1855
    %v1880 = vpop.f32.mrf.mxu0
    %v1881 = vadd.f32 0.0, %v1880
    %1882 = vmatmul.f32.gmra.mxu0 %v1858
    %v1883 = vpop.f32.mrf.mxu0
    %v1884 = vadd.f32 0.0, %v1883
    %1885 = vmatmul.f32.gmra.mxu0 %v1861
    %v1886 = vpop.f32.mrf.mxu0
    %v1887 = vadd.f32 0.0, %v1886
    %1888 = vdwg.mxu0
    %v1889 = vadd.f32 %v1723, %v1881
    %v1890 = vadd.f32 %v1724, %v1884
    %v1891 = vadd.f32 %v1725, %v1887
    %1892 = vrot.lane.b32.xlu0 %v1555, 112
    %v1893 = vpop.permute.xlu0 %1892
    %1894 = vrot.lane.b32.xlu0 %v1558, 112
    %v1895 = vpop.permute.xlu0 %1894
    %1896 = vrot.lane.b32.xlu0 %v1561, 112
    %v1897 = vpop.permute.xlu0 %1896
    %1898 = vrot.lane.b32.xlu0 %v1555, 80
    %v1899 = vpop.permute.xlu0 %1898
    %1900 = vrot.lane.b32.xlu0 %v1558, 80
    %v1901 = vpop.permute.xlu0 %1900
    %1902 = vrot.lane.b32.xlu0 %v1561, 80
    %v1903 = vpop.permute.xlu0 %1902
    %v1904 = vsel %vm416, %v1893, 0
    %v1906 = vsel %vm416, %v1895, 0
    %v1908 = vsel %vm416, %v1897, 0
    %v1910 = vsel %vm416, %v1899, 0
    %v1912 = vsel %vm416, %v1901, 0
    %v1914 = vsel %vm416, %v1903, 0
    %1916 = vmatpush.xpose.msra.mxu0 0.0
    %1917 = vmatpush.xpose.msra.mxu0 0.0
    %1918 = vmatpush.xpose.msra.mxu0 0.0
    %1919 = vmatpush.xpose.msra.mxu0 0.0
    %1920 = vmatpush.xpose.msra.mxu0 0.0
    %1921 = vmatpush.xpose.msra.mxu0 0.0
    %1922 = vmatpush.xpose.msra.mxu0 0.0
    %1923 = vmatpush.xpose.msra.mxu0 0.0
    %1924 = vmatpush.xpose.msra.mxu0 0.0
    %1925 = vmatpush.xpose.msra.mxu0 0.0
    %1926 = vmatpush.xpose.msra.mxu0 0.0
    %1927 = vmatpush.xpose.msra.mxu0 0.0
    %1928 = vmatpush.xpose.msra.mxu0 0.0
    %1929 = vmatpush.xpose.msra.mxu0 %v1914
    %1930 = vmatpush.xpose.msra.mxu0 %v1912
    %1931 = vmatpush.xpose.msra.mxu0 %v1910
    %1932 = vmatmul.f32.gmra.mxu0 %v1904
    %v1933 = vpop.f32.mrf.mxu0
    %v1934 = vadd.f32 0.0, %v1933
    %1935 = vmatmul.f32.gmra.mxu0 %v1906
    %v1936 = vpop.f32.mrf.mxu0
    %v1937 = vadd.f32 0.0, %v1936
    %1938 = vmatmul.f32.gmra.mxu0 %v1908
    %v1939 = vpop.f32.mrf.mxu0
    %v1940 = vadd.f32 0.0, %v1939
    %1941 = vdwg.mxu0
    %v1942 = vsel %vm455, %v1934, -inf
    %1943 = vmax.xlane.f32.xlu0 %v1942
    %v1944 = vpop.xlane.xlu0 %1943
    %v1945 = vsel %vm455, %v1937, -inf
    %1946 = vmax.xlane.f32.xlu0 %v1945
    %v1947 = vpop.xlane.xlu0 %1946
    %v1948 = vsel %vm462, %v1940, -inf
    %1949 = vmax.xlane.f32.xlu0 %v1948
    %v1950 = vpop.xlane.xlu0 %1949
    %v1951 = vsub.f32 %v1934, %v1944
    %v1952 = vsub.f32 %v1937, %v1947
    %v1953 = vsub.f32 %v1940, %v1950
    %v1954 = vmul.f32 %v1951, 1.442695
    %v1955 = vpow.pop %v1954
    %v1956 = vmul.f32 %v1952, 1.442695
    %v1957 = vpow.pop %v1956
    %v1958 = vmul.f32 %v1953, 1.442695
    %v1959 = vpow.pop %v1958
    %v1960 = vsel %vm455, %v1955, 0.0
    %1961 = vadd.xlane.f32.xlu0 %v1960
    %v1962 = vpop.xlane.xlu0 %1961
    %v1963 = vsel %vm455, %v1957, 0.0
    %1964 = vadd.xlane.f32.xlu0 %v1963
    %v1965 = vpop.xlane.xlu0 %1964
    %v1966 = vsel %vm462, %v1959, 0.0
    %1967 = vadd.xlane.f32.xlu0 %v1966
    %v1968 = vpop.xlane.xlu0 %1967
    %v1969 = vrcp.pop %v1962
    %v1970 = vrcp.pop %v1965
    %v1971 = vrcp.pop %v1968
    %v1972 = vmul.f32 %v1955, %v1969
    %v1973 = vmul.f32 %v1957, %v1970
    %v1974 = vmul.f32 %v1959, %v1971
    %1975 = vrot.lane.b32.xlu0 %v1555, 48
    %v1976 = vpop.permute.xlu0 %1975
    %1977 = vrot.lane.b32.xlu0 %v1558, 48
    %v1978 = vpop.permute.xlu0 %1977
    %1979 = vrot.lane.b32.xlu0 %v1561, 48
    %v1980 = vpop.permute.xlu0 %1979
    %v1984 = vsel %vm455, %v1972, 0
    %v1987 = vsel %vm455, %v1973, 0
    %v1990 = vsel %vm455, %v1974, 0
    %v1992 = vsel %vm140, %v1980, 0
    %1994 = vmatpush.msra.mxu0 0.0
    %1995 = vmatpush.msra.mxu0 0.0
    %1996 = vmatpush.msra.mxu0 0.0
    %1997 = vmatpush.msra.mxu0 0.0
    %1998 = vmatpush.msra.mxu0 0.0
    %1999 = vmatpush.msra.mxu0 0.0
    %2000 = vmatpush.msra.mxu0 0.0
    %2001 = vmatpush.msra.mxu0 0.0
    %2002 = vmatpush.msra.mxu0 0.0
    %2003 = vmatpush.msra.mxu0 0.0
    %2004 = vmatpush.msra.mxu0 0.0
    %2005 = vmatpush.msra.mxu0 0.0
    %2006 = vmatpush.msra.mxu0 0.0
    %2007 = vmatpush.msra.mxu0 %v1992
    %2008 = vmatpush.msra.mxu0 %v1978
    %2009 = vmatpush.msra.mxu0 %v1976
    %2010 = vmatmul.f32.gmra.mxu0 %v1984
    %v2011 = vpop.f32.mrf.mxu0
    %v2012 = vadd.f32 0.0, %v2011
    %2013 = vmatmul.f32.gmra.mxu0 %v1987
    %v2014 = vpop.f32.mrf.mxu0
    %v2015 = vadd.f32 0.0, %v2014
    %2016 = vmatmul.f32.gmra.mxu0 %v1990
    %v2017 = vpop.f32.mrf.mxu0
    %v2018 = vadd.f32 0.0, %v2017
    %2019 = vdwg.mxu0
    %v2021 = vsel %vm416, %v2012, 0
    %v2024 = vsel %vm416, %v2015, 0
    %v2027 = vsel %vm416, %v2018, 0
    %2029 = vmatpush.msra.mxu0 0.0
    %2030 = vmatpush.msra.mxu0 0.0
    %2031 = vmatpush.msra.mxu0 0.0
    %2032 = vmatpush.msra.mxu0 0.0
    %2033 = vmatpush.msra.mxu0 0.0
    %2034 = vmatpush.msra.mxu0 0.0
    %2035 = vmatpush.msra.mxu0 0.0
    %2036 = vmatpush.msra.mxu0 0.0
    %2037 = vmatpush.msra.mxu0 0.0
    %2038 = vmatpush.msra.mxu0 0.0
    %2039 = vmatpush.msra.mxu0 0.0
    %2040 = vmatpush.msra.mxu0 0.0
    %2041 = vmatpush.msra.mxu0 0.0
    %2042 = vmatpush.msra.mxu0 0.0
    %2043 = vmatpush.msra.mxu0 0.0
    %2044 = vmatpush.msra.mxu0 %v176
    %2045 = vmatmul.f32.gmra.mxu0 %v2021
    %v2046 = vpop.f32.mrf.mxu0
    %v2047 = vadd.f32 0.0, %v2046
    %2048 = vmatmul.f32.gmra.mxu0 %v2024
    %v2049 = vpop.f32.mrf.mxu0
    %v2050 = vadd.f32 0.0, %v2049
    %2051 = vmatmul.f32.gmra.mxu0 %v2027
    %v2052 = vpop.f32.mrf.mxu0
    %v2053 = vadd.f32 0.0, %v2052
    %2054 = vdwg.mxu0
    %v2055 = vadd.f32 %v1889, %v2047
    %v2056 = vadd.f32 %v1890, %v2050
    %v2057 = vadd.f32 %v1891, %v2053
    %2058 = vrot.lane.b32.xlu0 %v1555, 104
    %v2059 = vpop.permute.xlu0 %2058
    %2060 = vrot.lane.b32.xlu0 %v1558, 104
    %v2061 = vpop.permute.xlu0 %2060
    %2062 = vrot.lane.b32.xlu0 %v1561, 104
    %v2063 = vpop.permute.xlu0 %2062
    %2064 = vrot.lane.b32.xlu0 %v1555, 72
    %v2065 = vpop.permute.xlu0 %2064
    %2066 = vrot.lane.b32.xlu0 %v1558, 72
    %v2067 = vpop.permute.xlu0 %2066
    %2068 = vrot.lane.b32.xlu0 %v1561, 72
    %v2069 = vpop.permute.xlu0 %2068
    %v2070 = vsel %vm416, %v2059, 0
    %v2072 = vsel %vm416, %v2061, 0
    %v2074 = vsel %vm416, %v2063, 0
    %v2076 = vsel %vm416, %v2065, 0
    %v2078 = vsel %vm416, %v2067, 0
    %v2080 = vsel %vm416, %v2069, 0
    %2082 = vmatpush.xpose.msra.mxu0 0.0
    %2083 = vmatpush.xpose.msra.mxu0 0.0
    %2084 = vmatpush.xpose.msra.mxu0 0.0
    %2085 = vmatpush.xpose.msra.mxu0 0.0
    %2086 = vmatpush.xpose.msra.mxu0 0.0
    %2087 = vmatpush.xpose.msra.mxu0 0.0
    %2088 = vmatpush.xpose.msra.mxu0 0.0
    %2089 = vmatpush.xpose.msra.mxu0 0.0
    %2090 = vmatpush.xpose.msra.mxu0 0.0
    %2091 = vmatpush.xpose.msra.mxu0 0.0
    %2092 = vmatpush.xpose.msra.mxu0 0.0
    %2093 = vmatpush.xpose.msra.mxu0 0.0
    %2094 = vmatpush.xpose.msra.mxu0 0.0
    %2095 = vmatpush.xpose.msra.mxu0 %v2080
    %2096 = vmatpush.xpose.msra.mxu0 %v2078
    %2097 = vmatpush.xpose.msra.mxu0 %v2076
    %2098 = vmatmul.f32.gmra.mxu0 %v2070
    %v2099 = vpop.f32.mrf.mxu0
    %v2100 = vadd.f32 0.0, %v2099
    %2101 = vmatmul.f32.gmra.mxu0 %v2072
    %v2102 = vpop.f32.mrf.mxu0
    %v2103 = vadd.f32 0.0, %v2102
    %2104 = vmatmul.f32.gmra.mxu0 %v2074
    %v2105 = vpop.f32.mrf.mxu0
    %v2106 = vadd.f32 0.0, %v2105
    %2107 = vdwg.mxu0
    %v2108 = vsel %vm455, %v2100, -inf
    %2109 = vmax.xlane.f32.xlu0 %v2108
    %v2110 = vpop.xlane.xlu0 %2109
    %v2111 = vsel %vm455, %v2103, -inf
    %2112 = vmax.xlane.f32.xlu0 %v2111
    %v2113 = vpop.xlane.xlu0 %2112
    %v2114 = vsel %vm462, %v2106, -inf
    %2115 = vmax.xlane.f32.xlu0 %v2114
    %v2116 = vpop.xlane.xlu0 %2115
    %v2117 = vsub.f32 %v2100, %v2110
    %v2118 = vsub.f32 %v2103, %v2113
    %v2119 = vsub.f32 %v2106, %v2116
    %v2120 = vmul.f32 %v2117, 1.442695
    %v2121 = vpow.pop %v2120
    %v2122 = vmul.f32 %v2118, 1.442695
    %v2123 = vpow.pop %v2122
    %v2124 = vmul.f32 %v2119, 1.442695
    %v2125 = vpow.pop %v2124
    %v2126 = vsel %vm455, %v2121, 0.0
    %2127 = vadd.xlane.f32.xlu0 %v2126
    %v2128 = vpop.xlane.xlu0 %2127
    %v2129 = vsel %vm455, %v2123, 0.0
    %2130 = vadd.xlane.f32.xlu0 %v2129
    %v2131 = vpop.xlane.xlu0 %2130
    %v2132 = vsel %vm462, %v2125, 0.0
    %2133 = vadd.xlane.f32.xlu0 %v2132
    %v2134 = vpop.xlane.xlu0 %2133
    %v2135 = vrcp.pop %v2128
    %v2136 = vrcp.pop %v2131
    %v2137 = vrcp.pop %v2134
    %v2138 = vmul.f32 %v2121, %v2135
    %v2139 = vmul.f32 %v2123, %v2136
    %v2140 = vmul.f32 %v2125, %v2137
    %2141 = vrot.lane.b32.xlu0 %v1555, 40
    %v2142 = vpop.permute.xlu0 %2141
    %2143 = vrot.lane.b32.xlu0 %v1558, 40
    %v2144 = vpop.permute.xlu0 %2143
    %2145 = vrot.lane.b32.xlu0 %v1561, 40
    %v2146 = vpop.permute.xlu0 %2145
    %v2150 = vsel %vm455, %v2138, 0
    %v2153 = vsel %vm455, %v2139, 0
    %v2156 = vsel %vm455, %v2140, 0
    %v2158 = vsel %vm140, %v2146, 0
    %2160 = vmatpush.msra.mxu0 0.0
    %2161 = vmatpush.msra.mxu0 0.0
    %2162 = vmatpush.msra.mxu0 0.0
    %2163 = vmatpush.msra.mxu0 0.0
    %2164 = vmatpush.msra.mxu0 0.0
    %2165 = vmatpush.msra.mxu0 0.0
    %2166 = vmatpush.msra.mxu0 0.0
    %2167 = vmatpush.msra.mxu0 0.0
    %2168 = vmatpush.msra.mxu0 0.0
    %2169 = vmatpush.msra.mxu0 0.0
    %2170 = vmatpush.msra.mxu0 0.0
    %2171 = vmatpush.msra.mxu0 0.0
    %2172 = vmatpush.msra.mxu0 0.0
    %2173 = vmatpush.msra.mxu0 %v2158
    %2174 = vmatpush.msra.mxu0 %v2144
    %2175 = vmatpush.msra.mxu0 %v2142
    %2176 = vmatmul.f32.gmra.mxu0 %v2150
    %v2177 = vpop.f32.mrf.mxu0
    %v2178 = vadd.f32 0.0, %v2177
    %2179 = vmatmul.f32.gmra.mxu0 %v2153
    %v2180 = vpop.f32.mrf.mxu0
    %v2181 = vadd.f32 0.0, %v2180
    %2182 = vmatmul.f32.gmra.mxu0 %v2156
    %v2183 = vpop.f32.mrf.mxu0
    %v2184 = vadd.f32 0.0, %v2183
    %2185 = vdwg.mxu0
    %v2187 = vsel %vm416, %v2178, 0
    %v2190 = vsel %vm416, %v2181, 0
    %v2193 = vsel %vm416, %v2184, 0
    %2195 = vmatpush.msra.mxu0 0.0
    %2196 = vmatpush.msra.mxu0 0.0
    %2197 = vmatpush.msra.mxu0 0.0
    %2198 = vmatpush.msra.mxu0 0.0
    %2199 = vmatpush.msra.mxu0 0.0
    %2200 = vmatpush.msra.mxu0 0.0
    %2201 = vmatpush.msra.mxu0 0.0
    %2202 = vmatpush.msra.mxu0 0.0
    %2203 = vmatpush.msra.mxu0 0.0
    %2204 = vmatpush.msra.mxu0 0.0
    %2205 = vmatpush.msra.mxu0 0.0
    %2206 = vmatpush.msra.mxu0 0.0
    %2207 = vmatpush.msra.mxu0 0.0
    %2208 = vmatpush.msra.mxu0 0.0
    %2209 = vmatpush.msra.mxu0 0.0
    %2210 = vmatpush.msra.mxu0 %v177
    %2211 = vmatmul.f32.gmra.mxu0 %v2187
    %v2212 = vpop.f32.mrf.mxu0
    %v2213 = vadd.f32 0.0, %v2212
    %2214 = vmatmul.f32.gmra.mxu0 %v2190
    %v2215 = vpop.f32.mrf.mxu0
    %v2216 = vadd.f32 0.0, %v2215
    %2217 = vmatmul.f32.gmra.mxu0 %v2193
    %v2218 = vpop.f32.mrf.mxu0
    %v2219 = vadd.f32 0.0, %v2218
    %2220 = vdwg.mxu0
    %v2221 = vadd.f32 %v2055, %v2213
    %v2222 = vadd.f32 %v2056, %v2216
    %v2223 = vadd.f32 %v2057, %v2219
    %v2224 = vadd.f32 %v2221, %v1071
    %v2225 = vadd.f32 %v2222, %v1071
    %v2226 = vadd.f32 %v2223, %v1071
    %v2227 = vsel %vm289, %v2224, 0.0
    %2228 = vadd.xlane.f32.xlu0 %v2227
    %v2229 = vpop.xlane.xlu0 %2228
    %v2230 = vsel %vm289, %v2225, 0.0
    %2231 = vadd.xlane.f32.xlu0 %v2230
    %v2232 = vpop.xlane.xlu0 %2231
    %v2233 = vsel %vm296, %v2226, 0.0
    %2234 = vadd.xlane.f32.xlu0 %v2233
    %v2235 = vpop.xlane.xlu0 %2234
    %v2236 = vmul.f32 %v2229, %v306
    %v2237 = vmul.f32 %v2232, %v306
    %v2238 = vmul.f32 %v2235, %v306
    %v2239 = vsub.f32 %v2224, %v2236
    %v2240 = vsub.f32 %v2225, %v2237
    %v2241 = vsub.f32 %v2226, %v2238
    %v2242 = vmul.f32 %v2239, %v2239
    %v2243 = vmul.f32 %v2240, %v2240
    %v2244 = vmul.f32 %v2241, %v2241
    %v2245 = vsel %vm289, %v2242, 0.0
    %2246 = vadd.xlane.f32.xlu0 %v2245
    %v2247 = vpop.xlane.xlu0 %2246
    %v2248 = vsel %vm289, %v2243, 0.0
    %2249 = vadd.xlane.f32.xlu0 %v2248
    %v2250 = vpop.xlane.xlu0 %2249
    %v2251 = vsel %vm296, %v2244, 0.0
    %2252 = vadd.xlane.f32.xlu0 %v2251
    %v2253 = vpop.xlane.xlu0 %2252
    %v2254 = vmul.f32 %v2247, %v306
    %v2255 = vmul.f32 %v2250, %v306
    %v2256 = vmul.f32 %v2253, %v306
    %v2257 = vadd.f32 %v2254, 1e-05
    %v2258 = vadd.f32 %v2255, 1e-05
    %v2259 = vadd.f32 %v2256, 1e-05
    %v2260 = vrsqrt.pop %v2257
    %v2261 = vmul.f32 %v2260, %v2257
    %v2262 = vmul.f32 %v2261, %v2260
    %v2263 = vmul.f32 0.5, %v2262
    %v2264 = vsub.f32 1.5, %v2263
    %v2265 = vmul.f32 %v2260, %v2264
    %vm2266 = vweird.f32 %v2257
    %vm2267 = vweird.f32 %v2260
    %vm2268 = vmor %vm2266, %vm2267
    %v2269 = vsel %vm2268, %v2260, %v2265
    %v2270 = vrsqrt.pop %v2258
    %v2271 = vmul.f32 %v2270, %v2258
    %v2272 = vmul.f32 %v2271, %v2270
    %v2273 = vmul.f32 0.5, %v2272
    %v2274 = vsub.f32 1.5, %v2273
    %v2275 = vmul.f32 %v2270, %v2274
    %vm2276 = vweird.f32 %v2258
    %vm2277 = vweird.f32 %v2270
    %vm2278 = vmor %vm2276, %vm2277
    %v2279 = vsel %vm2278, %v2270, %v2275
    %v2280 = vrsqrt.pop %v2259
    %v2281 = vmul.f32 %v2280, %v2259
    %v2282 = vmul.f32 %v2281, %v2280
    %v2283 = vmul.f32 0.5, %v2282
    %v2284 = vsub.f32 1.5, %v2283
    %v2285 = vmul.f32 %v2280, %v2284
    %vm2286 = vweird.f32 %v2259
    %vm2287 = vweird.f32 %v2280
    %vm2288 = vmor %vm2286, %vm2287
    %v2289 = vsel %vm2288, %v2280, %v2285
    %v2290 = vmul.f32 %v2239, %v2269
    %v2291 = vmul.f32 %v2240, %v2279
    %v2292 = vmul.f32 %v2241, %v2289
    %v2293 = vmul.f32 %v2290, %v1141
    %v2294 = vmul.f32 %v2291, %v1141
    %v2295 = vmul.f32 %v2292, %v1141
    %v2296 = vadd.f32 %v2293, %v1145
    %v2297 = vadd.f32 %v2294, %v1145
    %v2298 = vadd.f32 %v2295, %v1145
    %v2300 = vsel %vm289, %v2296, 0
    %v2303 = vsel %vm289, %v2297, 0
    %v2306 = vsel %vm289, %v2298, 0
    %2308 = vmatpush.msra.mxu0 0.0
    %2309 = vmatpush.msra.mxu0 0.0
    %2310 = vmatpush.msra.mxu0 0.0
    %2311 = vmatpush.msra.mxu0 0.0
    %2312 = vmatpush.msra.mxu0 0.0
    %2313 = vmatpush.msra.mxu0 0.0
    %2314 = vmatpush.msra.mxu0 0.0
    %2315 = vmatpush.msra.mxu0 0.0
    %2316 = vmatpush.msra.mxu0 0.0
    %2317 = vmatpush.msra.mxu0 0.0
    %2318 = vmatpush.msra.mxu0 0.0
    %2319 = vmatpush.msra.mxu0 0.0
    %2320 = vmatpush.msra.mxu0 %v181
    %2321 = vmatpush.msra.mxu0 %v180
    %2322 = vmatpush.msra.mxu0 %v179
    %2323 = vmatpush.msra.mxu0 %v178
    %2324 = vmatmul.f32.gmra.mxu0 %v2300
    %v2325 = vpop.f32.mrf.mxu0
    %v2326 = vadd.f32 %v1149, %v2325
    %2327 = vmatmul.f32.gmra.mxu0 %v2303
    %v2328 = vpop.f32.mrf.mxu0
    %v2329 = vadd.f32 %v1149, %v2328
    %2330 = vmatmul.f32.gmra.mxu0 %v2306
    %v2331 = vpop.f32.mrf.mxu0
    %v2332 = vadd.f32 %v1149, %v2331
    %2333 = vdwg.mxu0
    %v2334 = vmul.f32 %v2326, 0.5
    %v2335 = vmul.f32 %v2329, 0.5
    %v2336 = vmul.f32 %v2332, 0.5
    %v2337 = vmul.f32 %v2326, 0.70710677
    %v2338 = vmul.f32 %v2329, 0.70710677
    %v2339 = vmul.f32 %v2332, 0.70710677
    %v2340 = vmul.f32 %v2337, %v2337
    %v2341 = vmin.f32 16.0, %v2340
    %v2342 = vmul.f32 %v2341, 2.1237322e-06
    %v2343 = vadd.f32 %v2342, 0.00028619796
    %v2344 = vmul.f32 %v2341, %v2343
    %v2345 = vadd.f32 %v2344, 0.0036580483
    %v2346 = vmul.f32 %v2341, %v2345
    %v2347 = vadd.f32 %v2346, 0.05243302
    %v2348 = vmul.f32 %v2341, %v2347
    %v2349 = vadd.f32 %v2348, 0.18741608
    %v2350 = vmul.f32 %v2341, %v2349
    %v2351 = vadd.f32 %v2350, 1.1283791
    %v2352 = vmul.f32 %v2337, %v2351
    %v2353 = vmul.f32 %v2341, 3.8918573e-05
    %v2354 = vadd.f32 %v2353, 0.001143296
    %v2355 = vmul.f32 %v2341, %v2354
    %v2356 = vadd.f32 %v2355, 0.014752088
    %v2357 = vmul.f32 %v2341, %v2356
    %v2358 = vadd.f32 %v2357, 0.112945676
    %v2359 = vmul.f32 %v2341, %v2358
    %v2360 = vadd.f32 %v2359, 0.4994258
    %v2361 = vmul.f32 %v2341, %v2360
    %v2362 = vadd.f32 %v2361, 1.0
    %v2363 = vrcp.pop %v2362
    %v2364 = vmul.f32 %v2362, %v2363
    %v2365 = vsub.f32 1.0, %v2364
    %v2366 = vmul.f32 %v2363, %v2365
    %v2367 = vadd.f32 %v2363, %v2366
    %vm2368 = vweird.f32 %v2362
    %vm2369 = vweird.f32 %v2363
    %vm2370 = vmor %vm2368, %vm2369
    %v2371 = vsel %vm2370, %v2363, %v2367
    %v2372 = vand.u32 2147483647, %v2362
    %vm2373 = vcmp.eq.f32.partialorder %v2372, 8.507059e+37
    %v2374 = vand.u32 %v2362, 2147483648
    %v2375 = vor.u32 1.1754944e-38, %v2374
    %v2376 = vsel %vm2373, %v2375, %v2371
    %v2377 = vmul.f32 %v2352, %v2376
    %v2378 = vmin.f32 %v2377, 1.0
    %v2379 = vmax.f32 %v2378, -1.0
    %v2380 = vmul.f32 %v2338, %v2338
    %v2381 = vmin.f32 16.0, %v2380
    %v2382 = vmul.f32 %v2381, 2.1237322e-06
    %v2383 = vadd.f32 %v2382, 0.00028619796
    %v2384 = vmul.f32 %v2381, %v2383
    %v2385 = vadd.f32 %v2384, 0.0036580483
    %v2386 = vmul.f32 %v2381, %v2385
    %v2387 = vadd.f32 %v2386, 0.05243302
    %v2388 = vmul.f32 %v2381, %v2387
    %v2389 = vadd.f32 %v2388, 0.18741608
    %v2390 = vmul.f32 %v2381, %v2389
    %v2391 = vadd.f32 %v2390, 1.1283791
    %v2392 = vmul.f32 %v2338, %v2391
    %v2393 = vmul.f32 %v2381, 3.8918573e-05
    %v2394 = vadd.f32 %v2393, 0.001143296
    %v2395 = vmul.f32 %v2381, %v2394
    %v2396 = vadd.f32 %v2395, 0.014752088
    %v2397 = vmul.f32 %v2381, %v2396
    %v2398 = vadd.f32 %v2397, 0.112945676
    %v2399 = vmul.f32 %v2381, %v2398
    %v2400 = vadd.f32 %v2399, 0.4994258
    %v2401 = vmul.f32 %v2381, %v2400
    %v2402 = vadd.f32 %v2401, 1.0
    %v2403 = vrcp.pop %v2402
    %v2404 = vmul.f32 %v2402, %v2403
    %v2405 = vsub.f32 1.0, %v2404
    %v2406 = vmul.f32 %v2403, %v2405
    %v2407 = vadd.f32 %v2403, %v2406
    %vm2408 = vweird.f32 %v2402
    %vm2409 = vweird.f32 %v2403
    %vm2410 = vmor %vm2408, %vm2409
    %v2411 = vsel %vm2410, %v2403, %v2407
    %v2412 = vand.u32 2147483647, %v2402
    %vm2413 = vcmp.eq.f32.partialorder %v2412, 8.507059e+37
    %v2414 = vand.u32 %v2402, 2147483648
    %v2415 = vor.u32 1.1754944e-38, %v2414
    %v2416 = vsel %vm2413, %v2415, %v2411
    %v2417 = vmul.f32 %v2392, %v2416
    %v2418 = vmin.f32 %v2417, 1.0
    %v2419 = vmax.f32 %v2418, -1.0
    %v2420 = vmul.f32 %v2339, %v2339
    %v2421 = vmin.f32 16.0, %v2420
    %v2422 = vmul.f32 %v2421, 2.1237322e-06
    %v2423 = vadd.f32 %v2422, 0.00028619796
    %v2424 = vmul.f32 %v2421, %v2423
    %v2425 = vadd.f32 %v2424, 0.0036580483
    %v2426 = vmul.f32 %v2421, %v2425
    %v2427 = vadd.f32 %v2426, 0.05243302
    %v2428 = vmul.f32 %v2421, %v2427
    %v2429 = vadd.f32 %v2428, 0.18741608
    %v2430 = vmul.f32 %v2421, %v2429
    %v2431 = vadd.f32 %v2430, 1.1283791
    %v2432 = vmul.f32 %v2339, %v2431
    %v2433 = vmul.f32 %v2421, 3.8918573e-05
    %v2434 = vadd.f32 %v2433, 0.001143296
    %v2435 = vmul.f32 %v2421, %v2434
    %v2436 = vadd.f32 %v2435, 0.014752088
    %v2437 = vmul.f32 %v2421, %v2436
    %v2438 = vadd.f32 %v2437, 0.112945676
    %v2439 = vmul.f32 %v2421, %v2438
    %v2440 = vadd.f32 %v2439, 0.4994258
    %v2441 = vmul.f32 %v2421, %v2440
    %v2442 = vadd.f32 %v2441, 1.0
    %v2443 = vrcp.pop %v2442
    %v2444 = vmul.f32 %v2442, %v2443
    %v2445 = vsub.f32 1.0, %v2444
    %v2446 = vmul.f32 %v2443, %v2445
    %v2447 = vadd.f32 %v2443, %v2446
    %vm2448 = vweird.f32 %v2442
    %vm2449 = vweird.f32 %v2443
    %vm2450 = vmor %vm2448, %vm2449
    %v2451 = vsel %vm2450, %v2443, %v2447
    %v2452 = vand.u32 2147483647, %v2442
    %vm2453 = vcmp.eq.f32.partialorder %v2452, 8.507059e+37
    %v2454 = vand.u32 %v2442, 2147483648
    %v2455 = vor.u32 1.1754944e-38, %v2454
    %v2456 = vsel %vm2453, %v2455, %v2451
    %v2457 = vmul.f32 %v2432, %v2456
    %v2458 = vmin.f32 %v2457, 1.0
    %v2459 = vmax.f32 %v2458, -1.0
    %v2460 = vadd.f32 %v2379, 1.0
    %v2461 = vadd.f32 %v2419, 1.0
    %v2462 = vadd.f32 %v2459, 1.0
    %v2463 = vmul.f32 %v2334, %v2460
    %v2464 = vmul.f32 %v2335, %v2461
    %v2465 = vmul.f32 %v2336, %v2462
    %v2467 = vsel %vm1317, %v2463, 0
    %v2470 = vsel %vm1317, %v2464, 0
    %v2473 = vsel %vm1317, %v2465, 0
    %2475 = vmatpush.msra.mxu0 0.0
    %2476 = vmatpush.msra.mxu0 0.0
    %2477 = vmatpush.msra.mxu0 0.0
    %2478 = vmatpush.msra.mxu0 0.0
    %2479 = vmatpush.msra.mxu0 0.0
    %2480 = vmatpush.msra.mxu0 0.0
    %2481 = vmatpush.msra.mxu0 0.0
    %2482 = vmatpush.msra.mxu0 0.0
    %2483 = vmatpush.msra.mxu0 %v189
    %2484 = vmatpush.msra.mxu0 %v188
    %2485 = vmatpush.msra.mxu0 %v187
    %2486 = vmatpush.msra.mxu0 %v186
    %2487 = vmatpush.msra.mxu0 %v185
    %2488 = vmatpush.msra.mxu0 %v184
    %2489 = vmatpush.msra.mxu0 %v183
    %2490 = vmatpush.msra.mxu0 %v182
    %2491 = vmatmul.f32.gmra.mxu0 %v2467
    %v2492 = vpop.f32.mrf.mxu0
    %v2493 = vadd.f32 0.0, %v2492
    %2494 = vmatmul.f32.gmra.mxu0 %v2470
    %v2495 = vpop.f32.mrf.mxu0
    %2496 = vmatmul.f32.gmra.mxu0 %v2473
    %v2497 = vpop.f32.mrf.mxu0
    %2498 = vdwg.mxu0
    %v2499 = vadd.f32 %v2224, %v2493
    %v2500 = vadd.f32 %v2499, %v1352
    %v2501 = vsel %vm289, %v2500, 0.0
    %2502 = vadd.xlane.f32.xlu0 %v2501
    %v2503 = vpop.xlane.xlu0 %2502
    %v2504 = vmul.f32 %v2503, %v306
    %v2505 = vsub.f32 %v2500, %v2504
    %v2506 = vmul.f32 %v2505, %v2505
    %v2507 = vsel %vm289, %v2506, 0.0
    %2508 = vadd.xlane.f32.xlu0 %v2507
    %v2509 = vpop.xlane.xlu0 %2508
    %v2510 = vmul.f32 %v2509, %v306
    %v2511 = vadd.f32 %v2510, 1e-05
    %v2512 = vrsqrt.pop %v2511
    %v2513 = vmul.f32 %v2512, %v2511
    %v2514 = vmul.f32 %v2513, %v2512
    %v2515 = vmul.f32 0.5, %v2514
    %v2516 = vsub.f32 1.5, %v2515
    %v2517 = vmul.f32 %v2512, %v2516
    %vm2518 = vweird.f32 %v2511
    %vm2519 = vweird.f32 %v2512
    %vm2520 = vmor %vm2518, %vm2519
    %v2521 = vsel %vm2520, %v2512, %v2517
    %v2522 = vmul.f32 %v2505, %v2521
    %v2523 = vmul.f32 %v2522, %v1376
    %v2524 = vadd.f32 %v2523, %v1378
    %v2525 = vld [vmem:[#allocation2 + $0x120] sm:$0xff]
    %v2526 = vld [vmem:[#allocation2 + $0x128] sm:$0xff]
    %v2527 = vld [vmem:[#allocation2 + $0x130] sm:$0xf]
    %v2528 = vld [vmem:[#allocation2 + $0x138] sm:$0xff]
    %v2529 = vld [vmem:[#allocation2 + $0x140] sm:$0xff]
    %v2530 = vld [vmem:[#allocation2 + $0x148] sm:$0xf]
    %v2532 = vsel %vm48, %v2525, 0
    %v2535 = vsel %vm48, %v2526, 0
    %v2538 = vsel %vm48, %v2527, 0
    %2540 = vmatpush.msra.mxu0 0.0
    %2541 = vmatpush.msra.mxu0 0.0
    %2542 = vmatpush.msra.mxu0 0.0
    %2543 = vmatpush.msra.mxu0 0.0
    %2544 = vmatpush.msra.mxu0 0.0
    %2545 = vmatpush.msra.mxu0 0.0
    %2546 = vmatpush.msra.mxu0 0.0
    %2547 = vmatpush.msra.mxu0 0.0
    %2548 = vmatpush.msra.mxu0 0.0
    %2549 = vmatpush.msra.mxu0 0.0
    %2550 = vmatpush.msra.mxu0 0.0
    %2551 = vmatpush.msra.mxu0 %v60
    %2552 = vmatpush.msra.mxu0 %v30
    %2553 = vmatpush.msra.mxu0 %v29
    %2554 = vmatpush.msra.mxu0 %v28
    %2555 = vmatpush.msra.mxu0 %v27
    %2556 = vmatmul.f32.gmra.mxu0 %v2532
    %v2557 = vpop.f32.mrf.mxu0
    %v2558 = vadd.f32 %v2528, %v2557
    %2559 = vmatmul.f32.gmra.mxu0 %v2535
    %v2560 = vpop.f32.mrf.mxu0
    %v2561 = vadd.f32 %v2529, %v2560
    %2562 = vmatmul.f32.gmra.mxu0 %v2538
    %v2563 = vpop.f32.mrf.mxu0
    %v2564 = vadd.f32 %v2530, %v2563
    %2565 = vdwg.mxu0
    %v2566 = vmax.f32 %v2558, 0.0
    %v2567 = vmax.f32 %v2561, 0.0
    %v2568 = vmax.f32 %v2564, 0.0
    %2572 = vrot.lane.b32.xlu0 %v2566, 127
    %v2573 = vpop.permute.xlu0 %2572
    %2574 = vrot.lane.b32.xlu0 %v2567, 127
    %v2575 = vpop.permute.xlu0 %2574
    %2576 = vrot.lane.b32.xlu0 %v2568, 127
    %v2577 = vpop.permute.xlu0 %2576
    %v2581 = vmax.f32 %v2566, %v2573
    %v2582 = vmax.f32 %v2567, %v2575
    %v2583 = vmax.f32 %v2568, %v2577
    %2584 = vrot.lane.b32.xlu0 %v2566, 126
    %v2585 = vpop.permute.xlu0 %2584
    %2586 = vrot.lane.b32.xlu0 %v2567, 126
    %v2587 = vpop.permute.xlu0 %2586
    %2588 = vrot.lane.b32.xlu0 %v2568, 126
    %v2589 = vpop.permute.xlu0 %2588
    %v2593 = vmax.f32 %v2581, %v2585
    %v2594 = vmax.f32 %v2582, %v2587
    %v2595 = vmax.f32 %v2583, %v2589
    %2596 = vrot.lane.b32.xlu0 %v2566, 125
    %v2597 = vpop.permute.xlu0 %2596
    %2598 = vrot.lane.b32.xlu0 %v2567, 125
    %v2599 = vpop.permute.xlu0 %2598
    %2600 = vrot.lane.b32.xlu0 %v2568, 125
    %v2601 = vpop.permute.xlu0 %2600
    %v2605 = vmax.f32 %v2593, %v2597
    %v2606 = vmax.f32 %v2594, %v2599
    %v2607 = vmax.f32 %v2595, %v2601
    %v2609 = vsel %vm130, %v2605, 0
    %v2612 = vsel %vm130, %v2606, 0
    %v2615 = vsel %vm130, %v2607, 0
    %2617 = vmatpush.msra.mxu0 0.0
    %2618 = vmatpush.msra.mxu0 0.0
    %2619 = vmatpush.msra.mxu0 0.0
    %2620 = vmatpush.msra.mxu0 0.0
    %2621 = vmatpush.msra.mxu0 0.0
    %2622 = vmatpush.msra.mxu0 0.0
    %2623 = vmatpush.msra.mxu0 %v142
    %2624 = vmatpush.msra.mxu0 %v40
    %2625 = vmatpush.msra.mxu0 %v39
    %2626 = vmatpush.msra.mxu0 %v38
    %2627 = vmatpush.msra.mxu0 %v37
    %2628 = vmatpush.msra.mxu0 %v36
    %2629 = vmatpush.msra.mxu0 %v35
    %2630 = vmatpush.msra.mxu0 %v34
    %2631 = vmatpush.msra.mxu0 %v33
    %2632 = vmatpush.msra.mxu0 %v32
    %2633 = vmatmul.f32.gmra.mxu0 %v2609
    %v2634 = vpop.f32.mrf.mxu0
    %v2635 = vadd.f32 0.0, %v2634
    %2636 = vmatmul.f32.gmra.mxu0 %v2612
    %v2637 = vpop.f32.mrf.mxu0
    %v2638 = vadd.f32 0.0, %v2637
    %2639 = vmatmul.f32.gmra.mxu0 %v2615
    %v2640 = vpop.f32.mrf.mxu0
    %v2641 = vadd.f32 0.0, %v2640
    %2642 = vdwg.mxu0
    %v2643 = vld [vmem:[#allocation2 + $0x158] sm:$0xff]
    %v2644 = vld [vmem:[#allocation2 + $0x160] sm:$0xff]
    %v2645 = vld [vmem:[#allocation2 + $0x168] sm:$0xff]
    %v2646 = vld [vmem:[#allocation2 + $0x170] sm:$0xff]
    %v2647 = vld [vmem:[#allocation2 + $0x178] sm:$0xff]
    %v2648 = vld [vmem:[#allocation2 + $0x180] sm:$0xff]
    %v2649 = vld [vmem:[#allocation2 + $0x188] sm:$0xff]
    %v2650 = vld [vmem:[#allocation2 + $0x190] sm:$0xff]
    %v2651 = vld [vmem:[#allocation2 + $0x198] sm:$0xff]
    %v2652 = vld [vmem:[#allocation2 + $0x1a0] sm:$0xff]
    %v2653 = vld [vmem:[#allocation2 + $0x1a8] sm:$0xff]
    %v2654 = vld [vmem:[#allocation2 + $0x1b0] sm:$0xff]
    %v2655 = vld [vmem:[#allocation2 + $0x1b8] sm:$0xff]
    %v2656 = vld [vmem:[#allocation2 + $0x1c0] sm:$0xff]
    %v2657 = vld [vmem:[#allocation2 + $0x1c8] sm:$0xff]
    %v2658 = vld [vmem:[#allocation2 + $0x1d0] sm:$0xff]
    %v2659 = vld [vmem:[#allocation2 + $0x1d8] sm:$0xff]
    %v2660 = vld [vmem:[#allocation2 + $0x1e0] sm:$0xff]
    %v2661 = vld [vmem:[#allocation2 + $0x1e8] sm:$0xff]
    %v2662 = vld [vmem:[#allocation2 + $0x1f0] sm:$0xff]
    %v2663 = vld [vmem:[#allocation2 + $0x150] sm:$0x3f]
    %v2664 = vld [vmem:[#allocation2 + $0x1f8] sm:$0x1]
    %v2665 = vld [vmem:[#allocation2 + $0x1f9] sm:$0x1]
    %v2666 = vld [vmem:[#allocation2 + $0x1fa] sm:$0x1]
    %v2667 = vld [vmem:[#allocation2 + $0x1fb] sm:$0x1]
    %v2668 = vld [vmem:[#allocation2 + $0x1fc] sm:$0x1]
    %v2669 = vld [vmem:[#allocation2 + $0x1fd] sm:$0x1]
    %v2670 = vld [vmem:[#allocation2 + $0x1fe] sm:$0x1]
    %v2671 = vld [vmem:[#allocation2 + $0x1ff] sm:$0x1]
    %v2672 = vld [vmem:[#allocation2 + $0x200] sm:$0x1]
    %v2673 = vld [vmem:[#allocation2 + $0x208] sm:$0x3f]
    %v2674 = vld [vmem:[#allocation2 + $0x228] sm:$0xff]
    %v2675 = vld [vmem:[#allocation2 + $0x230] sm:$0x3]
    %v2677 = vsel %vm207, %v2673, 0
    %v2680 = vsel %vm58, %v2641, 0
    %2682 = vmatpush.msra.mxu0 0.0
    %2683 = vmatpush.msra.mxu0 0.0
    %2684 = vmatpush.msra.mxu0 0.0
    %2685 = vmatpush.msra.mxu0 0.0
    %2686 = vmatpush.msra.mxu0 0.0
    %2687 = vmatpush.msra.mxu0 0.0
    %2688 = vmatpush.msra.mxu0 0.0
    %2689 = vmatpush.msra.mxu0 0.0
    %2690 = vmatpush.msra.mxu0 0.0
    %2691 = vmatpush.msra.mxu0 0.0
    %2692 = vmatpush.msra.mxu0 0.0
    %2693 = vmatpush.msra.mxu0 0.0
    %2694 = vmatpush.msra.mxu0 0.0
    %2695 = vmatpush.msra.mxu0 %v2680
    %2696 = vmatpush.msra.mxu0 %v2638
    %2697 = vmatpush.msra.mxu0 %v2635
    %2698 = vmatmul.f32.gmra.mxu0 %v2677
    %v2699 = vpop.f32.mrf.mxu0
    %v2700 = vadd.f32 0.0, %v2699
    %2701 = vdwg.mxu0
    %v2703 = vsel %vm246, %v2700, 0
    %v2706 = vsel %vm256, %v2675, 0
    %2708 = vmatpush.msra.mxu0 0.0
    %2709 = vmatpush.msra.mxu0 0.0
    %2710 = vmatpush.msra.mxu0 0.0
    %2711 = vmatpush.msra.mxu0 0.0
    %2712 = vmatpush.msra.mxu0 0.0
    %2713 = vmatpush.msra.mxu0 0.0
    %2714 = vmatpush.msra.mxu0 0.0
    %2715 = vmatpush.msra.mxu0 0.0
    %2716 = vmatpush.msra.mxu0 0.0
    %2717 = vmatpush.msra.mxu0 0.0
    %2718 = vmatpush.msra.mxu0 0.0
    %2719 = vmatpush.msra.mxu0 0.0
    %2720 = vmatpush.msra.mxu0 0.0
    %2721 = vmatpush.msra.mxu0 0.0
    %2722 = vmatpush.msra.mxu0 %v2706
    %2723 = vmatpush.msra.mxu0 %v2674
    %2724 = vmatmul.f32.gmra.mxu0 %v2703
    %v2725 = vpop.f32.mrf.mxu0
    %v2726 = vadd.f32 0.0, %v2725
    %2727 = vdwg.mxu0
    %v2728 = vadd.f32 %v2663, %v2726
    %v2729 = vld [vmem:[#allocation2 + $0x210] sm:$0x3f]
    %v2730 = vld [vmem:[#allocation2 + $0x238] sm:$0xff]
    %v2731 = vld [vmem:[#allocation2 + $0x240] sm:$0x3]
    %v2733 = vsel %vm207, %v2729, 0
    %2735 = vmatpush.msra.mxu0 0.0
    %2736 = vmatpush.msra.mxu0 0.0
    %2737 = vmatpush.msra.mxu0 0.0
    %2738 = vmatpush.msra.mxu0 0.0
    %2739 = vmatpush.msra.mxu0 0.0
    %2740 = vmatpush.msra.mxu0 0.0
    %2741 = vmatpush.msra.mxu0 0.0
    %2742 = vmatpush.msra.mxu0 0.0
    %2743 = vmatpush.msra.mxu0 0.0
    %2744 = vmatpush.msra.mxu0 0.0
    %2745 = vmatpush.msra.mxu0 0.0
    %2746 = vmatpush.msra.mxu0 0.0
    %2747 = vmatpush.msra.mxu0 0.0
    %2748 = vmatpush.msra.mxu0 %v2680
    %2749 = vmatpush.msra.mxu0 %v2638
    %2750 = vmatpush.msra.mxu0 %v2635
    %2751 = vmatmul.f32.gmra.mxu0 %v2733
    %v2752 = vpop.f32.mrf.mxu0
    %v2753 = vadd.f32 0.0, %v2752
    %2754 = vdwg.mxu0
    %v2756 = vsel %vm246, %v2753, 0
    %v2759 = vsel %vm256, %v2731, 0
    %2761 = vmatpush.msra.mxu0 0.0
    %2762 = vmatpush.msra.mxu0 0.0
    %2763 = vmatpush.msra.mxu0 0.0
    %2764 = vmatpush.msra.mxu0 0.0
    %2765 = vmatpush.msra.mxu0 0.0
    %2766 = vmatpush.msra.mxu0 0.0
    %2767 = vmatpush.msra.mxu0 0.0
    %2768 = vmatpush.msra.mxu0 0.0
    %2769 = vmatpush.msra.mxu0 0.0
    %2770 = vmatpush.msra.mxu0 0.0
    %2771 = vmatpush.msra.mxu0 0.0
    %2772 = vmatpush.msra.mxu0 0.0
    %2773 = vmatpush.msra.mxu0 0.0
    %2774 = vmatpush.msra.mxu0 0.0
    %2775 = vmatpush.msra.mxu0 %v2759
    %2776 = vmatpush.msra.mxu0 %v2730
    %2777 = vmatmul.f32.gmra.mxu0 %v2756
    %v2778 = vpop.f32.mrf.mxu0
    %v2779 = vadd.f32 0.0, %v2778
    %2780 = vdwg.mxu0
    %v2781 = vadd.f32 %v2728, %v2779
    %v2782 = vld [vmem:[#allocation2 + $0x218] sm:$0x3f]
    %v2783 = vld [vmem:[#allocation2 + $0x248] sm:$0xff]
    %v2784 = vld [vmem:[#allocation2 + $0x250] sm:$0x3]
    %v2786 = vsel %vm207, %v2782, 0
    %2788 = vmatpush.msra.mxu0 0.0
    %2789 = vmatpush.msra.mxu0 0.0
    %2790 = vmatpush.msra.mxu0 0.0
    %2791 = vmatpush.msra.mxu0 0.0
    %2792 = vmatpush.msra.mxu0 0.0
    %2793 = vmatpush.msra.mxu0 0.0
    %2794 = vmatpush.msra.mxu0 0.0
    %2795 = vmatpush.msra.mxu0 0.0
    %2796 = vmatpush.msra.mxu0 0.0
    %2797 = vmatpush.msra.mxu0 0.0
    %2798 = vmatpush.msra.mxu0 0.0
    %2799 = vmatpush.msra.mxu0 0.0
    %2800 = vmatpush.msra.mxu0 0.0
    %2801 = vmatpush.msra.mxu0 %v2680
    %2802 = vmatpush.msra.mxu0 %v2638
    %2803 = vmatpush.msra.mxu0 %v2635
    %2804 = vmatmul.f32.gmra.mxu0 %v2786
    %v2805 = vpop.f32.mrf.mxu0
    %v2806 = vadd.f32 0.0, %v2805
    %2807 = vdwg.mxu0
    %v2809 = vsel %vm246, %v2806, 0
    %v2812 = vsel %vm256, %v2784, 0
    %2814 = vmatpush.msra.mxu0 0.0
    %2815 = vmatpush.msra.mxu0 0.0
    %2816 = vmatpush.msra.mxu0 0.0
    %2817 = vmatpush.msra.mxu0 0.0
    %2818 = vmatpush.msra.mxu0 0.0
    %2819 = vmatpush.msra.mxu0 0.0
    %2820 = vmatpush.msra.mxu0 0.0
    %2821 = vmatpush.msra.mxu0 0.0
    %2822 = vmatpush.msra.mxu0 0.0
    %2823 = vmatpush.msra.mxu0 0.0
    %2824 = vmatpush.msra.mxu0 0.0
    %2825 = vmatpush.msra.mxu0 0.0
    %2826 = vmatpush.msra.mxu0 0.0
    %2827 = vmatpush.msra.mxu0 0.0
    %2828 = vmatpush.msra.mxu0 %v2812
    %2829 = vmatpush.msra.mxu0 %v2783
    %2830 = vmatmul.f32.gmra.mxu0 %v2809
    %v2831 = vpop.f32.mrf.mxu0
    %v2832 = vadd.f32 0.0, %v2831
    %2833 = vdwg.mxu0
    %v2834 = vadd.f32 %v2781, %v2832
    %v2835 = vld [vmem:[#allocation2 + $0x220] sm:$0x3f]
    %v2836 = vld [vmem:[#allocation2 + $0x258] sm:$0xff]
    %v2837 = vld [vmem:[#allocation2 + $0x260] sm:$0x3]
    %v2839 = vsel %vm207, %v2835, 0
    %2841 = vmatpush.msra.mxu0 0.0
    %2842 = vmatpush.msra.mxu0 0.0
    %2843 = vmatpush.msra.mxu0 0.0
    %2844 = vmatpush.msra.mxu0 0.0
    %2845 = vmatpush.msra.mxu0 0.0
    %2846 = vmatpush.msra.mxu0 0.0
    %2847 = vmatpush.msra.mxu0 0.0
    %2848 = vmatpush.msra.mxu0 0.0
    %2849 = vmatpush.msra.mxu0 0.0
    %2850 = vmatpush.msra.mxu0 0.0
    %2851 = vmatpush.msra.mxu0 0.0
    %2852 = vmatpush.msra.mxu0 0.0
    %2853 = vmatpush.msra.mxu0 0.0
    %2854 = vmatpush.msra.mxu0 %v2680
    %2855 = vmatpush.msra.mxu0 %v2638
    %2856 = vmatpush.msra.mxu0 %v2635
    %2857 = vmatmul.f32.gmra.mxu0 %v2839
    %v2858 = vpop.f32.mrf.mxu0
    %v2859 = vadd.f32 0.0, %v2858
    %2860 = vdwg.mxu0
    %v2862 = vsel %vm246, %v2859, 0
    %v2865 = vsel %vm256, %v2837, 0
    %2867 = vmatpush.msra.mxu0 0.0
    %2868 = vmatpush.msra.mxu0 0.0
    %2869 = vmatpush.msra.mxu0 0.0
    %2870 = vmatpush.msra.mxu0 0.0
    %2871 = vmatpush.msra.mxu0 0.0
    %2872 = vmatpush.msra.mxu0 0.0
    %2873 = vmatpush.msra.mxu0 0.0
    %2874 = vmatpush.msra.mxu0 0.0
    %2875 = vmatpush.msra.mxu0 0.0
    %2876 = vmatpush.msra.mxu0 0.0
    %2877 = vmatpush.msra.mxu0 0.0
    %2878 = vmatpush.msra.mxu0 0.0
    %2879 = vmatpush.msra.mxu0 0.0
    %2880 = vmatpush.msra.mxu0 0.0
    %2881 = vmatpush.msra.mxu0 %v2865
    %2882 = vmatpush.msra.mxu0 %v2836
    %2883 = vmatmul.f32.gmra.mxu0 %v2862
    %v2884 = vpop.f32.mrf.mxu0
    %v2885 = vadd.f32 0.0, %v2884
    %2886 = vdwg.mxu0
    %v2887 = vadd.f32 %v2834, %v2885
    %vm2888 = vcmask 259072
    %v2889 = vsel %vm2888, %v2887, 0.0
    %2890 = vadd.xlane.f32.xlu0 %v2889
    %v2891 = vpop.xlane.xlu0 %2890
    %v2892 = vmul.f32 %v2891, %v306
    %v2893 = vsub.f32 %v2887, %v2892
    %v2894 = vmul.f32 %v2893, %v2893
    %v2895 = vsel %vm2888, %v2894, 0.0
    %2896 = vadd.xlane.f32.xlu0 %v2895
    %v2897 = vpop.xlane.xlu0 %2896
    %v2898 = vmul.f32 %v2897, %v306
    %v2899 = vadd.f32 %v2898, 1e-05
    %v2900 = vrsqrt.pop %v2899
    %v2901 = vmul.f32 %v2900, %v2899
    %v2902 = vmul.f32 %v2901, %v2900
    %v2903 = vmul.f32 0.5, %v2902
    %v2904 = vsub.f32 1.5, %v2903
    %v2905 = vmul.f32 %v2900, %v2904
    %vm2906 = vweird.f32 %v2899
    %vm2907 = vweird.f32 %v2900
    %vm2908 = vmor %vm2906, %vm2907
    %v2909 = vsel %vm2908, %v2900, %v2905
    %v2910 = vmul.f32 %v2893, %v2909
    %v2911 = vperm.slane %v2664, 0
    %v2912 = vmul.f32 %v2910, %v2911
    %v2913 = vperm.slane %v2665, 0
    %v2914 = vadd.f32 %v2912, %v2913
    %v2916 = vsel %vm289, %v2914, 0
    %2918 = vmatpush.msra.mxu0 0.0
    %2919 = vmatpush.msra.mxu0 0.0
    %2920 = vmatpush.msra.mxu0 0.0
    %2921 = vmatpush.msra.mxu0 0.0
    %2922 = vmatpush.msra.mxu0 0.0
    %2923 = vmatpush.msra.mxu0 0.0
    %2924 = vmatpush.msra.mxu0 0.0
    %2925 = vmatpush.msra.mxu0 0.0
    %2926 = vmatpush.msra.mxu0 0.0
    %2927 = vmatpush.msra.mxu0 0.0
    %2928 = vmatpush.msra.mxu0 0.0
    %2929 = vmatpush.msra.mxu0 0.0
    %2930 = vmatpush.msra.mxu0 %v2646
    %2931 = vmatpush.msra.mxu0 %v2645
    %2932 = vmatpush.msra.mxu0 %v2644
    %2933 = vmatpush.msra.mxu0 %v2643
    %2934 = vmatmul.f32.gmra.mxu0 %v2916
    %v2935 = vpop.f32.mrf.mxu0
    %v2936 = vadd.f32 0.0, %v2935
    %2937 = vdwg.mxu0
    %2939 = vrot.lane.b32.xlu0 %v2936, 96
    %v2940 = vpop.permute.xlu0 %2939
    %v2941 = vsel %vm416, %v2936, 0
    %v2943 = vsel %vm416, %v2940, 0
    %2945 = vmatpush.xpose.msra.mxu0 0.0
    %2946 = vmatpush.xpose.msra.mxu0 0.0
    %2947 = vmatpush.xpose.msra.mxu0 0.0
    %2948 = vmatpush.xpose.msra.mxu0 0.0
    %2949 = vmatpush.xpose.msra.mxu0 0.0
    %2950 = vmatpush.xpose.msra.mxu0 0.0
    %2951 = vmatpush.xpose.msra.mxu0 0.0
    %2952 = vmatpush.xpose.msra.mxu0 0.0
    %2953 = vmatpush.xpose.msra.mxu0 0.0
    %2954 = vmatpush.xpose.msra.mxu0 0.0
    %2955 = vmatpush.xpose.msra.mxu0 0.0
    %2956 = vmatpush.xpose.msra.mxu0 0.0
    %2957 = vmatpush.xpose.msra.mxu0 0.0
    %2958 = vmatpush.xpose.msra.mxu0 0.0
    %2959 = vmatpush.xpose.msra.mxu0 0.0
    %2960 = vmatpush.xpose.msra.mxu0 %v2943
    %2961 = vmatmul.f32.gmra.mxu0 %v2941
    %v2962 = vpop.f32.mrf.mxu0
    %v2963 = vadd.f32 0.0, %v2962
    %2964 = vdwg.mxu0
    %vm2965 = vcmask 46080
    %v2966 = vsel %vm2965, %v2963, -inf
    %2967 = vmax.xlane.f32.xlu0 %v2966
    %v2968 = vpop.xlane.xlu0 %2967
    %v2969 = vsub.f32 %v2963, %v2968
    %v2970 = vmul.f32 %v2969, 1.442695
    %v2971 = vpow.pop %v2970
    %v2972 = vsel %vm2965, %v2971, 0.0
    %2973 = vadd.xlane.f32.xlu0 %v2972
    %v2974 = vpop.xlane.xlu0 %2973
    %v2975 = vrcp.pop %v2974
    %v2976 = vmul.f32 %v2971, %v2975
    %2977 = vrot.lane.b32.xlu0 %v2936, 64
    %v2978 = vpop.permute.xlu0 %2977
    %vm2979 = vcmask 48128
    %v2981 = vsel %vm2979, %v2976, 0
    %vm2983 = vcmask 1045504
    %v2984 = vsel %vm2983, %v2978, 0
    %2986 = vmatpush.msra.mxu0 0.0
    %2987 = vmatpush.msra.mxu0 0.0
    %2988 = vmatpush.msra.mxu0 0.0
    %2989 = vmatpush.msra.mxu0 0.0
    %2990 = vmatpush.msra.mxu0 0.0
    %2991 = vmatpush.msra.mxu0 0.0
    %2992 = vmatpush.msra.mxu0 0.0
    %2993 = vmatpush.msra.mxu0 0.0
    %2994 = vmatpush.msra.mxu0 0.0
    %2995 = vmatpush.msra.mxu0 0.0
    %2996 = vmatpush.msra.mxu0 0.0
    %2997 = vmatpush.msra.mxu0 0.0
    %2998 = vmatpush.msra.mxu0 0.0
    %2999 = vmatpush.msra.mxu0 0.0
    %3000 = vmatpush.msra.mxu0 0.0
    %3001 = vmatpush.msra.mxu0 %v2984
    %3002 = vmatmul.f32.gmra.mxu0 %v2981
    %v3003 = vpop.f32.mrf.mxu0
    %v3004 = vadd.f32 0.0, %v3003
    %3005 = vdwg.mxu0
    %v3007 = vsel %vm416, %v3004, 0
    %3009 = vmatpush.msra.mxu0 0.0
    %3010 = vmatpush.msra.mxu0 0.0
    %3011 = vmatpush.msra.mxu0 0.0
    %3012 = vmatpush.msra.mxu0 0.0
    %3013 = vmatpush.msra.mxu0 0.0
    %3014 = vmatpush.msra.mxu0 0.0
    %3015 = vmatpush.msra.mxu0 0.0
    %3016 = vmatpush.msra.mxu0 0.0
    %3017 = vmatpush.msra.mxu0 0.0
    %3018 = vmatpush.msra.mxu0 0.0
    %3019 = vmatpush.msra.mxu0 0.0
    %3020 = vmatpush.msra.mxu0 0.0
    %3021 = vmatpush.msra.mxu0 0.0
    %3022 = vmatpush.msra.mxu0 0.0
    %3023 = vmatpush.msra.mxu0 0.0
    %3024 = vmatpush.msra.mxu0 %v2647
    %3025 = vmatmul.f32.gmra.mxu0 %v3007
    %v3026 = vpop.f32.mrf.mxu0
    %v3027 = vadd.f32 0.0, %v3026
    %3028 = vdwg.mxu0
    %v3029 = vadd.f32 %v2887, %v3027
    %3030 = vrot.lane.b32.xlu0 %v2936, 120
    %v3031 = vpop.permute.xlu0 %3030
    %3032 = vrot.lane.b32.xlu0 %v2936, 88
    %v3033 = vpop.permute.xlu0 %3032
    %v3034 = vsel %vm416, %v3031, 0
    %v3036 = vsel %vm416, %v3033, 0
    %3038 = vmatpush.xpose.msra.mxu0 0.0
    %3039 = vmatpush.xpose.msra.mxu0 0.0
    %3040 = vmatpush.xpose.msra.mxu0 0.0
    %3041 = vmatpush.xpose.msra.mxu0 0.0
    %3042 = vmatpush.xpose.msra.mxu0 0.0
    %3043 = vmatpush.xpose.msra.mxu0 0.0
    %3044 = vmatpush.xpose.msra.mxu0 0.0
    %3045 = vmatpush.xpose.msra.mxu0 0.0
    %3046 = vmatpush.xpose.msra.mxu0 0.0
    %3047 = vmatpush.xpose.msra.mxu0 0.0
    %3048 = vmatpush.xpose.msra.mxu0 0.0
    %3049 = vmatpush.xpose.msra.mxu0 0.0
    %3050 = vmatpush.xpose.msra.mxu0 0.0
    %3051 = vmatpush.xpose.msra.mxu0 0.0
    %3052 = vmatpush.xpose.msra.mxu0 0.0
    %3053 = vmatpush.xpose.msra.mxu0 %v3036
    %3054 = vmatmul.f32.gmra.mxu0 %v3034
    %v3055 = vpop.f32.mrf.mxu0
    %v3056 = vadd.f32 0.0, %v3055
    %3057 = vdwg.mxu0
    %v3058 = vsel %vm2965, %v3056, -inf
    %3059 = vmax.xlane.f32.xlu0 %v3058
    %v3060 = vpop.xlane.xlu0 %3059
    %v3061 = vsub.f32 %v3056, %v3060
    %v3062 = vmul.f32 %v3061, 1.442695
    %v3063 = vpow.pop %v3062
    %v3064 = vsel %vm2965, %v3063, 0.0
    %3065 = vadd.xlane.f32.xlu0 %v3064
    %v3066 = vpop.xlane.xlu0 %3065
    %v3067 = vrcp.pop %v3066
    %v3068 = vmul.f32 %v3063, %v3067
    %3069 = vrot.lane.b32.xlu0 %v2936, 56
    %v3070 = vpop.permute.xlu0 %3069
    %v3072 = vsel %vm2979, %v3068, 0
    %v3074 = vsel %vm2983, %v3070, 0
    %3076 = vmatpush.msra.mxu0 0.0
    %3077 = vmatpush.msra.mxu0 0.0
    %3078 = vmatpush.msra.mxu0 0.0
    %3079 = vmatpush.msra.mxu0 0.0
    %3080 = vmatpush.msra.mxu0 0.0
    %3081 = vmatpush.msra.mxu0 0.0
    %3082 = vmatpush.msra.mxu0 0.0
    %3083 = vmatpush.msra.mxu0 0.0
    %3084 = vmatpush.msra.mxu0 0.0
    %3085 = vmatpush.msra.mxu0 0.0
    %3086 = vmatpush.msra.mxu0 0.0
    %3087 = vmatpush.msra.mxu0 0.0
    %3088 = vmatpush.msra.mxu0 0.0
    %3089 = vmatpush.msra.mxu0 0.0
    %3090 = vmatpush.msra.mxu0 0.0
    %3091 = vmatpush.msra.mxu0 %v3074
    %3092 = vmatmul.f32.gmra.mxu0 %v3072
    %v3093 = vpop.f32.mrf.mxu0
    %v3094 = vadd.f32 0.0, %v3093
    %3095 = vdwg.mxu0
    %v3097 = vsel %vm416, %v3094, 0
    %3099 = vmatpush.msra.mxu0 0.0
    %3100 = vmatpush.msra.mxu0 0.0
    %3101 = vmatpush.msra.mxu0 0.0
    %3102 = vmatpush.msra.mxu0 0.0
    %3103 = vmatpush.msra.mxu0 0.0
    %3104 = vmatpush.msra.mxu0 0.0
    %3105 = vmatpush.msra.mxu0 0.0
    %3106 = vmatpush.msra.mxu0 0.0
    %3107 = vmatpush.msra.mxu0 0.0
    %3108 = vmatpush.msra.mxu0 0.0
    %3109 = vmatpush.msra.mxu0 0.0
    %3110 = vmatpush.msra.mxu0 0.0
    %3111 = vmatpush.msra.mxu0 0.0
    %3112 = vmatpush.msra.mxu0 0.0
    %3113 = vmatpush.msra.mxu0 0.0
    %3114 = vmatpush.msra.mxu0 %v2648
    %3115 = vmatmul.f32.gmra.mxu0 %v3097
    %v3116 = vpop.f32.mrf.mxu0
    %v3117 = vadd.f32 0.0, %v3116
    %3118 = vdwg.mxu0
    %v3119 = vadd.f32 %v3029, %v3117
    %3120 = vrot.lane.b32.xlu0 %v2936, 112
    %v3121 = vpop.permute.xlu0 %3120
    %3122 = vrot.lane.b32.xlu0 %v2936, 80
    %v3123 = vpop.permute.xlu0 %3122
    %v3124 = vsel %vm416, %v3121, 0
    %v3126 = vsel %vm416, %v3123, 0
    %3128 = vmatpush.xpose.msra.mxu0 0.0
    %3129 = vmatpush.xpose.msra.mxu0 0.0
    %3130 = vmatpush.xpose.msra.mxu0 0.0
    %3131 = vmatpush.xpose.msra.mxu0 0.0
    %3132 = vmatpush.xpose.msra.mxu0 0.0
    %3133 = vmatpush.xpose.msra.mxu0 0.0
    %3134 = vmatpush.xpose.msra.mxu0 0.0
    %3135 = vmatpush.xpose.msra.mxu0 0.0
    %3136 = vmatpush.xpose.msra.mxu0 0.0
    %3137 = vmatpush.xpose.msra.mxu0 0.0
    %3138 = vmatpush.xpose.msra.mxu0 0.0
    %3139 = vmatpush.xpose.msra.mxu0 0.0
    %3140 = vmatpush.xpose.msra.mxu0 0.0
    %3141 = vmatpush.xpose.msra.mxu0 0.0
    %3142 = vmatpush.xpose.msra.mxu0 0.0
    %3143 = vmatpush.xpose.msra.mxu0 %v3126
    %3144 = vmatmul.f32.gmra.mxu0 %v3124
    %v3145 = vpop.f32.mrf.mxu0
    %v3146 = vadd.f32 0.0, %v3145
    %3147 = vdwg.mxu0
    %v3148 = vsel %vm2965, %v3146, -inf
    %3149 = vmax.xlane.f32.xlu0 %v3148
    %v3150 = vpop.xlane.xlu0 %3149
    %v3151 = vsub.f32 %v3146, %v3150
    %v3152 = vmul.f32 %v3151, 1.442695
    %v3153 = vpow.pop %v3152
    %v3154 = vsel %vm2965, %v3153, 0.0
    %3155 = vadd.xlane.f32.xlu0 %v3154
    %v3156 = vpop.xlane.xlu0 %3155
    %v3157 = vrcp.pop %v3156
    %v3158 = vmul.f32 %v3153, %v3157
    %3159 = vrot.lane.b32.xlu0 %v2936, 48
    %v3160 = vpop.permute.xlu0 %3159
    %v3162 = vsel %vm2979, %v3158, 0
    %v3164 = vsel %vm2983, %v3160, 0
    %3166 = vmatpush.msra.mxu0 0.0
    %3167 = vmatpush.msra.mxu0 0.0
    %3168 = vmatpush.msra.mxu0 0.0
    %3169 = vmatpush.msra.mxu0 0.0
    %3170 = vmatpush.msra.mxu0 0.0
    %3171 = vmatpush.msra.mxu0 0.0
    %3172 = vmatpush.msra.mxu0 0.0
    %3173 = vmatpush.msra.mxu0 0.0
    %3174 = vmatpush.msra.mxu0 0.0
    %3175 = vmatpush.msra.mxu0 0.0
    %3176 = vmatpush.msra.mxu0 0.0
    %3177 = vmatpush.msra.mxu0 0.0
    %3178 = vmatpush.msra.mxu0 0.0
    %3179 = vmatpush.msra.mxu0 0.0
    %3180 = vmatpush.msra.mxu0 0.0
    %3181 = vmatpush.msra.mxu0 %v3164
    %3182 = vmatmul.f32.gmra.mxu0 %v3162
    %v3183 = vpop.f32.mrf.mxu0
    %v3184 = vadd.f32 0.0, %v3183
    %3185 = vdwg.mxu0
    %v3187 = vsel %vm416, %v3184, 0
    %3189 = vmatpush.msra.mxu0 0.0
    %3190 = vmatpush.msra.mxu0 0.0
    %3191 = vmatpush.msra.mxu0 0.0
    %3192 = vmatpush.msra.mxu0 0.0
    %3193 = vmatpush.msra.mxu0 0.0
    %3194 = vmatpush.msra.mxu0 0.0
    %3195 = vmatpush.msra.mxu0 0.0
    %3196 = vmatpush.msra.mxu0 0.0
    %3197 = vmatpush.msra.mxu0 0.0
    %3198 = vmatpush.msra.mxu0 0.0
    %3199 = vmatpush.msra.mxu0 0.0
    %3200 = vmatpush.msra.mxu0 0.0
    %3201 = vmatpush.msra.mxu0 0.0
    %3202 = vmatpush.msra.mxu0 0.0
    %3203 = vmatpush.msra.mxu0 0.0
    %3204 = vmatpush.msra.mxu0 %v2649
    %3205 = vmatmul.f32.gmra.mxu0 %v3187
    %v3206 = vpop.f32.mrf.mxu0
    %v3207 = vadd.f32 0.0, %v3206
    %3208 = vdwg.mxu0
    %v3209 = vadd.f32 %v3119, %v3207
    %3210 = vrot.lane.b32.xlu0 %v2936, 104
    %v3211 = vpop.permute.xlu0 %3210
    %3212 = vrot.lane.b32.xlu0 %v2936, 72
    %v3213 = vpop.permute.xlu0 %3212
    %v3214 = vsel %vm416, %v3211, 0
    %v3216 = vsel %vm416, %v3213, 0
    %3218 = vmatpush.xpose.msra.mxu0 0.0
    %3219 = vmatpush.xpose.msra.mxu0 0.0
    %3220 = vmatpush.xpose.msra.mxu0 0.0
    %3221 = vmatpush.xpose.msra.mxu0 0.0
    %3222 = vmatpush.xpose.msra.mxu0 0.0
    %3223 = vmatpush.xpose.msra.mxu0 0.0
    %3224 = vmatpush.xpose.msra.mxu0 0.0
    %3225 = vmatpush.xpose.msra.mxu0 0.0
    %3226 = vmatpush.xpose.msra.mxu0 0.0
    %3227 = vmatpush.xpose.msra.mxu0 0.0
    %3228 = vmatpush.xpose.msra.mxu0 0.0
    %3229 = vmatpush.xpose.msra.mxu0 0.0
    %3230 = vmatpush.xpose.msra.mxu0 0.0
    %3231 = vmatpush.xpose.msra.mxu0 0.0
    %3232 = vmatpush.xpose.msra.mxu0 0.0
    %3233 = vmatpush.xpose.msra.mxu0 %v3216
    %3234 = vmatmul.f32.gmra.mxu0 %v3214
    %v3235 = vpop.f32.mrf.mxu0
    %v3236 = vadd.f32 0.0, %v3235
    %3237 = vdwg.mxu0
    %v3238 = vsel %vm2965, %v3236, -inf
    %3239 = vmax.xlane.f32.xlu0 %v3238
    %v3240 = vpop.xlane.xlu0 %3239
    %v3241 = vsub.f32 %v3236, %v3240
    %v3242 = vmul.f32 %v3241, 1.442695
    %v3243 = vpow.pop %v3242
    %v3244 = vsel %vm2965, %v3243, 0.0
    %3245 = vadd.xlane.f32.xlu0 %v3244
    %v3246 = vpop.xlane.xlu0 %3245
    %v3247 = vrcp.pop %v3246
    %v3248 = vmul.f32 %v3243, %v3247
    %3249 = vrot.lane.b32.xlu0 %v2936, 40
    %v3250 = vpop.permute.xlu0 %3249
    %v3252 = vsel %vm2979, %v3248, 0
    %v3254 = vsel %vm2983, %v3250, 0
    %3256 = vmatpush.msra.mxu0 0.0
    %3257 = vmatpush.msra.mxu0 0.0
    %3258 = vmatpush.msra.mxu0 0.0
    %3259 = vmatpush.msra.mxu0 0.0
    %3260 = vmatpush.msra.mxu0 0.0
    %3261 = vmatpush.msra.mxu0 0.0
    %3262 = vmatpush.msra.mxu0 0.0
    %3263 = vmatpush.msra.mxu0 0.0
    %3264 = vmatpush.msra.mxu0 0.0
    %3265 = vmatpush.msra.mxu0 0.0
    %3266 = vmatpush.msra.mxu0 0.0
    %3267 = vmatpush.msra.mxu0 0.0
    %3268 = vmatpush.msra.mxu0 0.0
    %3269 = vmatpush.msra.mxu0 0.0
    %3270 = vmatpush.msra.mxu0 0.0
    %3271 = vmatpush.msra.mxu0 %v3254
    %3272 = vmatmul.f32.gmra.mxu0 %v3252
    %v3273 = vpop.f32.mrf.mxu0
    %v3274 = vadd.f32 0.0, %v3273
    %3275 = vdwg.mxu0
    %v3277 = vsel %vm416, %v3274, 0
    %3279 = vmatpush.msra.mxu0 0.0
    %3280 = vmatpush.msra.mxu0 0.0
    %3281 = vmatpush.msra.mxu0 0.0
    %3282 = vmatpush.msra.mxu0 0.0
    %3283 = vmatpush.msra.mxu0 0.0
    %3284 = vmatpush.msra.mxu0 0.0
    %3285 = vmatpush.msra.mxu0 0.0
    %3286 = vmatpush.msra.mxu0 0.0
    %3287 = vmatpush.msra.mxu0 0.0
    %3288 = vmatpush.msra.mxu0 0.0
    %3289 = vmatpush.msra.mxu0 0.0
    %3290 = vmatpush.msra.mxu0 0.0
    %3291 = vmatpush.msra.mxu0 0.0
    %3292 = vmatpush.msra.mxu0 0.0
    %3293 = vmatpush.msra.mxu0 0.0
    %3294 = vmatpush.msra.mxu0 %v2650
    %3295 = vmatmul.f32.gmra.mxu0 %v3277
    %v3296 = vpop.f32.mrf.mxu0
    %v3297 = vadd.f32 0.0, %v3296
    %3298 = vdwg.mxu0
    %v3299 = vadd.f32 %v3209, %v3297
    %v3300 = vperm.slane %v2666, 0
    %v3301 = vadd.f32 %v3299, %v3300
    %v3302 = vsel %vm2888, %v3301, 0.0
    %3303 = vadd.xlane.f32.xlu0 %v3302
    %v3304 = vpop.xlane.xlu0 %3303
    %v3305 = vmul.f32 %v3304, %v306
    %v3306 = vsub.f32 %v3301, %v3305
    %v3307 = vmul.f32 %v3306, %v3306
    %v3308 = vsel %vm2888, %v3307, 0.0
    %3309 = vadd.xlane.f32.xlu0 %v3308
    %v3310 = vpop.xlane.xlu0 %3309
    %v3311 = vmul.f32 %v3310, %v306
    %v3312 = vadd.f32 %v3311, 1e-05
    %v3313 = vrsqrt.pop %v3312
    %v3314 = vmul.f32 %v3313, %v3312
    %v3315 = vmul.f32 %v3314, %v3313
    %v3316 = vmul.f32 0.5, %v3315
    %v3317 = vsub.f32 1.5, %v3316
    %v3318 = vmul.f32 %v3313, %v3317
    %vm3319 = vweird.f32 %v3312
    %vm3320 = vweird.f32 %v3313
    %vm3321 = vmor %vm3319, %vm3320
    %v3322 = vsel %vm3321, %v3313, %v3318
    %v3323 = vmul.f32 %v3306, %v3322
    %v3324 = vperm.slane %v2667, 0
    %v3325 = vmul.f32 %v3323, %v3324
    %v3326 = vperm.slane %v2668, 0
    %v3327 = vadd.f32 %v3325, %v3326
    %v3328 = vperm.slane %v2669, 0
    %v3330 = vsel %vm289, %v3327, 0
    %3332 = vmatpush.msra.mxu0 0.0
    %3333 = vmatpush.msra.mxu0 0.0
    %3334 = vmatpush.msra.mxu0 0.0
    %3335 = vmatpush.msra.mxu0 0.0
    %3336 = vmatpush.msra.mxu0 0.0
    %3337 = vmatpush.msra.mxu0 0.0
    %3338 = vmatpush.msra.mxu0 0.0
    %3339 = vmatpush.msra.mxu0 0.0
    %3340 = vmatpush.msra.mxu0 0.0
    %3341 = vmatpush.msra.mxu0 0.0
    %3342 = vmatpush.msra.mxu0 0.0
    %3343 = vmatpush.msra.mxu0 0.0
    %3344 = vmatpush.msra.mxu0 %v2654
    %3345 = vmatpush.msra.mxu0 %v2653
    %3346 = vmatpush.msra.mxu0 %v2652
    %3347 = vmatpush.msra.mxu0 %v2651
    %3348 = vmatmul.f32.gmra.mxu0 %v3330
    %v3349 = vpop.f32.mrf.mxu0
    %v3350 = vadd.f32 %v3328, %v3349
    %3351 = vdwg.mxu0
    %v3352 = vmul.f32 %v3350, 0.5
    %v3353 = vmul.f32 %v3350, 0.70710677
    %v3354 = vmul.f32 %v3353, %v3353
    %v3355 = vmin.f32 16.0, %v3354
    %v3356 = vmul.f32 %v3355, 2.1237322e-06
    %v3357 = vadd.f32 %v3356, 0.00028619796
    %v3358 = vmul.f32 %v3355, %v3357
    %v3359 = vadd.f32 %v3358, 0.0036580483
    %v3360 = vmul.f32 %v3355, %v3359
    %v3361 = vadd.f32 %v3360, 0.05243302
    %v3362 = vmul.f32 %v3355, %v3361
    %v3363 = vadd.f32 %v3362, 0.18741608
    %v3364 = vmul.f32 %v3355, %v3363
    %v3365 = vadd.f32 %v3364, 1.1283791
    %v3366 = vmul.f32 %v3353, %v3365
    %v3367 = vmul.f32 %v3355, 3.8918573e-05
    %v3368 = vadd.f32 %v3367, 0.001143296
    %v3369 = vmul.f32 %v3355, %v3368
    %v3370 = vadd.f32 %v3369, 0.014752088
    %v3371 = vmul.f32 %v3355, %v3370
    %v3372 = vadd.f32 %v3371, 0.112945676
    %v3373 = vmul.f32 %v3355, %v3372
    %v3374 = vadd.f32 %v3373, 0.4994258
    %v3375 = vmul.f32 %v3355, %v3374
    %v3376 = vadd.f32 %v3375, 1.0
    %v3377 = vrcp.pop %v3376
    %v3378 = vmul.f32 %v3376, %v3377
    %v3379 = vsub.f32 1.0, %v3378
    %v3380 = vmul.f32 %v3377, %v3379
    %v3381 = vadd.f32 %v3377, %v3380
    %vm3382 = vweird.f32 %v3376
    %vm3383 = vweird.f32 %v3377
    %vm3384 = vmor %vm3382, %vm3383
    %v3385 = vsel %vm3384, %v3377, %v3381
    %v3386 = vand.u32 2147483647, %v3376
    %vm3387 = vcmp.eq.f32.partialorder %v3386, 8.507059e+37
    %v3388 = vand.u32 %v3376, 2147483648
    %v3389 = vor.u32 1.1754944e-38, %v3388
    %v3390 = vsel %vm3387, %v3389, %v3385
    %v3391 = vmul.f32 %v3366, %v3390
    %v3392 = vmin.f32 %v3391, 1.0
    %v3393 = vmax.f32 %v3392, -1.0
    %v3394 = vadd.f32 %v3393, 1.0
    %v3395 = vmul.f32 %v3352, %v3394
    %v3397 = vsel %vm1317, %v3395, 0
    %3399 = vmatpush.msra.mxu0 0.0
    %3400 = vmatpush.msra.mxu0 0.0
    %3401 = vmatpush.msra.mxu0 0.0
    %3402 = vmatpush.msra.mxu0 0.0
    %3403 = vmatpush.msra.mxu0 0.0
    %3404 = vmatpush.msra.mxu0 0.0
    %3405 = vmatpush.msra.mxu0 0.0
    %3406 = vmatpush.msra.mxu0 0.0
    %3407 = vmatpush.msra.mxu0 %v2662
    %3408 = vmatpush.msra.mxu0 %v2661
    %3409 = vmatpush.msra.mxu0 %v2660
    %3410 = vmatpush.msra.mxu0 %v2659
    %3411 = vmatpush.msra.mxu0 %v2658
    %3412 = vmatpush.msra.mxu0 %v2657
    %3413 = vmatpush.msra.mxu0 %v2656
    %3414 = vmatpush.msra.mxu0 %v2655
    %3415 = vmatmul.f32.gmra.mxu0 %v3397
    %v3416 = vpop.f32.mrf.mxu0
    %v3417 = vadd.f32 0.0, %v3416
    %3418 = vdwg.mxu0
    %v3419 = vadd.f32 %v3301, %v3417
    %v3420 = vperm.slane %v2670, 0
    %v3421 = vadd.f32 %v3419, %v3420
    %v3422 = vsel %vm2888, %v3421, 0.0
    %3423 = vadd.xlane.f32.xlu0 %v3422
    %v3424 = vpop.xlane.xlu0 %3423
    %v3425 = vmul.f32 %v3424, %v306
    %v3426 = vsub.f32 %v3421, %v3425
    %v3427 = vmul.f32 %v3426, %v3426
    %v3428 = vsel %vm2888, %v3427, 0.0
    %3429 = vadd.xlane.f32.xlu0 %v3428
    %v3430 = vpop.xlane.xlu0 %3429
    %v3431 = vmul.f32 %v3430, %v306
    %v3432 = vadd.f32 %v3431, 1e-05
    %v3433 = vrsqrt.pop %v3432
    %v3434 = vmul.f32 %v3433, %v3432
    %v3435 = vmul.f32 %v3434, %v3433
    %v3436 = vmul.f32 0.5, %v3435
    %v3437 = vsub.f32 1.5, %v3436
    %v3438 = vmul.f32 %v3433, %v3437
    %vm3439 = vweird.f32 %v3432
    %vm3440 = vweird.f32 %v3433
    %vm3441 = vmor %vm3439, %vm3440
    %v3442 = vsel %vm3441, %v3433, %v3438
    %v3443 = vmul.f32 %v3426, %v3442
    %v3444 = vperm.slane %v2671, 0
    %v3445 = vmul.f32 %v3443, %v3444
    %v3446 = vperm.slane %v2672, 0
    %v3447 = vadd.f32 %v3445, %v3446
    %3450 = vrot.lane.b32.xlu0 %v2635, 118
    %v3451 = vpop.permute.xlu0 %3450
    %3452 = vrot.lane.b32.xlu0 %v2638, 118
    %v3453 = vpop.permute.xlu0 %3452
    %3454 = vrot.lane.b32.xlu0 %v2641, 118
    %v3455 = vpop.permute.xlu0 %3454
    %v3458 = vsel %vm58, %v3455, 0
    %3460 = vmatpush.msra.mxu0 0.0
    %3461 = vmatpush.msra.mxu0 0.0
    %3462 = vmatpush.msra.mxu0 0.0
    %3463 = vmatpush.msra.mxu0 0.0
    %3464 = vmatpush.msra.mxu0 0.0
    %3465 = vmatpush.msra.mxu0 0.0
    %3466 = vmatpush.msra.mxu0 0.0
    %3467 = vmatpush.msra.mxu0 0.0
    %3468 = vmatpush.msra.mxu0 0.0
    %3469 = vmatpush.msra.mxu0 0.0
    %3470 = vmatpush.msra.mxu0 0.0
    %3471 = vmatpush.msra.mxu0 0.0
    %3472 = vmatpush.msra.mxu0 0.0
    %3473 = vmatpush.msra.mxu0 %v3458
    %3474 = vmatpush.msra.mxu0 %v3453
    %3475 = vmatpush.msra.mxu0 %v3451
    %3476 = vmatmul.f32.gmra.mxu0 %v2677
    %v3477 = vpop.f32.mrf.mxu0
    %v3478 = vadd.f32 0.0, %v3477
    %3479 = vdwg.mxu0
    %v3481 = vsel %vm246, %v3478, 0
    %3483 = vmatpush.msra.mxu0 0.0
    %3484 = vmatpush.msra.mxu0 0.0
    %3485 = vmatpush.msra.mxu0 0.0
    %3486 = vmatpush.msra.mxu0 0.0
    %3487 = vmatpush.msra.mxu0 0.0
    %3488 = vmatpush.msra.mxu0 0.0
    %3489 = vmatpush.msra.mxu0 0.0
    %3490 = vmatpush.msra.mxu0 0.0
    %3491 = vmatpush.msra.mxu0 0.0
    %3492 = vmatpush.msra.mxu0 0.0
    %3493 = vmatpush.msra.mxu0 0.0
    %3494 = vmatpush.msra.mxu0 0.0
    %3495 = vmatpush.msra.mxu0 0.0
    %3496 = vmatpush.msra.mxu0 0.0
    %3497 = vmatpush.msra.mxu0 %v2706
    %3498 = vmatpush.msra.mxu0 %v2674
    %3499 = vmatmul.f32.gmra.mxu0 %v3481
    %v3500 = vpop.f32.mrf.mxu0
    %v3501 = vadd.f32 0.0, %v3500
    %3502 = vdwg.mxu0
    %v3503 = vadd.f32 %v2663, %v3501
    %3504 = vmatpush.msra.mxu0 0.0
    %3505 = vmatpush.msra.mxu0 0.0
    %3506 = vmatpush.msra.mxu0 0.0
    %3507 = vmatpush.msra.mxu0 0.0
    %3508 = vmatpush.msra.mxu0 0.0
    %3509 = vmatpush.msra.mxu0 0.0
    %3510 = vmatpush.msra.mxu0 0.0
    %3511 = vmatpush.msra.mxu0 0.0
    %3512 = vmatpush.msra.mxu0 0.0
    %3513 = vmatpush.msra.mxu0 0.0
    %3514 = vmatpush.msra.mxu0 0.0
    %3515 = vmatpush.msra.mxu0 0.0
    %3516 = vmatpush.msra.mxu0 0.0
    %3517 = vmatpush.msra.mxu0 %v3458
    %3518 = vmatpush.msra.mxu0 %v3453
    %3519 = vmatpush.msra.mxu0 %v3451
    %3520 = vmatmul.f32.gmra.mxu0 %v2733
    %v3521 = vpop.f32.mrf.mxu0
    %v3522 = vadd.f32 0.0, %v3521
    %3523 = vdwg.mxu0
    %v3525 = vsel %vm246, %v3522, 0
    %3527 = vmatpush.msra.mxu0 0.0
    %3528 = vmatpush.msra.mxu0 0.0
    %3529 = vmatpush.msra.mxu0 0.0
    %3530 = vmatpush.msra.mxu0 0.0
    %3531 = vmatpush.msra.mxu0 0.0
    %3532 = vmatpush.msra.mxu0 0.0
    %3533 = vmatpush.msra.mxu0 0.0
    %3534 = vmatpush.msra.mxu0 0.0
    %3535 = vmatpush.msra.mxu0 0.0
    %3536 = vmatpush.msra.mxu0 0.0
    %3537 = vmatpush.msra.mxu0 0.0
    %3538 = vmatpush.msra.mxu0 0.0
    %3539 = vmatpush.msra.mxu0 0.0
    %3540 = vmatpush.msra.mxu0 0.0
    %3541 = vmatpush.msra.mxu0 %v2759
    %3542 = vmatpush.msra.mxu0 %v2730
    %3543 = vmatmul.f32.gmra.mxu0 %v3525
    %v3544 = vpop.f32.mrf.mxu0
    %v3545 = vadd.f32 0.0, %v3544
    %3546 = vdwg.mxu0
    %v3547 = vadd.f32 %v3503, %v3545
    %3548 = vmatpush.msra.mxu0 0.0
    %3549 = vmatpush.msra.mxu0 0.0
    %3550 = vmatpush.msra.mxu0 0.0
    %3551 = vmatpush.msra.mxu0 0.0
    %3552 = vmatpush.msra.mxu0 0.0
    %3553 = vmatpush.msra.mxu0 0.0
    %3554 = vmatpush.msra.mxu0 0.0
    %3555 = vmatpush.msra.mxu0 0.0
    %3556 = vmatpush.msra.mxu0 0.0
    %3557 = vmatpush.msra.mxu0 0.0
    %3558 = vmatpush.msra.mxu0 0.0
    %3559 = vmatpush.msra.mxu0 0.0
    %3560 = vmatpush.msra.mxu0 0.0
    %3561 = vmatpush.msra.mxu0 %v3458
    %3562 = vmatpush.msra.mxu0 %v3453
    %3563 = vmatpush.msra.mxu0 %v3451
    %3564 = vmatmul.f32.gmra.mxu0 %v2786
    %v3565 = vpop.f32.mrf.mxu0
    %v3566 = vadd.f32 0.0, %v3565
    %3567 = vdwg.mxu0
    %v3569 = vsel %vm246, %v3566, 0
    %3571 = vmatpush.msra.mxu0 0.0
    %3572 = vmatpush.msra.mxu0 0.0
    %3573 = vmatpush.msra.mxu0 0.0
    %3574 = vmatpush.msra.mxu0 0.0
    %3575 = vmatpush.msra.mxu0 0.0
    %3576 = vmatpush.msra.mxu0 0.0
    %3577 = vmatpush.msra.mxu0 0.0
    %3578 = vmatpush.msra.mxu0 0.0
    %3579 = vmatpush.msra.mxu0 0.0
    %3580 = vmatpush.msra.mxu0 0.0
    %3581 = vmatpush.msra.mxu0 0.0
    %3582 = vmatpush.msra.mxu0 0.0
    %3583 = vmatpush.msra.mxu0 0.0
    %3584 = vmatpush.msra.mxu0 0.0
    %3585 = vmatpush.msra.mxu0 %v2812
    %3586 = vmatpush.msra.mxu0 %v2783
    %3587 = vmatmul.f32.gmra.mxu0 %v3569
    %v3588 = vpop.f32.mrf.mxu0
    %v3589 = vadd.f32 0.0, %v3588
    %3590 = vdwg.mxu0
    %v3591 = vadd.f32 %v3547, %v3589
    %3592 = vmatpush.msra.mxu0 0.0
    %3593 = vmatpush.msra.mxu0 0.0
    %3594 = vmatpush.msra.mxu0 0.0
    %3595 = vmatpush.msra.mxu0 0.0
    %3596 = vmatpush.msra.mxu0 0.0
    %3597 = vmatpush.msra.mxu0 0.0
    %3598 = vmatpush.msra.mxu0 0.0
    %3599 = vmatpush.msra.mxu0 0.0
    %3600 = vmatpush.msra.mxu0 0.0
    %3601 = vmatpush.msra.mxu0 0.0
    %3602 = vmatpush.msra.mxu0 0.0
    %3603 = vmatpush.msra.mxu0 0.0
    %3604 = vmatpush.msra.mxu0 0.0
    %3605 = vmatpush.msra.mxu0 %v3458
    %3606 = vmatpush.msra.mxu0 %v3453
    %3607 = vmatpush.msra.mxu0 %v3451
    %3608 = vmatmul.f32.gmra.mxu0 %v2839
    %v3609 = vpop.f32.mrf.mxu0
    %v3610 = vadd.f32 0.0, %v3609
    %3611 = vdwg.mxu0
    %v3613 = vsel %vm246, %v3610, 0
    %3615 = vmatpush.msra.mxu0 0.0
    %3616 = vmatpush.msra.mxu0 0.0
    %3617 = vmatpush.msra.mxu0 0.0
    %3618 = vmatpush.msra.mxu0 0.0
    %3619 = vmatpush.msra.mxu0 0.0
    %3620 = vmatpush.msra.mxu0 0.0
    %3621 = vmatpush.msra.mxu0 0.0
    %3622 = vmatpush.msra.mxu0 0.0
    %3623 = vmatpush.msra.mxu0 0.0
    %3624 = vmatpush.msra.mxu0 0.0
    %3625 = vmatpush.msra.mxu0 0.0
    %3626 = vmatpush.msra.mxu0 0.0
    %3627 = vmatpush.msra.mxu0 0.0
    %3628 = vmatpush.msra.mxu0 0.0
    %3629 = vmatpush.msra.mxu0 %v2865
    %3630 = vmatpush.msra.mxu0 %v2836
    %3631 = vmatmul.f32.gmra.mxu0 %v3613
    %v3632 = vpop.f32.mrf.mxu0
    %v3633 = vadd.f32 0.0, %v3632
    %3634 = vdwg.mxu0
    %v3635 = vadd.f32 %v3591, %v3633
    %v3636 = vsel %vm2888, %v3635, 0.0
    %3637 = vadd.xlane.f32.xlu0 %v3636
    %v3638 = vpop.xlane.xlu0 %3637
    %v3639 = vmul.f32 %v3638, %v306
    %v3640 = vsub.f32 %v3635, %v3639
    %v3641 = vmul.f32 %v3640, %v3640
    %v3642 = vsel %vm2888, %v3641, 0.0
    %3643 = vadd.xlane.f32.xlu0 %v3642
    %v3644 = vpop.xlane.xlu0 %3643
    %v3645 = vmul.f32 %v3644, %v306
    %v3646 = vadd.f32 %v3645, 1e-05
    %v3647 = vrsqrt.pop %v3646
    %v3648 = vmul.f32 %v3647, %v3646
    %v3649 = vmul.f32 %v3648, %v3647
    %v3650 = vmul.f32 0.5, %v3649
    %v3651 = vsub.f32 1.5, %v3650
    %v3652 = vmul.f32 %v3647, %v3651
    %vm3653 = vweird.f32 %v3646
    %vm3654 = vweird.f32 %v3647
    %vm3655 = vmor %vm3653, %vm3654
    %v3656 = vsel %vm3655, %v3647, %v3652
    %v3657 = vmul.f32 %v3640, %v3656
    %v3658 = vmul.f32 %v3657, %v2911
    %v3659 = vadd.f32 %v3658, %v2913
    %v3661 = vsel %vm289, %v3659, 0
    %3663 = vmatpush.msra.mxu0 0.0
    %3664 = vmatpush.msra.mxu0 0.0
    %3665 = vmatpush.msra.mxu0 0.0
    %3666 = vmatpush.msra.mxu0 0.0
    %3667 = vmatpush.msra.mxu0 0.0
    %3668 = vmatpush.msra.mxu0 0.0
    %3669 = vmatpush.msra.mxu0 0.0
    %3670 = vmatpush.msra.mxu0 0.0
    %3671 = vmatpush.msra.mxu0 0.0
    %3672 = vmatpush.msra.mxu0 0.0
    %3673 = vmatpush.msra.mxu0 0.0
    %3674 = vmatpush.msra.mxu0 0.0
    %3675 = vmatpush.msra.mxu0 %v2646
    %3676 = vmatpush.msra.mxu0 %v2645
    %3677 = vmatpush.msra.mxu0 %v2644
    %3678 = vmatpush.msra.mxu0 %v2643
    %3679 = vmatmul.f32.gmra.mxu0 %v3661
    %v3680 = vpop.f32.mrf.mxu0
    %v3681 = vadd.f32 0.0, %v3680
    %3682 = vdwg.mxu0
    %3684 = vrot.lane.b32.xlu0 %v3681, 96
    %v3685 = vpop.permute.xlu0 %3684
    %v3686 = vsel %vm416, %v3681, 0
    %v3688 = vsel %vm416, %v3685, 0
    %3690 = vmatpush.xpose.msra.mxu0 0.0
    %3691 = vmatpush.xpose.msra.mxu0 0.0
    %3692 = vmatpush.xpose.msra.mxu0 0.0
    %3693 = vmatpush.xpose.msra.mxu0 0.0
    %3694 = vmatpush.xpose.msra.mxu0 0.0
    %3695 = vmatpush.xpose.msra.mxu0 0.0
    %3696 = vmatpush.xpose.msra.mxu0 0.0
    %3697 = vmatpush.xpose.msra.mxu0 0.0
    %3698 = vmatpush.xpose.msra.mxu0 0.0
    %3699 = vmatpush.xpose.msra.mxu0 0.0
    %3700 = vmatpush.xpose.msra.mxu0 0.0
    %3701 = vmatpush.xpose.msra.mxu0 0.0
    %3702 = vmatpush.xpose.msra.mxu0 0.0
    %3703 = vmatpush.xpose.msra.mxu0 0.0
    %3704 = vmatpush.xpose.msra.mxu0 0.0
    %3705 = vmatpush.xpose.msra.mxu0 %v3688
    %3706 = vmatmul.f32.gmra.mxu0 %v3686
    %v3707 = vpop.f32.mrf.mxu0
    %v3708 = vadd.f32 0.0, %v3707
    %3709 = vdwg.mxu0
    %v3710 = vsel %vm2965, %v3708, -inf
    %3711 = vmax.xlane.f32.xlu0 %v3710
    %v3712 = vpop.xlane.xlu0 %3711
    %v3713 = vsub.f32 %v3708, %v3712
    %v3714 = vmul.f32 %v3713, 1.442695
    %v3715 = vpow.pop %v3714
    %v3716 = vsel %vm2965, %v3715, 0.0
    %3717 = vadd.xlane.f32.xlu0 %v3716
    %v3718 = vpop.xlane.xlu0 %3717
    %v3719 = vrcp.pop %v3718
    %v3720 = vmul.f32 %v3715, %v3719
    %3721 = vrot.lane.b32.xlu0 %v3681, 64
    %v3722 = vpop.permute.xlu0 %3721
    %v3724 = vsel %vm2979, %v3720, 0
    %v3726 = vsel %vm2983, %v3722, 0
    %3728 = vmatpush.msra.mxu0 0.0
    %3729 = vmatpush.msra.mxu0 0.0
    %3730 = vmatpush.msra.mxu0 0.0
    %3731 = vmatpush.msra.mxu0 0.0
    %3732 = vmatpush.msra.mxu0 0.0
    %3733 = vmatpush.msra.mxu0 0.0
    %3734 = vmatpush.msra.mxu0 0.0
    %3735 = vmatpush.msra.mxu0 0.0
    %3736 = vmatpush.msra.mxu0 0.0
    %3737 = vmatpush.msra.mxu0 0.0
    %3738 = vmatpush.msra.mxu0 0.0
    %3739 = vmatpush.msra.mxu0 0.0
    %3740 = vmatpush.msra.mxu0 0.0
    %3741 = vmatpush.msra.mxu0 0.0
    %3742 = vmatpush.msra.mxu0 0.0
    %3743 = vmatpush.msra.mxu0 %v3726
    %3744 = vmatmul.f32.gmra.mxu0 %v3724
    %v3745 = vpop.f32.mrf.mxu0
    %v3746 = vadd.f32 0.0, %v3745
    %3747 = vdwg.mxu0
    %v3749 = vsel %vm416, %v3746, 0
    %3751 = vmatpush.msra.mxu0 0.0
    %3752 = vmatpush.msra.mxu0 0.0
    %3753 = vmatpush.msra.mxu0 0.0
    %3754 = vmatpush.msra.mxu0 0.0
    %3755 = vmatpush.msra.mxu0 0.0
    %3756 = vmatpush.msra.mxu0 0.0
    %3757 = vmatpush.msra.mxu0 0.0
    %3758 = vmatpush.msra.mxu0 0.0
    %3759 = vmatpush.msra.mxu0 0.0
    %3760 = vmatpush.msra.mxu0 0.0
    %3761 = vmatpush.msra.mxu0 0.0
    %3762 = vmatpush.msra.mxu0 0.0
    %3763 = vmatpush.msra.mxu0 0.0
    %3764 = vmatpush.msra.mxu0 0.0
    %3765 = vmatpush.msra.mxu0 0.0
    %3766 = vmatpush.msra.mxu0 %v2647
    %3767 = vmatmul.f32.gmra.mxu0 %v3749
    %v3768 = vpop.f32.mrf.mxu0
    %v3769 = vadd.f32 0.0, %v3768
    %3770 = vdwg.mxu0
    %v3771 = vadd.f32 %v3635, %v3769
    %3772 = vrot.lane.b32.xlu0 %v3681, 120
    %v3773 = vpop.permute.xlu0 %3772
    %3774 = vrot.lane.b32.xlu0 %v3681, 88
    %v3775 = vpop.permute.xlu0 %3774
    %v3776 = vsel %vm416, %v3773, 0
    %v3778 = vsel %vm416, %v3775, 0
    %3780 = vmatpush.xpose.msra.mxu0 0.0
    %3781 = vmatpush.xpose.msra.mxu0 0.0
    %3782 = vmatpush.xpose.msra.mxu0 0.0
    %3783 = vmatpush.xpose.msra.mxu0 0.0
    %3784 = vmatpush.xpose.msra.mxu0 0.0
    %3785 = vmatpush.xpose.msra.mxu0 0.0
    %3786 = vmatpush.xpose.msra.mxu0 0.0
    %3787 = vmatpush.xpose.msra.mxu0 0.0
    %3788 = vmatpush.xpose.msra.mxu0 0.0
    %3789 = vmatpush.xpose.msra.mxu0 0.0
    %3790 = vmatpush.xpose.msra.mxu0 0.0
    %3791 = vmatpush.xpose.msra.mxu0 0.0
    %3792 = vmatpush.xpose.msra.mxu0 0.0
    %3793 = vmatpush.xpose.msra.mxu0 0.0
    %3794 = vmatpush.xpose.msra.mxu0 0.0
    %3795 = vmatpush.xpose.msra.mxu0 %v3778
    %3796 = vmatmul.f32.gmra.mxu0 %v3776
    %v3797 = vpop.f32.mrf.mxu0
    %v3798 = vadd.f32 0.0, %v3797
    %3799 = vdwg.mxu0
    %v3800 = vsel %vm2965, %v3798, -inf
    %3801 = vmax.xlane.f32.xlu0 %v3800
    %v3802 = vpop.xlane.xlu0 %3801
    %v3803 = vsub.f32 %v3798, %v3802
    %v3804 = vmul.f32 %v3803, 1.442695
    %v3805 = vpow.pop %v3804
    %v3806 = vsel %vm2965, %v3805, 0.0
    %3807 = vadd.xlane.f32.xlu0 %v3806
    %v3808 = vpop.xlane.xlu0 %3807
    %v3809 = vrcp.pop %v3808
    %v3810 = vmul.f32 %v3805, %v3809
    %3811 = vrot.lane.b32.xlu0 %v3681, 56
    %v3812 = vpop.permute.xlu0 %3811
    %v3814 = vsel %vm2979, %v3810, 0
    %v3816 = vsel %vm2983, %v3812, 0
    %3818 = vmatpush.msra.mxu0 0.0
    %3819 = vmatpush.msra.mxu0 0.0
    %3820 = vmatpush.msra.mxu0 0.0
    %3821 = vmatpush.msra.mxu0 0.0
    %3822 = vmatpush.msra.mxu0 0.0
    %3823 = vmatpush.msra.mxu0 0.0
    %3824 = vmatpush.msra.mxu0 0.0
    %3825 = vmatpush.msra.mxu0 0.0
    %3826 = vmatpush.msra.mxu0 0.0
    %3827 = vmatpush.msra.mxu0 0.0
    %3828 = vmatpush.msra.mxu0 0.0
    %3829 = vmatpush.msra.mxu0 0.0
    %3830 = vmatpush.msra.mxu0 0.0
    %3831 = vmatpush.msra.mxu0 0.0
    %3832 = vmatpush.msra.mxu0 0.0
    %3833 = vmatpush.msra.mxu0 %v3816
    %3834 = vmatmul.f32.gmra.mxu0 %v3814
    %v3835 = vpop.f32.mrf.mxu0
    %v3836 = vadd.f32 0.0, %v3835
    %3837 = vdwg.mxu0
    %v3839 = vsel %vm416, %v3836, 0
    %3841 = vmatpush.msra.mxu0 0.0
    %3842 = vmatpush.msra.mxu0 0.0
    %3843 = vmatpush.msra.mxu0 0.0
    %3844 = vmatpush.msra.mxu0 0.0
    %3845 = vmatpush.msra.mxu0 0.0
    %3846 = vmatpush.msra.mxu0 0.0
    %3847 = vmatpush.msra.mxu0 0.0
    %3848 = vmatpush.msra.mxu0 0.0
    %3849 = vmatpush.msra.mxu0 0.0
    %3850 = vmatpush.msra.mxu0 0.0
    %3851 = vmatpush.msra.mxu0 0.0
    %3852 = vmatpush.msra.mxu0 0.0
    %3853 = vmatpush.msra.mxu0 0.0
    %3854 = vmatpush.msra.mxu0 0.0
    %3855 = vmatpush.msra.mxu0 0.0
    %3856 = vmatpush.msra.mxu0 %v2648
    %3857 = vmatmul.f32.gmra.mxu0 %v3839
    %v3858 = vpop.f32.mrf.mxu0
    %v3859 = vadd.f32 0.0, %v3858
    %3860 = vdwg.mxu0
    %v3861 = vadd.f32 %v3771, %v3859
    %3862 = vrot.lane.b32.xlu0 %v3681, 112
    %v3863 = vpop.permute.xlu0 %3862
    %3864 = vrot.lane.b32.xlu0 %v3681, 80
    %v3865 = vpop.permute.xlu0 %3864
    %v3866 = vsel %vm416, %v3863, 0
    %v3868 = vsel %vm416, %v3865, 0
    %3870 = vmatpush.xpose.msra.mxu0 0.0
    %3871 = vmatpush.xpose.msra.mxu0 0.0
    %3872 = vmatpush.xpose.msra.mxu0 0.0
    %3873 = vmatpush.xpose.msra.mxu0 0.0
    %3874 = vmatpush.xpose.msra.mxu0 0.0
    %3875 = vmatpush.xpose.msra.mxu0 0.0
    %3876 = vmatpush.xpose.msra.mxu0 0.0
    %3877 = vmatpush.xpose.msra.mxu0 0.0
    %3878 = vmatpush.xpose.msra.mxu0 0.0
    %3879 = vmatpush.xpose.msra.mxu0 0.0
    %3880 = vmatpush.xpose.msra.mxu0 0.0
    %3881 = vmatpush.xpose.msra.mxu0 0.0
    %3882 = vmatpush.xpose.msra.mxu0 0.0
    %3883 = vmatpush.xpose.msra.mxu0 0.0
    %3884 = vmatpush.xpose.msra.mxu0 0.0
    %3885 = vmatpush.xpose.msra.mxu0 %v3868
    %3886 = vmatmul.f32.gmra.mxu0 %v3866
    %v3887 = vpop.f32.mrf.mxu0
    %v3888 = vadd.f32 0.0, %v3887
    %3889 = vdwg.mxu0
    %v3890 = vsel %vm2965, %v3888, -inf
    %3891 = vmax.xlane.f32.xlu0 %v3890
    %v3892 = vpop.xlane.xlu0 %3891
    %v3893 = vsub.f32 %v3888, %v3892
    %v3894 = vmul.f32 %v3893, 1.442695
    %v3895 = vpow.pop %v3894
    %v3896 = vsel %vm2965, %v3895, 0.0
    %3897 = vadd.xlane.f32.xlu0 %v3896
    %v3898 = vpop.xlane.xlu0 %3897
    %v3899 = vrcp.pop %v3898
    %v3900 = vmul.f32 %v3895, %v3899
    %3901 = vrot.lane.b32.xlu0 %v3681, 48
    %v3902 = vpop.permute.xlu0 %3901
    %v3904 = vsel %vm2979, %v3900, 0
    %v3906 = vsel %vm2983, %v3902, 0
    %3908 = vmatpush.msra.mxu0 0.0
    %3909 = vmatpush.msra.mxu0 0.0
    %3910 = vmatpush.msra.mxu0 0.0
    %3911 = vmatpush.msra.mxu0 0.0
    %3912 = vmatpush.msra.mxu0 0.0
    %3913 = vmatpush.msra.mxu0 0.0
    %3914 = vmatpush.msra.mxu0 0.0
    %3915 = vmatpush.msra.mxu0 0.0
    %3916 = vmatpush.msra.mxu0 0.0
    %3917 = vmatpush.msra.mxu0 0.0
    %3918 = vmatpush.msra.mxu0 0.0
    %3919 = vmatpush.msra.mxu0 0.0
    %3920 = vmatpush.msra.mxu0 0.0
    %3921 = vmatpush.msra.mxu0 0.0
    %3922 = vmatpush.msra.mxu0 0.0
    %3923 = vmatpush.msra.mxu0 %v3906
    %3924 = vmatmul.f32.gmra.mxu0 %v3904
    %v3925 = vpop.f32.mrf.mxu0
    %v3926 = vadd.f32 0.0, %v3925
    %3927 = vdwg.mxu0
    %v3929 = vsel %vm416, %v3926, 0
    %3931 = vmatpush.msra.mxu0 0.0
    %3932 = vmatpush.msra.mxu0 0.0
    %3933 = vmatpush.msra.mxu0 0.0
    %3934 = vmatpush.msra.mxu0 0.0
    %3935 = vmatpush.msra.mxu0 0.0
    %3936 = vmatpush.msra.mxu0 0.0
    %3937 = vmatpush.msra.mxu0 0.0
    %3938 = vmatpush.msra.mxu0 0.0
    %3939 = vmatpush.msra.mxu0 0.0
    %3940 = vmatpush.msra.mxu0 0.0
    %3941 = vmatpush.msra.mxu0 0.0
    %3942 = vmatpush.msra.mxu0 0.0
    %3943 = vmatpush.msra.mxu0 0.0
    %3944 = vmatpush.msra.mxu0 0.0
    %3945 = vmatpush.msra.mxu0 0.0
    %3946 = vmatpush.msra.mxu0 %v2649
    %3947 = vmatmul.f32.gmra.mxu0 %v3929
    %v3948 = vpop.f32.mrf.mxu0
    %v3949 = vadd.f32 0.0, %v3948
    %3950 = vdwg.mxu0
    %v3951 = vadd.f32 %v3861, %v3949
    %3952 = vrot.lane.b32.xlu0 %v3681, 104
    %v3953 = vpop.permute.xlu0 %3952
    %3954 = vrot.lane.b32.xlu0 %v3681, 72
    %v3955 = vpop.permute.xlu0 %3954
    %v3956 = vsel %vm416, %v3953, 0
    %v3958 = vsel %vm416, %v3955, 0
    %3960 = vmatpush.xpose.msra.mxu0 0.0
    %3961 = vmatpush.xpose.msra.mxu0 0.0
    %3962 = vmatpush.xpose.msra.mxu0 0.0
    %3963 = vmatpush.xpose.msra.mxu0 0.0
    %3964 = vmatpush.xpose.msra.mxu0 0.0
    %3965 = vmatpush.xpose.msra.mxu0 0.0
    %3966 = vmatpush.xpose.msra.mxu0 0.0
    %3967 = vmatpush.xpose.msra.mxu0 0.0
    %3968 = vmatpush.xpose.msra.mxu0 0.0
    %3969 = vmatpush.xpose.msra.mxu0 0.0
    %3970 = vmatpush.xpose.msra.mxu0 0.0
    %3971 = vmatpush.xpose.msra.mxu0 0.0
    %3972 = vmatpush.xpose.msra.mxu0 0.0
    %3973 = vmatpush.xpose.msra.mxu0 0.0
    %3974 = vmatpush.xpose.msra.mxu0 0.0
    %3975 = vmatpush.xpose.msra.mxu0 %v3958
    %3976 = vmatmul.f32.gmra.mxu0 %v3956
    %v3977 = vpop.f32.mrf.mxu0
    %v3978 = vadd.f32 0.0, %v3977
    %3979 = vdwg.mxu0
    %v3980 = vsel %vm2965, %v3978, -inf
    %3981 = vmax.xlane.f32.xlu0 %v3980
    %v3982 = vpop.xlane.xlu0 %3981
    %v3983 = vsub.f32 %v3978, %v3982
    %v3984 = vmul.f32 %v3983, 1.442695
    %v3985 = vpow.pop %v3984
    %v3986 = vsel %vm2965, %v3985, 0.0
    %3987 = vadd.xlane.f32.xlu0 %v3986
    %v3988 = vpop.xlane.xlu0 %3987
    %v3989 = vrcp.pop %v3988
    %v3990 = vmul.f32 %v3985, %v3989
    %3991 = vrot.lane.b32.xlu0 %v3681, 40
    %v3992 = vpop.permute.xlu0 %3991
    %v3994 = vsel %vm2979, %v3990, 0
    %v3996 = vsel %vm2983, %v3992, 0
    %3998 = vmatpush.msra.mxu0 0.0
    %3999 = vmatpush.msra.mxu0 0.0
    %4000 = vmatpush.msra.mxu0 0.0
    %4001 = vmatpush.msra.mxu0 0.0
    %4002 = vmatpush.msra.mxu0 0.0
    %4003 = vmatpush.msra.mxu0 0.0
    %4004 = vmatpush.msra.mxu0 0.0
    %4005 = vmatpush.msra.mxu0 0.0
    %4006 = vmatpush.msra.mxu0 0.0
    %4007 = vmatpush.msra.mxu0 0.0
    %4008 = vmatpush.msra.mxu0 0.0
    %4009 = vmatpush.msra.mxu0 0.0
    %4010 = vmatpush.msra.mxu0 0.0
    %4011 = vmatpush.msra.mxu0 0.0
    %4012 = vmatpush.msra.mxu0 0.0
    %4013 = vmatpush.msra.mxu0 %v3996
    %4014 = vmatmul.f32.gmra.mxu0 %v3994
    %v4015 = vpop.f32.mrf.mxu0
    %v4016 = vadd.f32 0.0, %v4015
    %4017 = vdwg.mxu0
    %v4019 = vsel %vm416, %v4016, 0
    %4021 = vmatpush.msra.mxu0 0.0
    %4022 = vmatpush.msra.mxu0 0.0
    %4023 = vmatpush.msra.mxu0 0.0
    %4024 = vmatpush.msra.mxu0 0.0
    %4025 = vmatpush.msra.mxu0 0.0
    %4026 = vmatpush.msra.mxu0 0.0
    %4027 = vmatpush.msra.mxu0 0.0
    %4028 = vmatpush.msra.mxu0 0.0
    %4029 = vmatpush.msra.mxu0 0.0
    %4030 = vmatpush.msra.mxu0 0.0
    %4031 = vmatpush.msra.mxu0 0.0
    %4032 = vmatpush.msra.mxu0 0.0
    %4033 = vmatpush.msra.mxu0 0.0
    %4034 = vmatpush.msra.mxu0 0.0
    %4035 = vmatpush.msra.mxu0 0.0
    %4036 = vmatpush.msra.mxu0 %v2650
    %4037 = vmatmul.f32.gmra.mxu0 %v4019
    %v4038 = vpop.f32.mrf.mxu0
    %v4039 = vadd.f32 0.0, %v4038
    %4040 = vdwg.mxu0
    %v4041 = vadd.f32 %v3951, %v4039
    %v4042 = vadd.f32 %v4041, %v3300
    %v4043 = vsel %vm2888, %v4042, 0.0
    %4044 = vadd.xlane.f32.xlu0 %v4043
    %v4045 = vpop.xlane.xlu0 %4044
    %v4046 = vmul.f32 %v4045, %v306
    %v4047 = vsub.f32 %v4042, %v4046
    %v4048 = vmul.f32 %v4047, %v4047
    %v4049 = vsel %vm2888, %v4048, 0.0
    %4050 = vadd.xlane.f32.xlu0 %v4049
    %v4051 = vpop.xlane.xlu0 %4050
    %v4052 = vmul.f32 %v4051, %v306
    %v4053 = vadd.f32 %v4052, 1e-05
    %v4054 = vrsqrt.pop %v4053
    %v4055 = vmul.f32 %v4054, %v4053
    %v4056 = vmul.f32 %v4055, %v4054
    %v4057 = vmul.f32 0.5, %v4056
    %v4058 = vsub.f32 1.5, %v4057
    %v4059 = vmul.f32 %v4054, %v4058
    %vm4060 = vweird.f32 %v4053
    %vm4061 = vweird.f32 %v4054
    %vm4062 = vmor %vm4060, %vm4061
    %v4063 = vsel %vm4062, %v4054, %v4059
    %v4064 = vmul.f32 %v4047, %v4063
    %v4065 = vmul.f32 %v4064, %v3324
    %v4066 = vadd.f32 %v4065, %v3326
    %v4068 = vsel %vm289, %v4066, 0
    %4070 = vmatpush.msra.mxu0 0.0
    %4071 = vmatpush.msra.mxu0 0.0
    %4072 = vmatpush.msra.mxu0 0.0
    %4073 = vmatpush.msra.mxu0 0.0
    %4074 = vmatpush.msra.mxu0 0.0
    %4075 = vmatpush.msra.mxu0 0.0
    %4076 = vmatpush.msra.mxu0 0.0
    %4077 = vmatpush.msra.mxu0 0.0
    %4078 = vmatpush.msra.mxu0 0.0
    %4079 = vmatpush.msra.mxu0 0.0
    %4080 = vmatpush.msra.mxu0 0.0
    %4081 = vmatpush.msra.mxu0 0.0
    %4082 = vmatpush.msra.mxu0 %v2654
    %4083 = vmatpush.msra.mxu0 %v2653
    %4084 = vmatpush.msra.mxu0 %v2652
    %4085 = vmatpush.msra.mxu0 %v2651
    %4086 = vmatmul.f32.gmra.mxu0 %v4068
    %v4087 = vpop.f32.mrf.mxu0
    %v4088 = vadd.f32 %v3328, %v4087
    %4089 = vdwg.mxu0
    %v4090 = vmul.f32 %v4088, 0.5
    %v4091 = vmul.f32 %v4088, 0.70710677
    %v4092 = vmul.f32 %v4091, %v4091
    %v4093 = vmin.f32 16.0, %v4092
    %v4094 = vmul.f32 %v4093, 2.1237322e-06
    %v4095 = vadd.f32 %v4094, 0.00028619796
    %v4096 = vmul.f32 %v4093, %v4095
    %v4097 = vadd.f32 %v4096, 0.0036580483
    %v4098 = vmul.f32 %v4093, %v4097
    %v4099 = vadd.f32 %v4098, 0.05243302
    %v4100 = vmul.f32 %v4093, %v4099
    %v4101 = vadd.f32 %v4100, 0.18741608
    %v4102 = vmul.f32 %v4093, %v4101
    %v4103 = vadd.f32 %v4102, 1.1283791
    %v4104 = vmul.f32 %v4091, %v4103
    %v4105 = vmul.f32 %v4093, 3.8918573e-05
    %v4106 = vadd.f32 %v4105, 0.001143296
    %v4107 = vmul.f32 %v4093, %v4106
    %v4108 = vadd.f32 %v4107, 0.014752088
    %v4109 = vmul.f32 %v4093, %v4108
    %v4110 = vadd.f32 %v4109, 0.112945676
    %v4111 = vmul.f32 %v4093, %v4110
    %v4112 = vadd.f32 %v4111, 0.4994258
    %v4113 = vmul.f32 %v4093, %v4112
    %v4114 = vadd.f32 %v4113, 1.0
    %v4115 = vrcp.pop %v4114
    %v4116 = vmul.f32 %v4114, %v4115
    %v4117 = vsub.f32 1.0, %v4116
    %v4118 = vmul.f32 %v4115, %v4117
    %v4119 = vadd.f32 %v4115, %v4118
    %vm4120 = vweird.f32 %v4114
    %vm4121 = vweird.f32 %v4115
    %vm4122 = vmor %vm4120, %vm4121
    %v4123 = vsel %vm4122, %v4115, %v4119
    %v4124 = vand.u32 2147483647, %v4114
    %vm4125 = vcmp.eq.f32.partialorder %v4124, 8.507059e+37
    %v4126 = vand.u32 %v4114, 2147483648
    %v4127 = vor.u32 1.1754944e-38, %v4126
    %v4128 = vsel %vm4125, %v4127, %v4123
    %v4129 = vmul.f32 %v4104, %v4128
    %v4130 = vmin.f32 %v4129, 1.0
    %v4131 = vmax.f32 %v4130, -1.0
    %v4132 = vadd.f32 %v4131, 1.0
    %v4133 = vmul.f32 %v4090, %v4132
    %v4135 = vsel %vm1317, %v4133, 0
    %4137 = vmatpush.msra.mxu0 0.0
    %4138 = vmatpush.msra.mxu0 0.0
    %4139 = vmatpush.msra.mxu0 0.0
    %4140 = vmatpush.msra.mxu0 0.0
    %4141 = vmatpush.msra.mxu0 0.0
    %4142 = vmatpush.msra.mxu0 0.0
    %4143 = vmatpush.msra.mxu0 0.0
    %4144 = vmatpush.msra.mxu0 0.0
    %4145 = vmatpush.msra.mxu0 %v2662
    %4146 = vmatpush.msra.mxu0 %v2661
    %4147 = vmatpush.msra.mxu0 %v2660
    %4148 = vmatpush.msra.mxu0 %v2659
    %4149 = vmatpush.msra.mxu0 %v2658
    %4150 = vmatpush.msra.mxu0 %v2657
    %4151 = vmatpush.msra.mxu0 %v2656
    %4152 = vmatpush.msra.mxu0 %v2655
    %4153 = vmatmul.f32.gmra.mxu0 %v4135
    %v4154 = vpop.f32.mrf.mxu0
    %v4155 = vadd.f32 0.0, %v4154
    %4156 = vdwg.mxu0
    %v4157 = vadd.f32 %v4042, %v4155
    %v4158 = vadd.f32 %v4157, %v3420
    %v4159 = vsel %vm2888, %v4158, 0.0
    %4160 = vadd.xlane.f32.xlu0 %v4159
    %v4161 = vpop.xlane.xlu0 %4160
    %v4162 = vmul.f32 %v4161, %v306
    %v4163 = vsub.f32 %v4158, %v4162
    %v4164 = vmul.f32 %v4163, %v4163
    %v4165 = vsel %vm2888, %v4164, 0.0
    %4166 = vadd.xlane.f32.xlu0 %v4165
    %v4167 = vpop.xlane.xlu0 %4166
    %v4168 = vmul.f32 %v4167, %v306
    %v4169 = vadd.f32 %v4168, 1e-05
    %v4170 = vrsqrt.pop %v4169
    %v4171 = vmul.f32 %v4170, %v4169
    %v4172 = vmul.f32 %v4171, %v4170
    %v4173 = vmul.f32 0.5, %v4172
    %v4174 = vsub.f32 1.5, %v4173
    %v4175 = vmul.f32 %v4170, %v4174
    %vm4176 = vweird.f32 %v4169
    %vm4177 = vweird.f32 %v4170
    %vm4178 = vmor %vm4176, %vm4177
    %v4179 = vsel %vm4178, %v4170, %v4175
    %v4180 = vmul.f32 %v4163, %v4179
    %v4181 = vmul.f32 %v4180, %v3444
    %v4182 = vadd.f32 %v4181, %v3446
    %v4183 = vadd.f32 %v1379, %v3447
    %v4184 = vld [vmem:[#allocation2 + $0x2b8] sm:$0x1]
    %v4185 = vld [vmem:[#allocation2 + $0x2b9] sm:$0x1]
    %v4186 = vld [vmem:[#allocation2 + $0x2c0] sm:$0xff]
    %v4187 = vld [vmem:[#allocation2 + $0x2c8] sm:$0xff]
    %v4188 = vld [vmem:[#allocation2 + $0x2d0] sm:$0xff]
    %v4189 = vld [vmem:[#allocation2 + $0x2d8] sm:$0xff]
    %v4190 = vld [vmem:[#allocation2 + $0x320] sm:$0x1]
    %vm4191 = vcmask 253952
    %v4192 = vsel %vm4191, %v1379, 0.0
    %4193 = vadd.xlane.f32.xlu0 %v4192
    %v4194 = vpop.xlane.xlu0 %4193
    %v4195 = vmul.f32 %v4194, %v306
    %v4196 = vsub.f32 %v1379, %v4195
    %v4197 = vmul.f32 %v4196, %v4196
    %v4198 = vsel %vm4191, %v4197, 0.0
    %4199 = vadd.xlane.f32.xlu0 %v4198
    %v4200 = vpop.xlane.xlu0 %4199
    %v4201 = vmul.f32 %v4200, %v306
    %v4202 = vadd.f32 %v4201, 1e-05
    %v4203 = vrsqrt.pop %v4202
    %v4204 = vmul.f32 %v4203, %v4202
    %v4205 = vmul.f32 %v4204, %v4203
    %v4206 = vmul.f32 0.5, %v4205
    %v4207 = vsub.f32 1.5, %v4206
    %v4208 = vmul.f32 %v4203, %v4207
    %vm4209 = vweird.f32 %v4202
    %vm4210 = vweird.f32 %v4203
    %vm4211 = vmor %vm4209, %vm4210
    %v4212 = vsel %vm4211, %v4203, %v4208
    %v4213 = vmul.f32 %v4196, %v4212
    %v4214 = vmul.f32 %v4213, %v4184
    %v4215 = vadd.f32 %v4214, %v4185
    %v4217 = vsel %vm289, %v4215, 0
    %4219 = vmatpush.msra.mxu0 0.0
    %4220 = vmatpush.msra.mxu0 0.0
    %4221 = vmatpush.msra.mxu0 0.0
    %4222 = vmatpush.msra.mxu0 0.0
    %4223 = vmatpush.msra.mxu0 0.0
    %4224 = vmatpush.msra.mxu0 0.0
    %4225 = vmatpush.msra.mxu0 0.0
    %4226 = vmatpush.msra.mxu0 0.0
    %4227 = vmatpush.msra.mxu0 0.0
    %4228 = vmatpush.msra.mxu0 0.0
    %4229 = vmatpush.msra.mxu0 0.0
    %4230 = vmatpush.msra.mxu0 0.0
    %4231 = vmatpush.msra.mxu0 %v4189
    %4232 = vmatpush.msra.mxu0 %v4188
    %4233 = vmatpush.msra.mxu0 %v4187
    %4234 = vmatpush.msra.mxu0 %v4186
    %4235 = vmatmul.f32.gmra.mxu0 %v4217
    %v4236 = vpop.f32.mrf.mxu0
    %v4237 = vadd.f32 %v4190, %v4236
    %4238 = vdwg.mxu0
    %vm4239 = vcmask 73728
    %4240 = vst.msk [vmem:[%s2] sm:$0x1] %vm4239, %v4237
    %v4241 = vld [vmem:[#allocation2 + $0x2ba] sm:$0x1]
    %v4242 = vld [vmem:[#allocation2 + $0x2bb] sm:$0x1]
    %v4243 = vld [vmem:[#allocation2 + $0x2e0] sm:$0xff]
    %v4244 = vld [vmem:[#allocation2 + $0x2e8] sm:$0xff]
    %v4245 = vld [vmem:[#allocation2 + $0x2f0] sm:$0xff]
    %v4246 = vld [vmem:[#allocation2 + $0x2f8] sm:$0xff]
    %v4247 = vld [vmem:[#allocation2 + $0x321] sm:$0x1]
    %v4248 = vsel %vm4191, %v3447, 0.0
    %4249 = vadd.xlane.f32.xlu0 %v4248
    %v4250 = vpop.xlane.xlu0 %4249
    %v4251 = vmul.f32 %v4250, %v306
    %v4252 = vsub.f32 %v3447, %v4251
    %v4253 = vmul.f32 %v4252, %v4252
    %v4254 = vsel %vm4191, %v4253, 0.0
    %4255 = vadd.xlane.f32.xlu0 %v4254
    %v4256 = vpop.xlane.xlu0 %4255
    %v4257 = vmul.f32 %v4256, %v306
    %v4258 = vadd.f32 %v4257, 1e-05
    %v4259 = vrsqrt.pop %v4258
    %v4260 = vmul.f32 %v4259, %v4258
    %v4261 = vmul.f32 %v4260, %v4259
    %v4262 = vmul.f32 0.5, %v4261
    %v4263 = vsub.f32 1.5, %v4262
    %v4264 = vmul.f32 %v4259, %v4263
    %vm4265 = vweird.f32 %v4258
    %vm4266 = vweird.f32 %v4259
    %vm4267 = vmor %vm4265, %vm4266
    %v4268 = vsel %vm4267, %v4259, %v4264
    %v4269 = vmul.f32 %v4252, %v4268
    %v4270 = vmul.f32 %v4269, %v4241
    %v4271 = vadd.f32 %v4270, %v4242
    %v4273 = vsel %vm289, %v4271, 0
    %4275 = vmatpush.msra.mxu0 0.0
    %4276 = vmatpush.msra.mxu0 0.0
    %4277 = vmatpush.msra.mxu0 0.0
    %4278 = vmatpush.msra.mxu0 0.0
    %4279 = vmatpush.msra.mxu0 0.0
    %4280 = vmatpush.msra.mxu0 0.0
    %4281 = vmatpush.msra.mxu0 0.0
    %4282 = vmatpush.msra.mxu0 0.0
    %4283 = vmatpush.msra.mxu0 0.0
    %4284 = vmatpush.msra.mxu0 0.0
    %4285 = vmatpush.msra.mxu0 0.0
    %4286 = vmatpush.msra.mxu0 0.0
    %4287 = vmatpush.msra.mxu0 %v4246
    %4288 = vmatpush.msra.mxu0 %v4245
    %4289 = vmatpush.msra.mxu0 %v4244
    %4290 = vmatpush.msra.mxu0 %v4243
    %4291 = vmatmul.f32.gmra.mxu0 %v4273
    %v4292 = vpop.f32.mrf.mxu0
    %v4293 = vadd.f32 %v4247, %v4292
    %4294 = vdwg.mxu0
    %4295 = vst.msk [vmem:[%s2 + $0x2] sm:$0x1] %vm4239, %v4293
    %v4296 = vld [vmem:[#allocation2 + $0x2bc] sm:$0x1]
    %v4297 = vld [vmem:[#allocation2 + $0x2bd] sm:$0x1]
    %v4298 = vld [vmem:[#allocation2 + $0x300] sm:$0xff]
    %v4299 = vld [vmem:[#allocation2 + $0x308] sm:$0xff]
    %v4300 = vld [vmem:[#allocation2 + $0x310] sm:$0xff]
    %v4301 = vld [vmem:[#allocation2 + $0x318] sm:$0xff]
    %v4302 = vld [vmem:[#allocation2 + $0x322] sm:$0x1]
    %v4303 = vsel %vm4191, %v4183, 0.0
    %4304 = vadd.xlane.f32.xlu0 %v4303
    %v4305 = vpop.xlane.xlu0 %4304
    %v4306 = vmul.f32 %v4305, %v306
    %v4307 = vsub.f32 %v4183, %v4306
    %v4308 = vmul.f32 %v4307, %v4307
    %v4309 = vsel %vm4191, %v4308, 0.0
    %4310 = vadd.xlane.f32.xlu0 %v4309
    %v4311 = vpop.xlane.xlu0 %4310
    %v4312 = vmul.f32 %v4311, %v306
    %v4313 = vadd.f32 %v4312, 1e-05
    %v4314 = vrsqrt.pop %v4313
    %v4315 = vmul.f32 %v4314, %v4313
    %v4316 = vmul.f32 %v4315, %v4314
    %v4317 = vmul.f32 0.5, %v4316
    %v4318 = vsub.f32 1.5, %v4317
    %v4319 = vmul.f32 %v4314, %v4318
    %vm4320 = vweird.f32 %v4313
    %vm4321 = vweird.f32 %v4314
    %vm4322 = vmor %vm4320, %vm4321
    %v4323 = vsel %vm4322, %v4314, %v4319
    %v4324 = vmul.f32 %v4307, %v4323
    %v4325 = vmul.f32 %v4324, %v4296
    %v4326 = vadd.f32 %v4325, %v4297
    %v4328 = vsel %vm289, %v4326, 0
    %4330 = vmatpush.msra.mxu0 0.0
    %4331 = vmatpush.msra.mxu0 0.0
    %4332 = vmatpush.msra.mxu0 0.0
    %4333 = vmatpush.msra.mxu0 0.0
    %4334 = vmatpush.msra.mxu0 0.0
    %4335 = vmatpush.msra.mxu0 0.0
    %4336 = vmatpush.msra.mxu0 0.0
    %4337 = vmatpush.msra.mxu0 0.0
    %4338 = vmatpush.msra.mxu0 0.0
    %4339 = vmatpush.msra.mxu0 0.0
    %4340 = vmatpush.msra.mxu0 0.0
    %4341 = vmatpush.msra.mxu0 0.0
    %4342 = vmatpush.msra.mxu0 %v4301
    %4343 = vmatpush.msra.mxu0 %v4300
    %4344 = vmatpush.msra.mxu0 %v4299
    %4345 = vmatpush.msra.mxu0 %v4298
    %4346 = vmatmul.f32.gmra.mxu0 %v4328
    %v4347 = vpop.f32.mrf.mxu0
    %v4348 = vadd.f32 %v4302, %v4347
    %4349 = vdwg.mxu0
    %4350 = vst.msk [vmem:[%s2 + $0x4] sm:$0x1] %vm4239, %v4348
    %v4351 = vadd.f32 %v2524, %v4182
    %v4352 = vld [vmem:[#allocation2 + $0x2b8] sm:$0x1]
    %v4353 = vld [vmem:[#allocation2 + $0x2b9] sm:$0x1]
    %v4354 = vld [vmem:[#allocation2 + $0x2c0] sm:$0xff]
    %v4355 = vld [vmem:[#allocation2 + $0x2c8] sm:$0xff]
    %v4356 = vld [vmem:[#allocation2 + $0x2d0] sm:$0xff]
    %v4357 = vld [vmem:[#allocation2 + $0x2d8] sm:$0xff]
    %v4358 = vld [vmem:[#allocation2 + $0x320] sm:$0x1]
    %v4359 = vsel %vm4191, %v2524, 0.0
    %4360 = vadd.xlane.f32.xlu0 %v4359
    %v4361 = vpop.xlane.xlu0 %4360
    %v4362 = vmul.f32 %v4361, %v306
    %v4363 = vsub.f32 %v2524, %v4362
    %v4364 = vmul.f32 %v4363, %v4363
    %v4365 = vsel %vm4191, %v4364, 0.0
    %4366 = vadd.xlane.f32.xlu0 %v4365
    %v4367 = vpop.xlane.xlu0 %4366
    %v4368 = vmul.f32 %v4367, %v306
    %v4369 = vadd.f32 %v4368, 1e-05
    %v4370 = vrsqrt.pop %v4369
    %v4371 = vmul.f32 %v4370, %v4369
    %v4372 = vmul.f32 %v4371, %v4370
    %v4373 = vmul.f32 0.5, %v4372
    %v4374 = vsub.f32 1.5, %v4373
    %v4375 = vmul.f32 %v4370, %v4374
    %vm4376 = vweird.f32 %v4369
    %vm4377 = vweird.f32 %v4370
    %vm4378 = vmor %vm4376, %vm4377
    %v4379 = vsel %vm4378, %v4370, %v4375
    %v4380 = vmul.f32 %v4363, %v4379
    %v4381 = vmul.f32 %v4380, %v4352
    %v4382 = vadd.f32 %v4381, %v4353
    %v4384 = vsel %vm289, %v4382, 0
    %4386 = vmatpush.msra.mxu0 0.0
    %4387 = vmatpush.msra.mxu0 0.0
    %4388 = vmatpush.msra.mxu0 0.0
    %4389 = vmatpush.msra.mxu0 0.0
    %4390 = vmatpush.msra.mxu0 0.0
    %4391 = vmatpush.msra.mxu0 0.0
    %4392 = vmatpush.msra.mxu0 0.0
    %4393 = vmatpush.msra.mxu0 0.0
    %4394 = vmatpush.msra.mxu0 0.0
    %4395 = vmatpush.msra.mxu0 0.0
    %4396 = vmatpush.msra.mxu0 0.0
    %4397 = vmatpush.msra.mxu0 0.0
    %4398 = vmatpush.msra.mxu0 %v4357
    %4399 = vmatpush.msra.mxu0 %v4356
    %4400 = vmatpush.msra.mxu0 %v4355
    %4401 = vmatpush.msra.mxu0 %v4354
    %4402 = vmatmul.f32.gmra.mxu0 %v4384
    %v4403 = vpop.f32.mrf.mxu0
    %v4404 = vadd.f32 %v4358, %v4403
    %4405 = vdwg.mxu0
    %4406 = vst.msk [vmem:[%s2 + $0x1] sm:$0x1] %vm4239, %v4404
    %v4407 = vld [vmem:[#allocation2 + $0x2ba] sm:$0x1]
    %v4408 = vld [vmem:[#allocation2 + $0x2bb] sm:$0x1]
    %v4409 = vld [vmem:[#allocation2 + $0x2e0] sm:$0xff]
    %v4410 = vld [vmem:[#allocation2 + $0x2e8] sm:$0xff]
    %v4411 = vld [vmem:[#allocation2 + $0x2f0] sm:$0xff]
    %v4412 = vld [vmem:[#allocation2 + $0x2f8] sm:$0xff]
    %v4413 = vld [vmem:[#allocation2 + $0x321] sm:$0x1]
    %v4414 = vsel %vm4191, %v4182, 0.0
    %4415 = vadd.xlane.f32.xlu0 %v4414
    %v4416 = vpop.xlane.xlu0 %4415
    %v4417 = vmul.f32 %v4416, %v306
    %v4418 = vsub.f32 %v4182, %v4417
    %v4419 = vmul.f32 %v4418, %v4418
    %v4420 = vsel %vm4191, %v4419, 0.0
    %4421 = vadd.xlane.f32.xlu0 %v4420
    %v4422 = vpop.xlane.xlu0 %4421
    %v4423 = vmul.f32 %v4422, %v306
    %v4424 = vadd.f32 %v4423, 1e-05
    %v4425 = vrsqrt.pop %v4424
    %v4426 = vmul.f32 %v4425, %v4424
    %v4427 = vmul.f32 %v4426, %v4425
    %v4428 = vmul.f32 0.5, %v4427
    %v4429 = vsub.f32 1.5, %v4428
    %v4430 = vmul.f32 %v4425, %v4429
    %vm4431 = vweird.f32 %v4424
    %vm4432 = vweird.f32 %v4425
    %vm4433 = vmor %vm4431, %vm4432
    %v4434 = vsel %vm4433, %v4425, %v4430
    %v4435 = vmul.f32 %v4418, %v4434
    %v4436 = vmul.f32 %v4435, %v4407
    %v4437 = vadd.f32 %v4436, %v4408
    %v4439 = vsel %vm289, %v4437, 0
    %4441 = vmatpush.msra.mxu0 0.0
    %4442 = vmatpush.msra.mxu0 0.0
    %4443 = vmatpush.msra.mxu0 0.0
    %4444 = vmatpush.msra.mxu0 0.0
    %4445 = vmatpush.msra.mxu0 0.0
    %4446 = vmatpush.msra.mxu0 0.0
    %4447 = vmatpush.msra.mxu0 0.0
    %4448 = vmatpush.msra.mxu0 0.0
    %4449 = vmatpush.msra.mxu0 0.0
    %4450 = vmatpush.msra.mxu0 0.0
    %4451 = vmatpush.msra.mxu0 0.0
    %4452 = vmatpush.msra.mxu0 0.0
    %4453 = vmatpush.msra.mxu0 %v4412
    %4454 = vmatpush.msra.mxu0 %v4411
    %4455 = vmatpush.msra.mxu0 %v4410
    %4456 = vmatpush.msra.mxu0 %v4409
    %4457 = vmatmul.f32.gmra.mxu0 %v4439
    %v4458 = vpop.f32.mrf.mxu0
    %v4459 = vadd.f32 %v4413, %v4458
    %4460 = vdwg.mxu0
    %4461 = vst.msk [vmem:[%s2 + $0x3] sm:$0x1] %vm4239, %v4459
    %v4462 = vld [vmem:[#allocation2 + $0x2bc] sm:$0x1]
    %v4463 = vld [vmem:[#allocation2 + $0x2bd] sm:$0x1]
    %v4464 = vld [vmem:[#allocation2 + $0x300] sm:$0xff]
    %v4465 = vld [vmem:[#allocation2 + $0x308] sm:$0xff]
    %v4466 = vld [vmem:[#allocation2 + $0x310] sm:$0xff]
    %v4467 = vld [vmem:[#allocation2 + $0x318] sm:$0xff]
    %v4468 = vld [vmem:[#allocation2 + $0x322] sm:$0x1]
    %v4469 = vsel %vm4191, %v4351, 0.0
    %4470 = vadd.xlane.f32.xlu0 %v4469
    %v4471 = vpop.xlane.xlu0 %4470
    %v4472 = vmul.f32 %v4471, %v306
    %v4473 = vsub.f32 %v4351, %v4472
    %v4474 = vmul.f32 %v4473, %v4473
    %v4475 = vsel %vm4191, %v4474, 0.0
    %4476 = vadd.xlane.f32.xlu0 %v4475
    %v4477 = vpop.xlane.xlu0 %4476
    %v4478 = vmul.f32 %v4477, %v306
    %v4479 = vadd.f32 %v4478, 1e-05
    %v4480 = vrsqrt.pop %v4479
    %v4481 = vmul.f32 %v4480, %v4479
    %v4482 = vmul.f32 %v4481, %v4480
    %v4483 = vmul.f32 0.5, %v4482
    %v4484 = vsub.f32 1.5, %v4483
    %v4485 = vmul.f32 %v4480, %v4484
    %vm4486 = vweird.f32 %v4479
    %vm4487 = vweird.f32 %v4480
    %vm4488 = vmor %vm4486, %vm4487
    %v4489 = vsel %vm4488, %v4480, %v4485
    %v4490 = vmul.f32 %v4473, %v4489
    %v4491 = vmul.f32 %v4490, %v4462
    %v4492 = vadd.f32 %v4491, %v4463
    %v4494 = vsel %vm289, %v4492, 0
    %4496 = vmatpush.msra.mxu0 0.0
    %4497 = vmatpush.msra.mxu0 0.0
    %4498 = vmatpush.msra.mxu0 0.0
    %4499 = vmatpush.msra.mxu0 0.0
    %4500 = vmatpush.msra.mxu0 0.0
    %4501 = vmatpush.msra.mxu0 0.0
    %4502 = vmatpush.msra.mxu0 0.0
    %4503 = vmatpush.msra.mxu0 0.0
    %4504 = vmatpush.msra.mxu0 0.0
    %4505 = vmatpush.msra.mxu0 0.0
    %4506 = vmatpush.msra.mxu0 0.0
    %4507 = vmatpush.msra.mxu0 0.0
    %4508 = vmatpush.msra.mxu0 %v4467
    %4509 = vmatpush.msra.mxu0 %v4466
    %4510 = vmatpush.msra.mxu0 %v4465
    %4511 = vmatpush.msra.mxu0 %v4464
    %4512 = vmatmul.f32.gmra.mxu0 %v4494
    %v4513 = vpop.f32.mrf.mxu0
    %v4514 = vadd.f32 %v4468, %v4513
    %4515 = vdwg.mxu0
    %4516 = vst.msk [vmem:[%s2 + $0x5] sm:$0x1] %vm4239, %v4514
    // Predicated region
    $region14: #{vit_trahgr_forward.1} parent=1 // pred_check
      _
    $region15: #{vit_trahgr_forward.1} parent=1 // pred_check_branch
      %4518 = sbr.rel (0) target = $region17
    $region16: #{vit_trahgr_forward.1} parent=1 // pred_region
      _
    $region17: #{vit_trahgr_forward.1} parent=1 // pred_fallthru
      _
    // Predicated region
    $region18: #{vit_trahgr_forward.1} parent=1 // pred_check
      _
    $region19: #{vit_trahgr_forward.1} parent=1 // pred_check_branch
      %4520 = sbr.rel (0) target = $region21
    $region20: #{vit_trahgr_forward.1} parent=1 // pred_region
      _
    $region21: #{vit_trahgr_forward.1} parent=1 // pred_fallthru
      _
    %4521 = vsyncpa [#allocation3], 1

</llo_original>
